<compile_context>
chip_gen: v5e
topology: v5e:2x2
jax: 0.10.0
libtpu: 0.0.40
codegen_flags: <defaults>
</compile_context>

<pallas_src>
import jax
import jax.numpy as jnp
from jax.experimental import pallas as pl
from jax.experimental.pallas import tpu as pltpu

EPS = 1e-5


# ----------------------------- Pallas kernels ------------------------------

def _conv_bn_relu_pool_kernel(p_ref, w_ref, b_ref, g_ref, be_ref, o_ref):
    """Fused Conv(+bias) + BatchNorm(batch stats) + ReLU + 2x2 MaxPool.

    p_ref : (4, Mc, K) bf16  im2col patches; leading dim = the 4 pool corners,
                             rows within a corner ordered (b, i, j).
    w_ref : (K, C)     bf16  conv weight, (kh, kw, cin)-major.
    b/g/be: (1, C)     f32   conv bias, BN gamma, BN beta.
    o_ref : (Mc, C)    f32   pooled activation, rows ordered (b, i, j).
    """
    # conv = one matmul per pool corner (bf16 operands, f32 accumulation, MXU)
    ys = []
    for c in range(4):
        y = jnp.dot(p_ref[c], w_ref[...],
                    preferred_element_type=jnp.float32) + b_ref[...]
        ys.append(y)

    # BatchNorm (training mode): per-channel batch statistics over ALL rows
    # (= N*H*W, i.e. all four corner blocks), computed on VMEM-resident data.
    mc = ys[0].shape[0]
    inv_n = 1.0 / (4.0 * mc)
    ssum = ys[0].sum(axis=0, keepdims=True)
    for y in ys[1:]:
        ssum = ssum + y.sum(axis=0, keepdims=True)
    mean = ssum * inv_n
    vsum = jnp.square(ys[0] - mean).sum(axis=0, keepdims=True)
    for y in ys[1:]:
        vsum = vsum + jnp.square(y - mean).sum(axis=0, keepdims=True)
    var = vsum * inv_n                      # biased variance, as PyTorch uses
    scale = g_ref[...] * jax.lax.rsqrt(var + EPS)
    shift = be_ref[...] - mean * scale

    # ReLU + 2x2 max-pool (elementwise max over the 4 corner blocks)
    pooled = jnp.maximum(ys[0] * scale + shift, 0.0)
    for y in ys[1:]:
        pooled = jnp.maximum(pooled, jnp.maximum(y * scale + shift, 0.0))
    o_ref[...] = pooled


def _c3_fc_head_kernel(p_ref, w3_ref, b3_ref, g3_ref, be3_ref,
                       wf1_ref, bf1_ref, wf2_ref, bf2_ref, o_ref):
    """Fused c3 (Conv 16->120 + BN + ReLU) + fc1 (+ReLU) + fc2 (+LogSoftmax).

    p_ref: (B, 400) bf16 flattened 5x5x16 activation.  o_ref: (B, 10) f32.
    """
    # c3: Conv(16->120, k5) over a 5x5 map == plain matmul
    y = jnp.dot(p_ref[...], w3_ref[...],
                preferred_element_type=jnp.float32) + b3_ref[...]
    # BatchNorm over the batch rows (N*H*W == B here) + ReLU, all in f32
    n = y.shape[0]
    mean = y.sum(axis=0, keepdims=True) / n
    var = jnp.square(y - mean).sum(axis=0, keepdims=True) / n
    y = (y - mean) * (g3_ref[...] * jax.lax.rsqrt(var + EPS)) + be3_ref[...]
    y = jnp.maximum(y, 0.0)
    # fc1 + ReLU
    h = jnp.dot(y.astype(jnp.bfloat16), wf1_ref[...],
                preferred_element_type=jnp.float32) + bf1_ref[...]
    h = jnp.maximum(h, 0.0)
    # fc2 + LogSoftmax(dim=1) in f32
    logits = jnp.dot(h.astype(jnp.bfloat16), wf2_ref[...],
                     preferred_element_type=jnp.float32) + bf2_ref[...]
    z = logits - jnp.max(logits, axis=-1, keepdims=True)
    o_ref[...] = z - jnp.log(jnp.sum(jnp.exp(z), axis=-1, keepdims=True))


# ------------------------- pallas_call wrappers -----------------------------

def _full2d(shape):
    return pl.BlockSpec(shape, lambda i: (0, 0))


def _compiler_params():
    return pltpu.CompilerParams(dimension_semantics=("arbitrary",),
                                vmem_limit_bytes=32 * 1024 * 1024)


def conv_bn_relu_pool(x, w, b, g, be, *, k):
    """x: [B,H,W,Cin] f32 (already padded).  Returns [B,(H-k+1)//2,(W-k+1)//2,Cout]."""
    B, H, W, Cin = x.shape
    Ho, Wo = H - k + 1, W - k + 1
    Hp, Wp = Ho // 2, Wo // 2
    K = k * k * Cin
    Cout = w.shape[1]
    Mc = B * Hp * Wp

    # im2col glue (XLA): patch column ordering (kh, kw, cin) matches the weight
    # layout; output rows are grouped into the 4 pool corners so the kernel can
    # fuse the 2x2 max-pool as an elementwise max of row blocks.
    cols = []
    for di in range(k):
        for dj in range(k):
            cols.append(x[:, di:di + Ho, dj:dj + Wo, :])
    pf = jnp.stack(cols, axis=3).reshape(B, Ho, Wo, K)
    corners = [pf[:, p::2, q::2, :].reshape(Mc, K)
               for p in (0, 1) for q in (0, 1)]
    patches = jnp.stack(corners, axis=0).astype(jnp.bfloat16)       # (4, Mc, K)

    out = pl.pallas_call(
        _conv_bn_relu_pool_kernel,
        grid=(1,),
        out_shape=jax.ShapeDtypeStruct((Mc, Cout), jnp.float32),
        in_specs=[pl.BlockSpec((4, Mc, K), lambda i: (0, 0, 0)),
                  _full2d((K, Cout)),
                  _full2d((1, Cout)), _full2d((1, Cout)), _full2d((1, Cout))],
        out_specs=_full2d((Mc, Cout)),
        compiler_params=_compiler_params(),
        cost_estimate=pl.CostEstimate(
            flops=2 * 4 * Mc * K * Cout,
            transcendentals=Cout,
            bytes_accessed=4 * Mc * K * 2 + K * Cout * 2 + Mc * Cout * 4),
    )(patches, w.astype(jnp.bfloat16),
      b.reshape(1, Cout), g.reshape(1, Cout), be.reshape(1, Cout))
    return out.reshape(B, Hp, Wp, Cout)


def c3_fc_head(p3, params):
    B = p3.shape[0]
    bf = lambda a: a.astype(jnp.bfloat16)
    row = lambda a: a.reshape(1, -1)
    return pl.pallas_call(
        _c3_fc_head_kernel,
        grid=(1,),
        out_shape=jax.ShapeDtypeStruct((B, 10), jnp.float32),
        in_specs=[_full2d((B, 400)),
                  _full2d((400, 120)), _full2d((1, 120)),
                  _full2d((1, 120)), _full2d((1, 120)),
                  _full2d((120, 84)), _full2d((1, 84)),
                  _full2d((84, 10)), _full2d((1, 10))],
        out_specs=_full2d((B, 10)),
        compiler_params=_compiler_params(),
        cost_estimate=pl.CostEstimate(
            flops=2 * B * (400 * 120 + 120 * 84 + 84 * 10),
            transcendentals=120 + B * 10,
            bytes_accessed=B * 400 * 2 + 400 * 120 * 2 + 120 * 84 * 2
                            + 84 * 10 * 2 + B * 10 * 4),
    )(p3, bf(params["w3"]), row(params["b3"]), row(params["g3"]), row(params["be3"]),
      bf(params["wf1"]), row(params["bf1"]), bf(params["wf2"]), row(params["bf2"]))


# ------------------------------- model --------------------------------------

def init_params(key):
    ks = jax.random.split(key, 5)

    def conv_w(kk, kh, kw, cin, cout):
        # Stored as (KH*KW*Cin, Cout): a PyTorch (Cout,Cin,KH,KW) weight
        # transposed to (KH,KW,Cin,Cout) and flattened for the im2col matmul.
        return 0.1 * jax.random.normal(kk, (kh * kw * cin, cout), jnp.float32)

    def lin_w(kk, fin, fout):
        return 0.1 * jax.random.normal(kk, (fin, fout), jnp.float32)

    return {
        "w1": conv_w(ks[0], 5, 5, 1, 6),     "b1": jnp.zeros((6,), jnp.float32),
        "g1": jnp.ones((6,), jnp.float32),   "be1": jnp.zeros((6,), jnp.float32),
        "w2": conv_w(ks[1], 5, 5, 6, 16),    "b2": jnp.zeros((16,), jnp.float32),
        "g2": jnp.ones((16,), jnp.float32),  "be2": jnp.zeros((16,), jnp.float32),
        "w3": conv_w(ks[2], 5, 5, 16, 120),  "b3": jnp.zeros((120,), jnp.float32),
        "g3": jnp.ones((120,), jnp.float32), "be3": jnp.zeros((120,), jnp.float32),
        "wf1": lin_w(ks[3], 120, 84), "bf1": jnp.zeros((84,), jnp.float32),
        "wf2": lin_w(ks[4], 84, 10),  "bf2": jnp.zeros((10,), jnp.float32),
    }


def lenet5_forward(x_nchw, params):
    # x_nchw: [B, 1, 28, 28]  (28x28 so the flatten after c3 yields 120 feats)
    x = jnp.transpose(x_nchw, (0, 2, 3, 1)).astype(jnp.float32)      # NHWC

    # c1: Conv(1->6, k5, pad=2) + BN + ReLU + MaxPool2   -> [B,14,14,6]
    xp = jnp.pad(x, ((0, 0), (2, 2), (2, 2), (0, 0)))
    y = conv_bn_relu_pool(xp, params["w1"], params["b1"],
                          params["g1"], params["be1"], k=5)

    # c2: Conv(6->16, k5) + BN + ReLU + MaxPool2         -> [B,5,5,16]
    y = conv_bn_relu_pool(y, params["w2"], params["b2"],
                          params["g2"], params["be2"], k=5)

    # c3 + flatten + fc1 + fc2 (+LogSoftmax), fully fused in one kernel
    B = y.shape[0]
    p3 = y.reshape(B, 5 * 5 * 16).astype(jnp.bfloat16)
    return c3_fc_head(p3, params)


if __name__ == "__main__":
    key = jax.random.PRNGKey(0)
    k_x, k_p = jax.random.split(key)
    x = jax.random.normal(k_x, (2, 1, 28, 28), jnp.float32)  # NCHW like PyTorch
    params = init_params(k_p)

    out = jax.jit(lenet5_forward)(x, params)
    out = jax.block_until_ready(out)

    assert out.shape == (2, 10), out.shape
    # log-softmax rows must (log-)sum to 1
    assert jnp.allclose(jnp.sum(jnp.exp(out), axis=1), 1.0, atol=1e-4)
    print("KERNEL_OK")
</pallas_src>

<mosaic_0001>
module attributes {stable_mosaic.version = 11 : i64} {
  func.func @_conv_bn_relu_pool_kernel(%arg0: i32, %arg1: memref<4x392x25xbf16, #tpu.memory_space<vmem>>, %arg2: memref<25x6xbf16, #tpu.memory_space<vmem>>, %arg3: memref<1x6xf32, #tpu.memory_space<vmem>>, %arg4: memref<1x6xf32, #tpu.memory_space<vmem>>, %arg5: memref<1x6xf32, #tpu.memory_space<vmem>>, %arg6: memref<392x6xf32, #tpu.memory_space<vmem>>) attributes {dimension_semantics = [#tpu.dimension_semantics<arbitrary>], iteration_bounds = array<i64: 1>, scalar_prefetch = 0 : i64, scratch_operands = 0 : i64, tpu.core_type = #tpu.core_type<tc>, window_params = [{pipeline_mode = #tpu.pipeline_mode<synchronous>, transform_indices = @transform_0, window_bounds = array<i64: 4, 392, 25>}, {pipeline_mode = #tpu.pipeline_mode<synchronous>, transform_indices = @transform_1, window_bounds = array<i64: 25, 6>}, {pipeline_mode = #tpu.pipeline_mode<synchronous>, transform_indices = @transform_2, window_bounds = array<i64: 1, 6>}, {pipeline_mode = #tpu.pipeline_mode<synchronous>, transform_indices = @transform_3, window_bounds = array<i64: 1, 6>}, {pipeline_mode = #tpu.pipeline_mode<synchronous>, transform_indices = @transform_4, window_bounds = array<i64: 1, 6>}, {pipeline_mode = #tpu.pipeline_mode<synchronous>, transform_indices = @transform_5, window_bounds = array<i64: 392, 6>}]} {
    %c0 = arith.constant 0 : index
    %c0_0 = arith.constant 0 : index
    %c0_1 = arith.constant 0 : index
    %0 = vector.load %arg1[%c0, %c0_0, %c0_1] : memref<4x392x25xbf16, #tpu.memory_space<vmem>>, vector<1x392x25xbf16>
    %1 = vector.shape_cast %0 : vector<1x392x25xbf16> to vector<392x25xbf16>
    %c0_2 = arith.constant 0 : index
    %c0_3 = arith.constant 0 : index
    %2 = vector.load %arg2[%c0_2, %c0_3] : memref<25x6xbf16, #tpu.memory_space<vmem>>, vector<25x6xbf16>
    %cst = arith.constant dense<0.000000e+00> : vector<392x6xf32>
    %3 = tpu.matmul %1, %2, %cst {dimension_numbers = #tpu.dot_dimension_numbers<[1], [0], [0], [1], [0, 0, 1, 1], [], []>} : vector<392x25xbf16>, vector<25x6xbf16>, vector<392x6xf32> -> vector<392x6xf32>
    %c0_4 = arith.constant 0 : index
    %c0_5 = arith.constant 0 : index
    %4 = vector.load %arg3[%c0_4, %c0_5] : memref<1x6xf32, #tpu.memory_space<vmem>>, vector<1x6xf32>
    %5 = vector.broadcast %4 : vector<1x6xf32> to vector<392x6xf32>
    %6 = arith.addf %3, %5 : vector<392x6xf32>
    %c1 = arith.constant 1 : index
    %c0_6 = arith.constant 0 : index
    %c0_7 = arith.constant 0 : index
    %7 = vector.load %arg1[%c1, %c0_6, %c0_7] : memref<4x392x25xbf16, #tpu.memory_space<vmem>>, vector<1x392x25xbf16>
    %8 = vector.shape_cast %7 : vector<1x392x25xbf16> to vector<392x25xbf16>
    %c0_8 = arith.constant 0 : index
    %c0_9 = arith.constant 0 : index
    %9 = vector.load %arg2[%c0_8, %c0_9] : memref<25x6xbf16, #tpu.memory_space<vmem>>, vector<25x6xbf16>
    %cst_10 = arith.constant dense<0.000000e+00> : vector<392x6xf32>
    %10 = tpu.matmul %8, %9, %cst_10 {dimension_numbers = #tpu.dot_dimension_numbers<[1], [0], [0], [1], [0, 0, 1, 1], [], []>} : vector<392x25xbf16>, vector<25x6xbf16>, vector<392x6xf32> -> vector<392x6xf32>
    %c0_11 = arith.constant 0 : index
    %c0_12 = arith.constant 0 : index
    %11 = vector.load %arg3[%c0_11, %c0_12] : memref<1x6xf32, #tpu.memory_space<vmem>>, vector<1x6xf32>
    %12 = vector.broadcast %11 : vector<1x6xf32> to vector<392x6xf32>
    %13 = arith.addf %10, %12 : vector<392x6xf32>
    %c2 = arith.constant 2 : index
    %c0_13 = arith.constant 0 : index
    %c0_14 = arith.constant 0 : index
    %14 = vector.load %arg1[%c2, %c0_13, %c0_14] : memref<4x392x25xbf16, #tpu.memory_space<vmem>>, vector<1x392x25xbf16>
    %15 = vector.shape_cast %14 : vector<1x392x25xbf16> to vector<392x25xbf16>
    %c0_15 = arith.constant 0 : index
    %c0_16 = arith.constant 0 : index
    %16 = vector.load %arg2[%c0_15, %c0_16] : memref<25x6xbf16, #tpu.memory_space<vmem>>, vector<25x6xbf16>
    %cst_17 = arith.constant dense<0.000000e+00> : vector<392x6xf32>
    %17 = tpu.matmul %15, %16, %cst_17 {dimension_numbers = #tpu.dot_dimension_numbers<[1], [0], [0], [1], [0, 0, 1, 1], [], []>} : vector<392x25xbf16>, vector<25x6xbf16>, vector<392x6xf32> -> vector<392x6xf32>
    %c0_18 = arith.constant 0 : index
    %c0_19 = arith.constant 0 : index
    %18 = vector.load %arg3[%c0_18, %c0_19] : memref<1x6xf32, #tpu.memory_space<vmem>>, vector<1x6xf32>
    %19 = vector.broadcast %18 : vector<1x6xf32> to vector<392x6xf32>
    %20 = arith.addf %17, %19 : vector<392x6xf32>
    %c3 = arith.constant 3 : index
    %c0_20 = arith.constant 0 : index
    %c0_21 = arith.constant 0 : index
    %21 = vector.load %arg1[%c3, %c0_20, %c0_21] : memref<4x392x25xbf16, #tpu.memory_space<vmem>>, vector<1x392x25xbf16>
    %22 = vector.shape_cast %21 : vector<1x392x25xbf16> to vector<392x25xbf16>
    %c0_22 = arith.constant 0 : index
    %c0_23 = arith.constant 0 : index
    %23 = vector.load %arg2[%c0_22, %c0_23] : memref<25x6xbf16, #tpu.memory_space<vmem>>, vector<25x6xbf16>
    %cst_24 = arith.constant dense<0.000000e+00> : vector<392x6xf32>
    %24 = tpu.matmul %22, %23, %cst_24 {dimension_numbers = #tpu.dot_dimension_numbers<[1], [0], [0], [1], [0, 0, 1, 1], [], []>} : vector<392x25xbf16>, vector<25x6xbf16>, vector<392x6xf32> -> vector<392x6xf32>
    %c0_25 = arith.constant 0 : index
    %c0_26 = arith.constant 0 : index
    %25 = vector.load %arg3[%c0_25, %c0_26] : memref<1x6xf32, #tpu.memory_space<vmem>>, vector<1x6xf32>
    %26 = vector.broadcast %25 : vector<1x6xf32> to vector<392x6xf32>
    %27 = arith.addf %24, %26 : vector<392x6xf32>
    %cst_27 = arith.constant dense<0.000000e+00> : vector<6xf32>
    %28 = vector.multi_reduction <add>, %6, %cst_27 [0] : vector<392x6xf32> to vector<6xf32>
    %29 = vector.shape_cast %28 : vector<6xf32> to vector<1x6xf32>
    %cst_28 = arith.constant dense<0.000000e+00> : vector<6xf32>
    %30 = vector.multi_reduction <add>, %13, %cst_28 [0] : vector<392x6xf32> to vector<6xf32>
    %31 = vector.shape_cast %30 : vector<6xf32> to vector<1x6xf32>
    %32 = arith.addf %29, %31 : vector<1x6xf32>
    %cst_29 = arith.constant dense<0.000000e+00> : vector<6xf32>
    %33 = vector.multi_reduction <add>, %20, %cst_29 [0] : vector<392x6xf32> to vector<6xf32>
    %34 = vector.shape_cast %33 : vector<6xf32> to vector<1x6xf32>
    %35 = arith.addf %32, %34 : vector<1x6xf32>
    %cst_30 = arith.constant dense<0.000000e+00> : vector<6xf32>
    %36 = vector.multi_reduction <add>, %27, %cst_30 [0] : vector<392x6xf32> to vector<6xf32>
    %37 = vector.shape_cast %36 : vector<6xf32> to vector<1x6xf32>
    %38 = arith.addf %35, %37 : vector<1x6xf32>
    %cst_31 = arith.constant 6.37755089E-4 : f32
    %39 = vector.broadcast %cst_31 : f32 to vector<1x6xf32>
    %40 = arith.mulf %38, %39 : vector<1x6xf32>
    %41 = vector.broadcast %40 : vector<1x6xf32> to vector<392x6xf32>
    %42 = arith.subf %6, %41 : vector<392x6xf32>
    %43 = arith.mulf %42, %42 : vector<392x6xf32>
    %cst_32 = arith.constant dense<0.000000e+00> : vector<6xf32>
    %44 = vector.multi_reduction <add>, %43, %cst_32 [0] : vector<392x6xf32> to vector<6xf32>
    %45 = vector.shape_cast %44 : vector<6xf32> to vector<1x6xf32>
    %46 = vector.broadcast %40 : vector<1x6xf32> to vector<392x6xf32>
    %47 = arith.subf %13, %46 : vector<392x6xf32>
    %48 = arith.mulf %47, %47 : vector<392x6xf32>
    %cst_33 = arith.constant dense<0.000000e+00> : vector<6xf32>
    %49 = vector.multi_reduction <add>, %48, %cst_33 [0] : vector<392x6xf32> to vector<6xf32>
    %50 = vector.shape_cast %49 : vector<6xf32> to vector<1x6xf32>
    %51 = arith.addf %45, %50 : vector<1x6xf32>
    %52 = vector.broadcast %40 : vector<1x6xf32> to vector<392x6xf32>
    %53 = arith.subf %20, %52 : vector<392x6xf32>
    %54 = arith.mulf %53, %53 : vector<392x6xf32>
    %cst_34 = arith.constant dense<0.000000e+00> : vector<6xf32>
    %55 = vector.multi_reduction <add>, %54, %cst_34 [0] : vector<392x6xf32> to vector<6xf32>
    %56 = vector.shape_cast %55 : vector<6xf32> to vector<1x6xf32>
    %57 = arith.addf %51, %56 : vector<1x6xf32>
    %58 = vector.broadcast %40 : vector<1x6xf32> to vector<392x6xf32>
    %59 = arith.subf %27, %58 : vector<392x6xf32>
    %60 = arith.mulf %59, %59 : vector<392x6xf32>
    %cst_35 = arith.constant dense<0.000000e+00> : vector<6xf32>
    %61 = vector.multi_reduction <add>, %60, %cst_35 [0] : vector<392x6xf32> to vector<6xf32>
    %62 = vector.shape_cast %61 : vector<6xf32> to vector<1x6xf32>
    %63 = arith.addf %57, %62 : vector<1x6xf32>
    %cst_36 = arith.constant 6.37755089E-4 : f32
    %64 = vector.broadcast %cst_36 : f32 to vector<1x6xf32>
    %65 = arith.mulf %63, %64 : vector<1x6xf32>
    %c0_37 = arith.constant 0 : index
    %c0_38 = arith.constant 0 : index
    %66 = vector.load %arg4[%c0_37, %c0_38] : memref<1x6xf32, #tpu.memory_space<vmem>>, vector<1x6xf32>
    %cst_39 = arith.constant 9.99999974E-6 : f32
    %67 = vector.broadcast %cst_39 : f32 to vector<1x6xf32>
    %68 = arith.addf %65, %67 : vector<1x6xf32>
    %69 = math.rsqrt %68 : vector<1x6xf32>
    %70 = arith.mulf %66, %69 : vector<1x6xf32>
    %c0_40 = arith.constant 0 : index
    %c0_41 = arith.constant 0 : index
    %71 = vector.load %arg5[%c0_40, %c0_41] : memref<1x6xf32, #tpu.memory_space<vmem>>, vector<1x6xf32>
    %72 = arith.mulf %40, %70 : vector<1x6xf32>
    %73 = arith.subf %71, %72 : vector<1x6xf32>
    %74 = vector.broadcast %70 : vector<1x6xf32> to vector<392x6xf32>
    %75 = arith.mulf %6, %74 : vector<392x6xf32>
    %76 = vector.broadcast %73 : vector<1x6xf32> to vector<392x6xf32>
    %77 = arith.addf %75, %76 : vector<392x6xf32>
    %cst_42 = arith.constant 0.000000e+00 : f32
    %78 = vector.broadcast %cst_42 : f32 to vector<392x6xf32>
    %79 = arith.maximumf %77, %78 : vector<392x6xf32>
    %80 = vector.broadcast %70 : vector<1x6xf32> to vector<392x6xf32>
    %81 = arith.mulf %13, %80 : vector<392x6xf32>
    %82 = vector.broadcast %73 : vector<1x6xf32> to vector<392x6xf32>
    %83 = arith.addf %81, %82 : vector<392x6xf32>
    %cst_43 = arith.constant 0.000000e+00 : f32
    %84 = vector.broadcast %cst_43 : f32 to vector<392x6xf32>
    %85 = arith.maximumf %83, %84 : vector<392x6xf32>
    %86 = arith.maximumf %79, %85 : vector<392x6xf32>
    %87 = vector.broadcast %70 : vector<1x6xf32> to vector<392x6xf32>
    %88 = arith.mulf %20, %87 : vector<392x6xf32>
    %89 = vector.broadcast %73 : vector<1x6xf32> to vector<392x6xf32>
    %90 = arith.addf %88, %89 : vector<392x6xf32>
    %cst_44 = arith.constant 0.000000e+00 : f32
    %91 = vector.broadcast %cst_44 : f32 to vector<392x6xf32>
    %92 = arith.maximumf %90, %91 : vector<392x6xf32>
    %93 = arith.maximumf %86, %92 : vector<392x6xf32>
    %94 = vector.broadcast %70 : vector<1x6xf32> to vector<392x6xf32>
    %95 = arith.mulf %27, %94 : vector<392x6xf32>
    %96 = vector.broadcast %73 : vector<1x6xf32> to vector<392x6xf32>
    %97 = arith.addf %95, %96 : vector<392x6xf32>
    %cst_45 = arith.constant 0.000000e+00 : f32
    %98 = vector.broadcast %cst_45 : f32 to vector<392x6xf32>
    %99 = arith.maximumf %97, %98 : vector<392x6xf32>
    %100 = arith.maximumf %93, %99 : vector<392x6xf32>
    %c0_46 = arith.constant 0 : index
    %c0_47 = arith.constant 0 : index
    %101 = vector.load %arg6[%c0_46, %c0_47] : memref<392x6xf32, #tpu.memory_space<vmem>>, vector<392x6xf32>
    tpu.vector_store %arg6[%c0_46, %c0_47], %100 {strides = array<i32>} : memref<392x6xf32, #tpu.memory_space<vmem>>, vector<392x6xf32>,
    return
  }
  func.func @transform_0(%arg0: i32) -> (i32, i32, i32) {
    %c0_i32 = arith.constant 0 : i32
    %c0_i32_0 = arith.constant 0 : i32
    %c0_i32_1 = arith.constant 0 : i32
    %c0_i32_2 = arith.constant 0 : i32
    return %c0_i32, %c0_i32_0, %c0_i32_1 : i32, i32, i32
  }
  func.func @transform_1(%arg0: i32) -> (i32, i32) {
    %c0_i32 = arith.constant 0 : i32
    %c0_i32_0 = arith.constant 0 : i32
    %c0_i32_1 = arith.constant 0 : i32
    return %c0_i32, %c0_i32_0 : i32, i32
  }
  func.func @transform_2(%arg0: i32) -> (i32, i32) {
    %c0_i32 = arith.constant 0 : i32
    %c0_i32_0 = arith.constant 0 : i32
    %c0_i32_1 = arith.constant 0 : i32
    return %c0_i32, %c0_i32_0 : i32, i32
  }
  func.func @transform_3(%arg0: i32) -> (i32, i32) {
    %c0_i32 = arith.constant 0 : i32
    %c0_i32_0 = arith.constant 0 : i32
    %c0_i32_1 = arith.constant 0 : i32
    return %c0_i32, %c0_i32_0 : i32, i32
  }
  func.func @transform_4(%arg0: i32) -> (i32, i32) {
    %c0_i32 = arith.constant 0 : i32
    %c0_i32_0 = arith.constant 0 : i32
    %c0_i32_1 = arith.constant 0 : i32
    return %c0_i32, %c0_i32_0 : i32, i32
  }
  func.func @transform_5(%arg0: i32) -> (i32, i32) {
    %c0_i32 = arith.constant 0 : i32
    %c0_i32_0 = arith.constant 0 : i32
    %c0_i32_1 = arith.constant 0 : i32
    return %c0_i32, %c0_i32_0 : i32, i32
  }
}

module attributes {stable_mosaic.version = 11 : i64} {
  func.func @_conv_bn_relu_pool_kernel(%arg0: i32, %arg1: memref<4x50x150xbf16, #tpu.memory_space<vmem>>, %arg2: memref<150x16xbf16, #tpu.memory_space<vmem>>, %arg3: memref<1x16xf32, #tpu.memory_space<vmem>>, %arg4: memref<1x16xf32, #tpu.memory_space<vmem>>, %arg5: memref<1x16xf32, #tpu.memory_space<vmem>>, %arg6: memref<50x16xf32, #tpu.memory_space<vmem>>) attributes {dimension_semantics = [#tpu.dimension_semantics<arbitrary>], iteration_bounds = array<i64: 1>, scalar_prefetch = 0 : i64, scratch_operands = 0 : i64, tpu.core_type = #tpu.core_type<tc>, window_params = [{pipeline_mode = #tpu.pipeline_mode<synchronous>, transform_indices = @transform_0, window_bounds = array<i64: 4, 50, 150>}, {pipeline_mode = #tpu.pipeline_mode<synchronous>, transform_indices = @transform_1, window_bounds = array<i64: 150, 16>}, {pipeline_mode = #tpu.pipeline_mode<synchronous>, transform_indices = @transform_2, window_bounds = array<i64: 1, 16>}, {pipeline_mode = #tpu.pipeline_mode<synchronous>, transform_indices = @transform_3, window_bounds = array<i64: 1, 16>}, {pipeline_mode = #tpu.pipeline_mode<synchronous>, transform_indices = @transform_4, window_bounds = array<i64: 1, 16>}, {pipeline_mode = #tpu.pipeline_mode<synchronous>, transform_indices = @transform_5, window_bounds = array<i64: 50, 16>}]} {
    %c0 = arith.constant 0 : index
    %c0_0 = arith.constant 0 : index
    %c0_1 = arith.constant 0 : index
    %0 = vector.load %arg1[%c0, %c0_0, %c0_1] : memref<4x50x150xbf16, #tpu.memory_space<vmem>>, vector<1x50x150xbf16>
    %1 = vector.shape_cast %0 : vector<1x50x150xbf16> to vector<50x150xbf16>
    %c0_2 = arith.constant 0 : index
    %c0_3 = arith.constant 0 : index
    %2 = vector.load %arg2[%c0_2, %c0_3] : memref<150x16xbf16, #tpu.memory_space<vmem>>, vector<150x16xbf16>
    %cst = arith.constant dense<0.000000e+00> : vector<50x16xf32>
    %3 = tpu.matmul %1, %2, %cst {dimension_numbers = #tpu.dot_dimension_numbers<[1], [0], [0], [1], [0, 0, 1, 1], [], []>} : vector<50x150xbf16>, vector<150x16xbf16>, vector<50x16xf32> -> vector<50x16xf32>
    %c0_4 = arith.constant 0 : index
    %c0_5 = arith.constant 0 : index
    %4 = vector.load %arg3[%c0_4, %c0_5] : memref<1x16xf32, #tpu.memory_space<vmem>>, vector<1x16xf32>
    %5 = vector.broadcast %4 : vector<1x16xf32> to vector<50x16xf32>
    %6 = arith.addf %3, %5 : vector<50x16xf32>
    %c1 = arith.constant 1 : index
    %c0_6 = arith.constant 0 : index
    %c0_7 = arith.constant 0 : index
    %7 = vector.load %arg1[%c1, %c0_6, %c0_7] : memref<4x50x150xbf16, #tpu.memory_space<vmem>>, vector<1x50x150xbf16>
    %8 = vector.shape_cast %7 : vector<1x50x150xbf16> to vector<50x150xbf16>
    %c0_8 = arith.constant 0 : index
    %c0_9 = arith.constant 0 : index
    %9 = vector.load %arg2[%c0_8, %c0_9] : memref<150x16xbf16, #tpu.memory_space<vmem>>, vector<150x16xbf16>
    %cst_10 = arith.constant dense<0.000000e+00> : vector<50x16xf32>
    %10 = tpu.matmul %8, %9, %cst_10 {dimension_numbers = #tpu.dot_dimension_numbers<[1], [0], [0], [1], [0, 0, 1, 1], [], []>} : vector<50x150xbf16>, vector<150x16xbf16>, vector<50x16xf32> -> vector<50x16xf32>
    %c0_11 = arith.constant 0 : index
    %c0_12 = arith.constant 0 : index
    %11 = vector.load %arg3[%c0_11, %c0_12] : memref<1x16xf32, #tpu.memory_space<vmem>>, vector<1x16xf32>
    %12 = vector.broadcast %11 : vector<1x16xf32> to vector<50x16xf32>
    %13 = arith.addf %10, %12 : vector<50x16xf32>
    %c2 = arith.constant 2 : index
    %c0_13 = arith.constant 0 : index
    %c0_14 = arith.constant 0 : index
    %14 = vector.load %arg1[%c2, %c0_13, %c0_14] : memref<4x50x150xbf16, #tpu.memory_space<vmem>>, vector<1x50x150xbf16>
    %15 = vector.shape_cast %14 : vector<1x50x150xbf16> to vector<50x150xbf16>
    %c0_15 = arith.constant 0 : index
    %c0_16 = arith.constant 0 : index
    %16 = vector.load %arg2[%c0_15, %c0_16] : memref<150x16xbf16, #tpu.memory_space<vmem>>, vector<150x16xbf16>
    %cst_17 = arith.constant dense<0.000000e+00> : vector<50x16xf32>
    %17 = tpu.matmul %15, %16, %cst_17 {dimension_numbers = #tpu.dot_dimension_numbers<[1], [0], [0], [1], [0, 0, 1, 1], [], []>} : vector<50x150xbf16>, vector<150x16xbf16>, vector<50x16xf32> -> vector<50x16xf32>
    %c0_18 = arith.constant 0 : index
    %c0_19 = arith.constant 0 : index
    %18 = vector.load %arg3[%c0_18, %c0_19] : memref<1x16xf32, #tpu.memory_space<vmem>>, vector<1x16xf32>
    %19 = vector.broadcast %18 : vector<1x16xf32> to vector<50x16xf32>
    %20 = arith.addf %17, %19 : vector<50x16xf32>
    %c3 = arith.constant 3 : index
    %c0_20 = arith.constant 0 : index
    %c0_21 = arith.constant 0 : index
    %21 = vector.load %arg1[%c3, %c0_20, %c0_21] : memref<4x50x150xbf16, #tpu.memory_space<vmem>>, vector<1x50x150xbf16>
    %22 = vector.shape_cast %21 : vector<1x50x150xbf16> to vector<50x150xbf16>
    %c0_22 = arith.constant 0 : index
    %c0_23 = arith.constant 0 : index
    %23 = vector.load %arg2[%c0_22, %c0_23] : memref<150x16xbf16, #tpu.memory_space<vmem>>, vector<150x16xbf16>
    %cst_24 = arith.constant dense<0.000000e+00> : vector<50x16xf32>
    %24 = tpu.matmul %22, %23, %cst_24 {dimension_numbers = #tpu.dot_dimension_numbers<[1], [0], [0], [1], [0, 0, 1, 1], [], []>} : vector<50x150xbf16>, vector<150x16xbf16>, vector<50x16xf32> -> vector<50x16xf32>
    %c0_25 = arith.constant 0 : index
    %c0_26 = arith.constant 0 : index
    %25 = vector.load %arg3[%c0_25, %c0_26] : memref<1x16xf32, #tpu.memory_space<vmem>>, vector<1x16xf32>
    %26 = vector.broadcast %25 : vector<1x16xf32> to vector<50x16xf32>
    %27 = arith.addf %24, %26 : vector<50x16xf32>
    %cst_27 = arith.constant dense<0.000000e+00> : vector<16xf32>
    %28 = vector.multi_reduction <add>, %6, %cst_27 [0] : vector<50x16xf32> to vector<16xf32>
    %29 = vector.shape_cast %28 : vector<16xf32> to vector<1x16xf32>
    %cst_28 = arith.constant dense<0.000000e+00> : vector<16xf32>
    %30 = vector.multi_reduction <add>, %13, %cst_28 [0] : vector<50x16xf32> to vector<16xf32>
    %31 = vector.shape_cast %30 : vector<16xf32> to vector<1x16xf32>
    %32 = arith.addf %29, %31 : vector<1x16xf32>
    %cst_29 = arith.constant dense<0.000000e+00> : vector<16xf32>
    %33 = vector.multi_reduction <add>, %20, %cst_29 [0] : vector<50x16xf32> to vector<16xf32>
    %34 = vector.shape_cast %33 : vector<16xf32> to vector<1x16xf32>
    %35 = arith.addf %32, %34 : vector<1x16xf32>
    %cst_30 = arith.constant dense<0.000000e+00> : vector<16xf32>
    %36 = vector.multi_reduction <add>, %27, %cst_30 [0] : vector<50x16xf32> to vector<16xf32>
    %37 = vector.shape_cast %36 : vector<16xf32> to vector<1x16xf32>
    %38 = arith.addf %35, %37 : vector<1x16xf32>
    %cst_31 = arith.constant 5.000000e-03 : f32
    %39 = vector.broadcast %cst_31 : f32 to vector<1x16xf32>
    %40 = arith.mulf %38, %39 : vector<1x16xf32>
    %41 = vector.broadcast %40 : vector<1x16xf32> to vector<50x16xf32>
    %42 = arith.subf %6, %41 : vector<50x16xf32>
    %43 = arith.mulf %42, %42 : vector<50x16xf32>
    %cst_32 = arith.constant dense<0.000000e+00> : vector<16xf32>
    %44 = vector.multi_reduction <add>, %43, %cst_32 [0] : vector<50x16xf32> to vector<16xf32>
    %45 = vector.shape_cast %44 : vector<16xf32> to vector<1x16xf32>
    %46 = vector.broadcast %40 : vector<1x16xf32> to vector<50x16xf32>
    %47 = arith.subf %13, %46 : vector<50x16xf32>
    %48 = arith.mulf %47, %47 : vector<50x16xf32>
    %cst_33 = arith.constant dense<0.000000e+00> : vector<16xf32>
    %49 = vector.multi_reduction <add>, %48, %cst_33 [0] : vector<50x16xf32> to vector<16xf32>
    %50 = vector.shape_cast %49 : vector<16xf32> to vector<1x16xf32>
    %51 = arith.addf %45, %50 : vector<1x16xf32>
    %52 = vector.broadcast %40 : vector<1x16xf32> to vector<50x16xf32>
    %53 = arith.subf %20, %52 : vector<50x16xf32>
    %54 = arith.mulf %53, %53 : vector<50x16xf32>
    %cst_34 = arith.constant dense<0.000000e+00> : vector<16xf32>
    %55 = vector.multi_reduction <add>, %54, %cst_34 [0] : vector<50x16xf32> to vector<16xf32>
    %56 = vector.shape_cast %55 : vector<16xf32> to vector<1x16xf32>
    %57 = arith.addf %51, %56 : vector<1x16xf32>
    %58 = vector.broadcast %40 : vector<1x16xf32> to vector<50x16xf32>
    %59 = arith.subf %27, %58 : vector<50x16xf32>
    %60 = arith.mulf %59, %59 : vector<50x16xf32>
    %cst_35 = arith.constant dense<0.000000e+00> : vector<16xf32>
    %61 = vector.multi_reduction <add>, %60, %cst_35 [0] : vector<50x16xf32> to vector<16xf32>
    %62 = vector.shape_cast %61 : vector<16xf32> to vector<1x16xf32>
    %63 = arith.addf %57, %62 : vector<1x16xf32>
    %cst_36 = arith.constant 5.000000e-03 : f32
    %64 = vector.broadcast %cst_36 : f32 to vector<1x16xf32>
    %65 = arith.mulf %63, %64 : vector<1x16xf32>
    %c0_37 = arith.constant 0 : index
    %c0_38 = arith.constant 0 : index
    %66 = vector.load %arg4[%c0_37, %c0_38] : memref<1x16xf32, #tpu.memory_space<vmem>>, vector<1x16xf32>
    %cst_39 = arith.constant 9.99999974E-6 : f32
    %67 = vector.broadcast %cst_39 : f32 to vector<1x16xf32>
    %68 = arith.addf %65, %67 : vector<1x16xf32>
    %69 = math.rsqrt %68 : vector<1x16xf32>
    %70 = arith.mulf %66, %69 : vector<1x16xf32>
    %c0_40 = arith.constant 0 : index
    %c0_41 = arith.constant 0 : index
    %71 = vector.load %arg5[%c0_40, %c0_41] : memref<1x16xf32, #tpu.memory_space<vmem>>, vector<1x16xf32>
    %72 = arith.mulf %40, %70 : vector<1x16xf32>
    %73 = arith.subf %71, %72 : vector<1x16xf32>
    %74 = vector.broadcast %70 : vector<1x16xf32> to vector<50x16xf32>
    %75 = arith.mulf %6, %74 : vector<50x16xf32>
    %76 = vector.broadcast %73 : vector<1x16xf32> to vector<50x16xf32>
    %77 = arith.addf %75, %76 : vector<50x16xf32>
    %cst_42 = arith.constant 0.000000e+00 : f32
    %78 = vector.broadcast %cst_42 : f32 to vector<50x16xf32>
    %79 = arith.maximumf %77, %78 : vector<50x16xf32>
    %80 = vector.broadcast %70 : vector<1x16xf32> to vector<50x16xf32>
    %81 = arith.mulf %13, %80 : vector<50x16xf32>
    %82 = vector.broadcast %73 : vector<1x16xf32> to vector<50x16xf32>
    %83 = arith.addf %81, %82 : vector<50x16xf32>
    %cst_43 = arith.constant 0.000000e+00 : f32
    %84 = vector.broadcast %cst_43 : f32 to vector<50x16xf32>
    %85 = arith.maximumf %83, %84 : vector<50x16xf32>
    %86 = arith.maximumf %79, %85 : vector<50x16xf32>
    %87 = vector.broadcast %70 : vector<1x16xf32> to vector<50x16xf32>
    %88 = arith.mulf %20, %87 : vector<50x16xf32>
    %89 = vector.broadcast %73 : vector<1x16xf32> to vector<50x16xf32>
    %90 = arith.addf %88, %89 : vector<50x16xf32>
    %cst_44 = arith.constant 0.000000e+00 : f32
    %91 = vector.broadcast %cst_44 : f32 to vector<50x16xf32>
    %92 = arith.maximumf %90, %91 : vector<50x16xf32>
    %93 = arith.maximumf %86, %92 : vector<50x16xf32>
    %94 = vector.broadcast %70 : vector<1x16xf32> to vector<50x16xf32>
    %95 = arith.mulf %27, %94 : vector<50x16xf32>
    %96 = vector.broadcast %73 : vector<1x16xf32> to vector<50x16xf32>
    %97 = arith.addf %95, %96 : vector<50x16xf32>
    %cst_45 = arith.constant 0.000000e+00 : f32
    %98 = vector.broadcast %cst_45 : f32 to vector<50x16xf32>
    %99 = arith.maximumf %97, %98 : vector<50x16xf32>
    %100 = arith.maximumf %93, %99 : vector<50x16xf32>
    %c0_46 = arith.constant 0 : index
    %c0_47 = arith.constant 0 : index
    %101 = vector.load %arg6[%c0_46, %c0_47] : memref<50x16xf32, #tpu.memory_space<vmem>>, vector<50x16xf32>
    tpu.vector_store %arg6[%c0_46, %c0_47], %100 {strides = array<i32>} : memref<50x16xf32, #tpu.memory_space<vmem>>, vector<50x16xf32>,
    return
  }
  func.func @transform_0(%arg0: i32) -> (i32, i32, i32) {
    %c0_i32 = arith.constant 0 : i32
    %c0_i32_0 = arith.constant 0 : i32
    %c0_i32_1 = arith.constant 0 : i32
    %c0_i32_2 = arith.constant 0 : i32
    return %c0_i32, %c0_i32_0, %c0_i32_1 : i32, i32, i32
  }
  func.func @transform_1(%arg0: i32) -> (i32, i32) {
    %c0_i32 = arith.constant 0 : i32
    %c0_i32_0 = arith.constant 0 : i32
    %c0_i32_1 = arith.constant 0 : i32
    return %c0_i32, %c0_i32_0 : i32, i32
  }
  func.func @transform_2(%arg0: i32) -> (i32, i32) {
    %c0_i32 = arith.constant 0 : i32
    %c0_i32_0 = arith.constant 0 : i32
    %c0_i32_1 = arith.constant 0 : i32
    return %c0_i32, %c0_i32_0 : i32, i32
  }
  func.func @transform_3(%arg0: i32) -> (i32, i32) {
    %c0_i32 = arith.constant 0 : i32
    %c0_i32_0 = arith.constant 0 : i32
    %c0_i32_1 = arith.constant 0 : i32
    return %c0_i32, %c0_i32_0 : i32, i32
  }
  func.func @transform_4(%arg0: i32) -> (i32, i32) {
    %c0_i32 = arith.constant 0 : i32
    %c0_i32_0 = arith.constant 0 : i32
    %c0_i32_1 = arith.constant 0 : i32
    return %c0_i32, %c0_i32_0 : i32, i32
  }
  func.func @transform_5(%arg0: i32) -> (i32, i32) {
    %c0_i32 = arith.constant 0 : i32
    %c0_i32_0 = arith.constant 0 : i32
    %c0_i32_1 = arith.constant 0 : i32
    return %c0_i32, %c0_i32_0 : i32, i32
  }
}

module attributes {stable_mosaic.version = 11 : i64} {
  func.func @_c3_fc_head_kernel(%arg0: i32, %arg1: memref<2x400xbf16, #tpu.memory_space<vmem>>, %arg2: memref<400x120xbf16, #tpu.memory_space<vmem>>, %arg3: memref<1x120xf32, #tpu.memory_space<vmem>>, %arg4: memref<1x120xf32, #tpu.memory_space<vmem>>, %arg5: memref<1x120xf32, #tpu.memory_space<vmem>>, %arg6: memref<120x84xbf16, #tpu.memory_space<vmem>>, %arg7: memref<1x84xf32, #tpu.memory_space<vmem>>, %arg8: memref<84x10xbf16, #tpu.memory_space<vmem>>, %arg9: memref<1x10xf32, #tpu.memory_space<vmem>>, %arg10: memref<2x10xf32, #tpu.memory_space<vmem>>) attributes {dimension_semantics = [#tpu.dimension_semantics<arbitrary>], iteration_bounds = array<i64: 1>, scalar_prefetch = 0 : i64, scratch_operands = 0 : i64, tpu.core_type = #tpu.core_type<tc>, window_params = [{pipeline_mode = #tpu.pipeline_mode<synchronous>, transform_indices = @transform_0, window_bounds = array<i64: 2, 400>}, {pipeline_mode = #tpu.pipeline_mode<synchronous>, transform_indices = @transform_1, window_bounds = array<i64: 400, 120>}, {pipeline_mode = #tpu.pipeline_mode<synchronous>, transform_indices = @transform_2, window_bounds = array<i64: 1, 120>}, {pipeline_mode = #tpu.pipeline_mode<synchronous>, transform_indices = @transform_3, window_bounds = array<i64: 1, 120>}, {pipeline_mode = #tpu.pipeline_mode<synchronous>, transform_indices = @transform_4, window_bounds = array<i64: 1, 120>}, {pipeline_mode = #tpu.pipeline_mode<synchronous>, transform_indices = @transform_5, window_bounds = array<i64: 120, 84>}, {pipeline_mode = #tpu.pipeline_mode<synchronous>, transform_indices = @transform_6, window_bounds = array<i64: 1, 84>}, {pipeline_mode = #tpu.pipeline_mode<synchronous>, transform_indices = @transform_7, window_bounds = array<i64: 84, 10>}, {pipeline_mode = #tpu.pipeline_mode<synchronous>, transform_indices = @transform_8, window_bounds = array<i64: 1, 10>}, {pipeline_mode = #tpu.pipeline_mode<synchronous>, transform_indices = @transform_9, window_bounds = array<i64: 2, 10>}]} {
    %c0 = arith.constant 0 : index
    %c0_0 = arith.constant 0 : index
    %0 = vector.load %arg1[%c0, %c0_0] : memref<2x400xbf16, #tpu.memory_space<vmem>>, vector<2x400xbf16>
    %c0_1 = arith.constant 0 : index
    %c0_2 = arith.constant 0 : index
    %1 = vector.load %arg2[%c0_1, %c0_2] : memref<400x120xbf16, #tpu.memory_space<vmem>>, vector<400x120xbf16>
    %cst = arith.constant dense<0.000000e+00> : vector<2x120xf32>
    %2 = tpu.matmul %0, %1, %cst {dimension_numbers = #tpu.dot_dimension_numbers<[1], [0], [0], [1], [0, 0, 1, 1], [], []>} : vector<2x400xbf16>, vector<400x120xbf16>, vector<2x120xf32> -> vector<2x120xf32>
    %c0_3 = arith.constant 0 : index
    %c0_4 = arith.constant 0 : index
    %3 = vector.load %arg3[%c0_3, %c0_4] : memref<1x120xf32, #tpu.memory_space<vmem>>, vector<1x120xf32>
    %4 = vector.broadcast %3 : vector<1x120xf32> to vector<2x120xf32>
    %5 = arith.addf %2, %4 : vector<2x120xf32>
    %cst_5 = arith.constant dense<0.000000e+00> : vector<120xf32>
    %6 = vector.multi_reduction <add>, %5, %cst_5 [0] : vector<2x120xf32> to vector<120xf32>
    %7 = vector.shape_cast %6 : vector<120xf32> to vector<1x120xf32>
    %cst_6 = arith.constant 2.000000e+00 : f32
    %8 = vector.broadcast %cst_6 : f32 to vector<1x120xf32>
    %9 = arith.divf %7, %8 : vector<1x120xf32>
    %10 = vector.broadcast %9 : vector<1x120xf32> to vector<2x120xf32>
    %11 = arith.subf %5, %10 : vector<2x120xf32>
    %12 = arith.mulf %11, %11 : vector<2x120xf32>
    %cst_7 = arith.constant dense<0.000000e+00> : vector<120xf32>
    %13 = vector.multi_reduction <add>, %12, %cst_7 [0] : vector<2x120xf32> to vector<120xf32>
    %14 = vector.shape_cast %13 : vector<120xf32> to vector<1x120xf32>
    %cst_8 = arith.constant 2.000000e+00 : f32
    %15 = vector.broadcast %cst_8 : f32 to vector<1x120xf32>
    %16 = arith.divf %14, %15 : vector<1x120xf32>
    %17 = vector.broadcast %9 : vector<1x120xf32> to vector<2x120xf32>
    %18 = arith.subf %5, %17 : vector<2x120xf32>
    %c0_9 = arith.constant 0 : index
    %c0_10 = arith.constant 0 : index
    %19 = vector.load %arg4[%c0_9, %c0_10] : memref<1x120xf32, #tpu.memory_space<vmem>>, vector<1x120xf32>
    %cst_11 = arith.constant 9.99999974E-6 : f32
    %20 = vector.broadcast %cst_11 : f32 to vector<1x120xf32>
    %21 = arith.addf %16, %20 : vector<1x120xf32>
    %22 = math.rsqrt %21 : vector<1x120xf32>
    %23 = arith.mulf %19, %22 : vector<1x120xf32>
    %24 = vector.broadcast %23 : vector<1x120xf32> to vector<2x120xf32>
    %25 = arith.mulf %18, %24 : vector<2x120xf32>
    %c0_12 = arith.constant 0 : index
    %c0_13 = arith.constant 0 : index
    %26 = vector.load %arg5[%c0_12, %c0_13] : memref<1x120xf32, #tpu.memory_space<vmem>>, vector<1x120xf32>
    %27 = vector.broadcast %26 : vector<1x120xf32> to vector<2x120xf32>
    %28 = arith.addf %25, %27 : vector<2x120xf32>
    %cst_14 = arith.constant 0.000000e+00 : f32
    %29 = vector.broadcast %cst_14 : f32 to vector<2x120xf32>
    %30 = arith.maximumf %28, %29 : vector<2x120xf32>
    %31 = arith.truncf %30 : vector<2x120xf32> to vector<2x120xbf16>
    %c0_15 = arith.constant 0 : index
    %c0_16 = arith.constant 0 : index
    %32 = vector.load %arg6[%c0_15, %c0_16] : memref<120x84xbf16, #tpu.memory_space<vmem>>, vector<120x84xbf16>
    %cst_17 = arith.constant dense<0.000000e+00> : vector<2x84xf32>
    %33 = tpu.matmul %31, %32, %cst_17 {dimension_numbers = #tpu.dot_dimension_numbers<[1], [0], [0], [1], [0, 0, 1, 1], [], []>} : vector<2x120xbf16>, vector<120x84xbf16>, vector<2x84xf32> -> vector<2x84xf32>
    %c0_18 = arith.constant 0 : index
    %c0_19 = arith.constant 0 : index
    %34 = vector.load %arg7[%c0_18, %c0_19] : memref<1x84xf32, #tpu.memory_space<vmem>>, vector<1x84xf32>
    %35 = vector.broadcast %34 : vector<1x84xf32> to vector<2x84xf32>
    %36 = arith.addf %33, %35 : vector<2x84xf32>
    %cst_20 = arith.constant 0.000000e+00 : f32
    %37 = vector.broadcast %cst_20 : f32 to vector<2x84xf32>
    %38 = arith.maximumf %36, %37 : vector<2x84xf32>
    %39 = arith.truncf %38 : vector<2x84xf32> to vector<2x84xbf16>
    %c0_21 = arith.constant 0 : index
    %c0_22 = arith.constant 0 : index
    %40 = vector.load %arg8[%c0_21, %c0_22] : memref<84x10xbf16, #tpu.memory_space<vmem>>, vector<84x10xbf16>
    %cst_23 = arith.constant dense<0.000000e+00> : vector<2x10xf32>
    %41 = tpu.matmul %39, %40, %cst_23 {dimension_numbers = #tpu.dot_dimension_numbers<[1], [0], [0], [1], [0, 0, 1, 1], [], []>} : vector<2x84xbf16>, vector<84x10xbf16>, vector<2x10xf32> -> vector<2x10xf32>
    %c0_24 = arith.constant 0 : index
    %c0_25 = arith.constant 0 : index
    %42 = vector.load %arg9[%c0_24, %c0_25] : memref<1x10xf32, #tpu.memory_space<vmem>>, vector<1x10xf32>
    %43 = vector.broadcast %42 : vector<1x10xf32> to vector<2x10xf32>
    %44 = arith.addf %41, %43 : vector<2x10xf32>
    %cst_26 = arith.constant dense<0xFF800000> : vector<2xf32>
    %45 = vector.multi_reduction <maximumf>, %44, %cst_26 [1] : vector<2x10xf32> to vector<2xf32>
    %46 = vector.shape_cast %45 : vector<2xf32> to vector<2x1xf32>
    %47 = vector.broadcast %46 : vector<2x1xf32> to vector<2x10xf32>
    %48 = arith.subf %44, %47 : vector<2x10xf32>
    %49 = math.exp %48 : vector<2x10xf32>
    %cst_27 = arith.constant dense<0.000000e+00> : vector<2xf32>
    %50 = vector.multi_reduction <add>, %49, %cst_27 [1] : vector<2x10xf32> to vector<2xf32>
    %51 = vector.shape_cast %50 : vector<2xf32> to vector<2x1xf32>
    %52 = math.log %51 : vector<2x1xf32>
    %53 = vector.broadcast %52 : vector<2x1xf32> to vector<2x10xf32>
    %54 = arith.subf %48, %53 : vector<2x10xf32>
    %c0_28 = arith.constant 0 : index
    %c0_29 = arith.constant 0 : index
    %55 = vector.load %arg10[%c0_28, %c0_29] : memref<2x10xf32, #tpu.memory_space<vmem>>, vector<2x10xf32>
    tpu.vector_store %arg10[%c0_28, %c0_29], %54 {strides = array<i32>} : memref<2x10xf32, #tpu.memory_space<vmem>>, vector<2x10xf32>,
    return
  }
  func.func @transform_0(%arg0: i32) -> (i32, i32) {
    %c0_i32 = arith.constant 0 : i32
    %c0_i32_0 = arith.constant 0 : i32
    %c0_i32_1 = arith.constant 0 : i32
    return %c0_i32, %c0_i32_0 : i32, i32
  }
  func.func @transform_1(%arg0: i32) -> (i32, i32) {
    %c0_i32 = arith.constant 0 : i32
    %c0_i32_0 = arith.constant 0 : i32
    %c0_i32_1 = arith.constant 0 : i32
    return %c0_i32, %c0_i32_0 : i32, i32
  }
  func.func @transform_2(%arg0: i32) -> (i32, i32) {
    %c0_i32 = arith.constant 0 : i32
    %c0_i32_0 = arith.constant 0 : i32
    %c0_i32_1 = arith.constant 0 : i32
    return %c0_i32, %c0_i32_0 : i32, i32
  }
  func.func @transform_3(%arg0: i32) -> (i32, i32) {
    %c0_i32 = arith.constant 0 : i32
    %c0_i32_0 = arith.constant 0 : i32
    %c0_i32_1 = arith.constant 0 : i32
    return %c0_i32, %c0_i32_0 : i32, i32
  }
  func.func @transform_4(%arg0: i32) -> (i32, i32) {
    %c0_i32 = arith.constant 0 : i32
    %c0_i32_0 = arith.constant 0 : i32
    %c0_i32_1 = arith.constant 0 : i32
    return %c0_i32, %c0_i32_0 : i32, i32
  }
  func.func @transform_5(%arg0: i32) -> (i32, i32) {
    %c0_i32 = arith.constant 0 : i32
    %c0_i32_0 = arith.constant 0 : i32
    %c0_i32_1 = arith.constant 0 : i32
    return %c0_i32, %c0_i32_0 : i32, i32
  }
  func.func @transform_6(%arg0: i32) -> (i32, i32) {
    %c0_i32 = arith.constant 0 : i32
    %c0_i32_0 = arith.constant 0 : i32
    %c0_i32_1 = arith.constant 0 : i32
    return %c0_i32, %c0_i32_0 : i32, i32
  }
  func.func @transform_7(%arg0: i32) -> (i32, i32) {
    %c0_i32 = arith.constant 0 : i32
    %c0_i32_0 = arith.constant 0 : i32
    %c0_i32_1 = arith.constant 0 : i32
    return %c0_i32, %c0_i32_0 : i32, i32
  }
  func.func @transform_8(%arg0: i32) -> (i32, i32) {
    %c0_i32 = arith.constant 0 : i32
    %c0_i32_0 = arith.constant 0 : i32
    %c0_i32_1 = arith.constant 0 : i32
    return %c0_i32, %c0_i32_0 : i32, i32
  }
  func.func @transform_9(%arg0: i32) -> (i32, i32) {
    %c0_i32 = arith.constant 0 : i32
    %c0_i32_0 = arith.constant 0 : i32
    %c0_i32_1 = arith.constant 0 : i32
    return %c0_i32, %c0_i32_0 : i32, i32
  }
}

</mosaic_0001>

<llo_original>
// kernel: lenet5_forward.3
$region0: #{lenet5_forward.3}
  #allocation0 [shape = 'u32[]', space=smem, size = 0x4, offset = 0x4, fixed_abs, tag = 'smem constant byte address 0x4 - core index']
  #allocation1 [shape = 'u32[72,128]{1,0:T(1,128)}', space=vmem, size = 0x9000, scoped, tag = 'internal scratch']
  %s0 = inlined_call_operand.vmem [shape: bf16[4,392,25], index: 0, kind: input, shape index: {}]
  %s1 = inlined_call_operand.vmem [shape: bf16[25,6], index: 1, kind: input, shape index: {}]
  %s2 = inlined_call_operand.vmem [shape: f32[1,6], index: 2, kind: input, shape index: {}]
  %s3 = inlined_call_operand.vmem [shape: f32[1,6], index: 3, kind: input, shape index: {}]
  %s4 = inlined_call_operand.vmem [shape: f32[1,6], index: 4, kind: input, shape index: {}]
  %s5 = inlined_call_operand.vmem [shape: f32[392,6], index: 5, kind: output, shape index: {}]
  %s6 = sld [smem:[#allocation0]]
  $region30: #{lenet5_forward.3} parent=0
    _
  %s8 = ssub.s32 1, %s6
  %s9 = scalar_select 0, %s8, %s6
  // Predicated region
  $region2: #{lenet5_forward.3} parent=0 // pred_check
    _
  $region3: #{lenet5_forward.3} parent=0 // pred_check_branch
    %11 = sbr.rel (0) target = $region5
  $region4: #{lenet5_forward.3} parent=0 // pred_region
    _
  $region5: #{lenet5_forward.3} parent=0 // pred_fallthru
    _
  // Predicated region
  $region6: #{lenet5_forward.3} parent=0 // pred_check
    _
  $region7: #{lenet5_forward.3} parent=0 // pred_check_branch
    %13 = sbr.rel (0) target = $region9
  $region8: #{lenet5_forward.3} parent=0 // pred_region
    _
  $region9: #{lenet5_forward.3} parent=0 // pred_fallthru
    _
  // Predicated region
  $region10: #{lenet5_forward.3} parent=0 // pred_check
    _
  $region11: #{lenet5_forward.3} parent=0 // pred_check_branch
    %15 = sbr.rel (0) target = $region13
  $region12: #{lenet5_forward.3} parent=0 // pred_region
    _
  $region13: #{lenet5_forward.3} parent=0 // pred_fallthru
    _
  // Predicated region
  $region14: #{lenet5_forward.3} parent=0 // pred_check
    _
  $region15: #{lenet5_forward.3} parent=0 // pred_check_branch
    %17 = sbr.rel (0) target = $region17
  $region16: #{lenet5_forward.3} parent=0 // pred_region
    _
  $region17: #{lenet5_forward.3} parent=0 // pred_fallthru
    _
  // Predicated region
  $region18: #{lenet5_forward.3} parent=0 // pred_check
    _
  $region19: #{lenet5_forward.3} parent=0 // pred_check_branch
    %19 = sbr.rel (0) target = $region21
  $region20: #{lenet5_forward.3} parent=0 // pred_region
    _
  $region21: #{lenet5_forward.3} parent=0 // pred_fallthru
    _
  %v21 = vld [vmem:[%s0] sm:$0xf]
  %v22 = vld [vmem:[%s0 + $0x4] sm:$0xf]
  %v23 = vld [vmem:[%s0 + $0x8] sm:$0xf]
  %v24 = vld [vmem:[%s0 + $0xc] sm:$0xf]
  %v25 = vld [vmem:[%s0 + $0x10] sm:$0xf]
  %v26 = vld [vmem:[%s0 + $0x14] sm:$0xf]
  %v27 = vld [vmem:[%s0 + $0x18] sm:$0xf]
  %v28 = vld [vmem:[%s0 + $0x1c] sm:$0xf]
  %v29 = vld [vmem:[%s0 + $0x20] sm:$0xf]
  %v30 = vld [vmem:[%s0 + $0x24] sm:$0xf]
  %v31 = vld [vmem:[%s0 + $0x28] sm:$0xf]
  %v32 = vld [vmem:[%s0 + $0x2c] sm:$0xf]
  %v33 = vld [vmem:[%s0 + $0x30] sm:$0xf]
  %v34 = vld [vmem:[%s0 + $0x34] sm:$0xf]
  %v35 = vld [vmem:[%s0 + $0x38] sm:$0xf]
  %v36 = vld [vmem:[%s0 + $0x3c] sm:$0xf]
  %v37 = vld [vmem:[%s0 + $0x40] sm:$0xf]
  %v38 = vld [vmem:[%s0 + $0x44] sm:$0xf]
  %v39 = vld [vmem:[%s0 + $0x48] sm:$0xf]
  %v40 = vld [vmem:[%s0 + $0x4c] sm:$0xf]
  %v41 = vld [vmem:[%s0 + $0x50] sm:$0xf]
  %v42 = vld [vmem:[%s0 + $0x54] sm:$0xf]
  %v43 = vld [vmem:[%s0 + $0x58] sm:$0xf]
  %v44 = vld [vmem:[%s0 + $0x5c] sm:$0xf]
  %v45 = vld [vmem:[%s0 + $0x60] sm:$0xf]
  %v46 = vld [vmem:[%s0 + $0x64] sm:$0xf]
  %v47 = vld [vmem:[%s0 + $0x68] sm:$0xf]
  %v48 = vld [vmem:[%s0 + $0x6c] sm:$0xf]
  %v49 = vld [vmem:[%s0 + $0x70] sm:$0xf]
  %v50 = vld [vmem:[%s0 + $0x74] sm:$0xf]
  %v51 = vld [vmem:[%s0 + $0x78] sm:$0xf]
  %v52 = vld [vmem:[%s0 + $0x7c] sm:$0xf]
  %v53 = vld [vmem:[%s0 + $0x80] sm:$0xf]
  %v54 = vld [vmem:[%s0 + $0x84] sm:$0xf]
  %v55 = vld [vmem:[%s0 + $0x88] sm:$0xf]
  %v56 = vld [vmem:[%s0 + $0x8c] sm:$0xf]
  %v57 = vld [vmem:[%s0 + $0x90] sm:$0xf]
  %v58 = vld [vmem:[%s0 + $0x94] sm:$0xf]
  %v59 = vld [vmem:[%s0 + $0x98] sm:$0xf]
  %v60 = vld [vmem:[%s0 + $0x9c] sm:$0xf]
  %v61 = vld [vmem:[%s0 + $0xa0] sm:$0xf]
  %v62 = vld [vmem:[%s0 + $0xa4] sm:$0xf]
  %v63 = vld [vmem:[%s0 + $0xa8] sm:$0xf]
  %v64 = vld [vmem:[%s0 + $0xac] sm:$0xf]
  %v65 = vld [vmem:[%s0 + $0xb0] sm:$0xf]
  %v66 = vld [vmem:[%s0 + $0xb4] sm:$0xf]
  %v67 = vld [vmem:[%s0 + $0xb8] sm:$0xf]
  %v68 = vld [vmem:[%s0 + $0xbc] sm:$0xf]
  %v69 = vld [vmem:[%s0 + $0xc0] sm:$0xf]
  %v70 = vld [vmem:[%s1] sm:$0xf]
  %v71 = vld [vmem:[%s1 + $0x4] sm:$0xf]
  %v72 = vld [vmem:[%s1 + $0x8] sm:$0xf]
  %v73 = vld [vmem:[%s1 + $0xc] sm:$0x1]
  %v74 = vld [vmem:[%s2] sm:$0x1]
  %v76 = vperm.slane %v74, 0
  %v127 = vunpack.c.l.b16 %v21
  %v128 = vunpack.c.l.b16 %v22
  %v129 = vunpack.c.l.b16 %v23
  %v130 = vunpack.c.l.b16 %v24
  %v131 = vunpack.c.l.b16 %v25
  %v132 = vunpack.c.l.b16 %v26
  %v133 = vunpack.c.l.b16 %v27
  %v134 = vunpack.c.l.b16 %v28
  %v135 = vunpack.c.l.b16 %v29
  %v136 = vunpack.c.l.b16 %v30
  %v137 = vunpack.c.l.b16 %v31
  %v138 = vunpack.c.l.b16 %v32
  %v139 = vunpack.c.l.b16 %v33
  %v140 = vunpack.c.l.b16 %v34
  %v141 = vunpack.c.l.b16 %v35
  %v142 = vunpack.c.l.b16 %v36
  %v143 = vunpack.c.l.b16 %v37
  %v144 = vunpack.c.l.b16 %v38
  %v145 = vunpack.c.l.b16 %v39
  %v146 = vunpack.c.l.b16 %v40
  %v147 = vunpack.c.l.b16 %v41
  %v148 = vunpack.c.l.b16 %v42
  %v149 = vunpack.c.l.b16 %v43
  %v150 = vunpack.c.l.b16 %v44
  %v151 = vunpack.c.l.b16 %v45
  %v152 = vunpack.c.l.b16 %v46
  %v153 = vunpack.c.l.b16 %v47
  %v154 = vunpack.c.l.b16 %v48
  %v155 = vunpack.c.l.b16 %v49
  %v156 = vunpack.c.l.b16 %v50
  %v157 = vunpack.c.l.b16 %v51
  %v158 = vunpack.c.l.b16 %v52
  %v159 = vunpack.c.l.b16 %v53
  %v160 = vunpack.c.l.b16 %v54
  %v161 = vunpack.c.l.b16 %v55
  %v162 = vunpack.c.l.b16 %v56
  %v163 = vunpack.c.l.b16 %v57
  %v164 = vunpack.c.l.b16 %v58
  %v165 = vunpack.c.l.b16 %v59
  %v166 = vunpack.c.l.b16 %v60
  %v167 = vunpack.c.l.b16 %v61
  %v168 = vunpack.c.l.b16 %v62
  %v169 = vunpack.c.l.b16 %v63
  %v170 = vunpack.c.l.b16 %v64
  %v171 = vunpack.c.l.b16 %v65
  %v172 = vunpack.c.l.b16 %v66
  %v173 = vunpack.c.l.b16 %v67
  %v174 = vunpack.c.l.b16 %v68
  %v175 = vunpack.c.l.b16 %v69
  %v176 = vpack.c.b16 %v128, %v127
  %v177 = vpack.c.b16 %v130, %v129
  %v178 = vpack.c.b16 %v132, %v131
  %v179 = vpack.c.b16 %v134, %v133
  %v180 = vpack.c.b16 %v136, %v135
  %v181 = vpack.c.b16 %v138, %v137
  %v182 = vpack.c.b16 %v140, %v139
  %v183 = vpack.c.b16 %v142, %v141
  %v184 = vpack.c.b16 %v144, %v143
  %v185 = vpack.c.b16 %v146, %v145
  %v186 = vpack.c.b16 %v148, %v147
  %v187 = vpack.c.b16 %v150, %v149
  %v188 = vpack.c.b16 %v152, %v151
  %v189 = vpack.c.b16 %v154, %v153
  %v190 = vpack.c.b16 %v156, %v155
  %v191 = vpack.c.b16 %v158, %v157
  %v192 = vpack.c.b16 %v160, %v159
  %v193 = vpack.c.b16 %v162, %v161
  %v194 = vpack.c.b16 %v164, %v163
  %v195 = vpack.c.b16 %v166, %v165
  %v196 = vpack.c.b16 %v168, %v167
  %v197 = vpack.c.b16 %v170, %v169
  %v198 = vpack.c.b16 %v172, %v171
  %v199 = vpack.c.b16 %v174, %v173
  %v200 = vpack.c.b16 %v175, %v175
  %v205 = vunpack.c.l.b16 %v70
  %v206 = vunpack.c.l.b16 %v71
  %v207 = vunpack.c.l.b16 %v72
  %v208 = vunpack.c.l.b16 %v73
  %v209 = vpack.c.b16 %v206, %v205
  %v210 = vpack.c.b16 %v208, %v207
  %vm212 = vcmask 203776
  %v214 = vsel %vm212, %v176, 0
  %v217 = vsel %vm212, %v177, 0
  %v220 = vsel %vm212, %v178, 0
  %v223 = vsel %vm212, %v179, 0
  %v226 = vsel %vm212, %v180, 0
  %v229 = vsel %vm212, %v181, 0
  %v232 = vsel %vm212, %v182, 0
  %v235 = vsel %vm212, %v183, 0
  %v238 = vsel %vm212, %v184, 0
  %v241 = vsel %vm212, %v185, 0
  %v244 = vsel %vm212, %v186, 0
  %v247 = vsel %vm212, %v187, 0
  %v250 = vsel %vm212, %v188, 0
  %v253 = vsel %vm212, %v189, 0
  %v256 = vsel %vm212, %v190, 0
  %v259 = vsel %vm212, %v191, 0
  %v262 = vsel %vm212, %v192, 0
  %v265 = vsel %vm212, %v193, 0
  %v268 = vsel %vm212, %v194, 0
  %v271 = vsel %vm212, %v195, 0
  %v274 = vsel %vm212, %v196, 0
  %v277 = vsel %vm212, %v197, 0
  %v280 = vsel %vm212, %v198, 0
  %v283 = vsel %vm212, %v199, 0
  %v286 = vsel %vm212, %v200, 0
  %vm288 = vcmask 1043456
  %vm289 = vcmask 1044480
  %v290 = vsel %vm288, 4294967295, 65535
  %v291 = vsel %vm289, %v290, 0
  %v293 = vand.u32 %v210, %v291
  %295 = vmatpush.bf16.msra.mxu0 0
  %296 = vmatpush.bf16.msra.mxu0 0
  %297 = vmatpush.bf16.msra.mxu0 0
  %298 = vmatpush.bf16.msra.mxu0 0
  %299 = vmatpush.bf16.msra.mxu0 0
  %300 = vmatpush.bf16.msra.mxu0 0
  %301 = vmatpush.bf16.msra.mxu0 %v293
  %302 = vmatpush.bf16.msra.mxu0 %v209
  %303 = vmatmul.bf16.gmra.mxu0 %v214
  %v304 = vpop.f32.mrf.mxu0
  %v305 = vadd.f32 %v76, %v304
  %v306 = vpop.f32.mrf.mxu0
  %v307 = vadd.f32 %v76, %v306
  %308 = vmatmul.bf16.gmra.mxu0 %v217
  %v309 = vpop.f32.mrf.mxu0
  %v310 = vadd.f32 %v76, %v309
  %v311 = vpop.f32.mrf.mxu0
  %v312 = vadd.f32 %v76, %v311
  %313 = vmatmul.bf16.gmra.mxu0 %v220
  %v314 = vpop.f32.mrf.mxu0
  %v315 = vadd.f32 %v76, %v314
  %v316 = vpop.f32.mrf.mxu0
  %v317 = vadd.f32 %v76, %v316
  %318 = vmatmul.bf16.gmra.mxu0 %v223
  %v319 = vpop.f32.mrf.mxu0
  %v320 = vadd.f32 %v76, %v319
  %v321 = vpop.f32.mrf.mxu0
  %v322 = vadd.f32 %v76, %v321
  %323 = vmatmul.bf16.gmra.mxu0 %v226
  %v324 = vpop.f32.mrf.mxu0
  %v325 = vadd.f32 %v76, %v324
  %v326 = vpop.f32.mrf.mxu0
  %v327 = vadd.f32 %v76, %v326
  %328 = vmatmul.bf16.gmra.mxu0 %v229
  %v329 = vpop.f32.mrf.mxu0
  %v330 = vadd.f32 %v76, %v329
  %v331 = vpop.f32.mrf.mxu0
  %v332 = vadd.f32 %v76, %v331
  %333 = vmatmul.bf16.gmra.mxu0 %v232
  %v334 = vpop.f32.mrf.mxu0
  %v335 = vadd.f32 %v76, %v334
  %v336 = vpop.f32.mrf.mxu0
  %v337 = vadd.f32 %v76, %v336
  %338 = vmatmul.bf16.gmra.mxu0 %v235
  %v339 = vpop.f32.mrf.mxu0
  %v340 = vadd.f32 %v76, %v339
  %v341 = vpop.f32.mrf.mxu0
  %v342 = vadd.f32 %v76, %v341
  %343 = vmatmul.bf16.gmra.mxu0 %v238
  %v344 = vpop.f32.mrf.mxu0
  %v345 = vadd.f32 %v76, %v344
  %v346 = vpop.f32.mrf.mxu0
  %v347 = vadd.f32 %v76, %v346
  %348 = vmatmul.bf16.gmra.mxu0 %v241
  %v349 = vpop.f32.mrf.mxu0
  %v350 = vadd.f32 %v76, %v349
  %v351 = vpop.f32.mrf.mxu0
  %v352 = vadd.f32 %v76, %v351
  %353 = vmatmul.bf16.gmra.mxu0 %v244
  %v354 = vpop.f32.mrf.mxu0
  %v355 = vadd.f32 %v76, %v354
  %v356 = vpop.f32.mrf.mxu0
  %v357 = vadd.f32 %v76, %v356
  %358 = vmatmul.bf16.gmra.mxu0 %v247
  %v359 = vpop.f32.mrf.mxu0
  %v360 = vadd.f32 %v76, %v359
  %v361 = vpop.f32.mrf.mxu0
  %v362 = vadd.f32 %v76, %v361
  %363 = vmatmul.bf16.gmra.mxu0 %v250
  %v364 = vpop.f32.mrf.mxu0
  %v365 = vadd.f32 %v76, %v364
  %v366 = vpop.f32.mrf.mxu0
  %v367 = vadd.f32 %v76, %v366
  %368 = vmatmul.bf16.gmra.mxu0 %v253
  %v369 = vpop.f32.mrf.mxu0
  %v370 = vadd.f32 %v76, %v369
  %v371 = vpop.f32.mrf.mxu0
  %v372 = vadd.f32 %v76, %v371
  %373 = vmatmul.bf16.gmra.mxu0 %v256
  %v374 = vpop.f32.mrf.mxu0
  %v375 = vadd.f32 %v76, %v374
  %v376 = vpop.f32.mrf.mxu0
  %v377 = vadd.f32 %v76, %v376
  %378 = vmatmul.bf16.gmra.mxu0 %v259
  %v379 = vpop.f32.mrf.mxu0
  %v380 = vadd.f32 %v76, %v379
  %v381 = vpop.f32.mrf.mxu0
  %v382 = vadd.f32 %v76, %v381
  %383 = vmatmul.bf16.gmra.mxu0 %v262
  %v384 = vpop.f32.mrf.mxu0
  %v385 = vadd.f32 %v76, %v384
  %v386 = vpop.f32.mrf.mxu0
  %v387 = vadd.f32 %v76, %v386
  %388 = vmatmul.bf16.gmra.mxu0 %v265
  %v389 = vpop.f32.mrf.mxu0
  %v390 = vadd.f32 %v76, %v389
  %v391 = vpop.f32.mrf.mxu0
  %v392 = vadd.f32 %v76, %v391
  %393 = vmatmul.bf16.gmra.mxu0 %v268
  %v394 = vpop.f32.mrf.mxu0
  %v395 = vadd.f32 %v76, %v394
  %v396 = vpop.f32.mrf.mxu0
  %v397 = vadd.f32 %v76, %v396
  %398 = vmatmul.bf16.gmra.mxu0 %v271
  %v399 = vpop.f32.mrf.mxu0
  %v400 = vadd.f32 %v76, %v399
  %v401 = vpop.f32.mrf.mxu0
  %v402 = vadd.f32 %v76, %v401
  %403 = vmatmul.bf16.gmra.mxu0 %v274
  %v404 = vpop.f32.mrf.mxu0
  %v405 = vadd.f32 %v76, %v404
  %v406 = vpop.f32.mrf.mxu0
  %v407 = vadd.f32 %v76, %v406
  %408 = vmatmul.bf16.gmra.mxu0 %v277
  %v409 = vpop.f32.mrf.mxu0
  %v410 = vadd.f32 %v76, %v409
  %v411 = vpop.f32.mrf.mxu0
  %v412 = vadd.f32 %v76, %v411
  %413 = vmatmul.bf16.gmra.mxu0 %v280
  %v414 = vpop.f32.mrf.mxu0
  %v415 = vadd.f32 %v76, %v414
  %v416 = vpop.f32.mrf.mxu0
  %v417 = vadd.f32 %v76, %v416
  %418 = vmatmul.bf16.gmra.mxu0 %v283
  %v419 = vpop.f32.mrf.mxu0
  %v420 = vadd.f32 %v76, %v419
  %v421 = vpop.f32.mrf.mxu0
  %v422 = vadd.f32 %v76, %v421
  %423 = vmatmul.bf16.gmra.mxu0 %v286
  %v424 = vpop.f32.mrf.mxu0
  %v425 = vadd.f32 %v76, %v424
  %v426 = vpop.f32.mrf.mxu0
  %427 = vdwg.mxu0
  %s428 = scalar_lea.vmem %s0, 196
  %v429 = vld [vmem:[%s428] sm:$0xf]
  %v430 = vld [vmem:[%s428 + $0x4] sm:$0xf]
  %v431 = vld [vmem:[%s428 + $0x8] sm:$0xf]
  %v432 = vld [vmem:[%s428 + $0xc] sm:$0xf]
  %v433 = vld [vmem:[%s428 + $0x10] sm:$0xf]
  %v434 = vld [vmem:[%s428 + $0x14] sm:$0xf]
  %v435 = vld [vmem:[%s428 + $0x18] sm:$0xf]
  %v436 = vld [vmem:[%s428 + $0x1c] sm:$0xf]
  %v437 = vld [vmem:[%s428 + $0x20] sm:$0xf]
  %v438 = vld [vmem:[%s428 + $0x24] sm:$0xf]
  %v439 = vld [vmem:[%s428 + $0x28] sm:$0xf]
  %v440 = vld [vmem:[%s428 + $0x2c] sm:$0xf]
  %v441 = vld [vmem:[%s428 + $0x30] sm:$0xf]
  %v442 = vld [vmem:[%s428 + $0x34] sm:$0xf]
  %v443 = vld [vmem:[%s428 + $0x38] sm:$0xf]
  %v444 = vld [vmem:[%s428 + $0x3c] sm:$0xf]
  %v445 = vld [vmem:[%s428 + $0x40] sm:$0xf]
  %v446 = vld [vmem:[%s428 + $0x44] sm:$0xf]
  %v447 = vld [vmem:[%s428 + $0x48] sm:$0xf]
  %v448 = vld [vmem:[%s428 + $0x4c] sm:$0xf]
  %v449 = vld [vmem:[%s428 + $0x50] sm:$0xf]
  %v450 = vld [vmem:[%s428 + $0x54] sm:$0xf]
  %v451 = vld [vmem:[%s428 + $0x58] sm:$0xf]
  %v452 = vld [vmem:[%s428 + $0x5c] sm:$0xf]
  %v453 = vld [vmem:[%s428 + $0x60] sm:$0xf]
  %v454 = vld [vmem:[%s428 + $0x64] sm:$0xf]
  %v455 = vld [vmem:[%s428 + $0x68] sm:$0xf]
  %v456 = vld [vmem:[%s428 + $0x6c] sm:$0xf]
  %v457 = vld [vmem:[%s428 + $0x70] sm:$0xf]
  %v458 = vld [vmem:[%s428 + $0x74] sm:$0xf]
  %v459 = vld [vmem:[%s428 + $0x78] sm:$0xf]
  %v460 = vld [vmem:[%s428 + $0x7c] sm:$0xf]
  %v461 = vld [vmem:[%s428 + $0x80] sm:$0xf]
  %v462 = vld [vmem:[%s428 + $0x84] sm:$0xf]
  %v463 = vld [vmem:[%s428 + $0x88] sm:$0xf]
  %v464 = vld [vmem:[%s428 + $0x8c] sm:$0xf]
  %v465 = vld [vmem:[%s428 + $0x90] sm:$0xf]
  %v466 = vld [vmem:[%s428 + $0x94] sm:$0xf]
  %v467 = vld [vmem:[%s428 + $0x98] sm:$0xf]
  %v468 = vld [vmem:[%s428 + $0x9c] sm:$0xf]
  %v469 = vld [vmem:[%s428 + $0xa0] sm:$0xf]
  %v470 = vld [vmem:[%s428 + $0xa4] sm:$0xf]
  %v471 = vld [vmem:[%s428 + $0xa8] sm:$0xf]
  %v472 = vld [vmem:[%s428 + $0xac] sm:$0xf]
  %v473 = vld [vmem:[%s428 + $0xb0] sm:$0xf]
  %v474 = vld [vmem:[%s428 + $0xb4] sm:$0xf]
  %v475 = vld [vmem:[%s428 + $0xb8] sm:$0xf]
  %v476 = vld [vmem:[%s428 + $0xbc] sm:$0xf]
  %v477 = vld [vmem:[%s428 + $0xc0] sm:$0xf]
  %v527 = vunpack.c.l.b16 %v429
  %v528 = vunpack.c.l.b16 %v430
  %v529 = vunpack.c.l.b16 %v431
  %v530 = vunpack.c.l.b16 %v432
  %v531 = vunpack.c.l.b16 %v433
  %v532 = vunpack.c.l.b16 %v434
  %v533 = vunpack.c.l.b16 %v435
  %v534 = vunpack.c.l.b16 %v436
  %v535 = vunpack.c.l.b16 %v437
  %v536 = vunpack.c.l.b16 %v438
  %v537 = vunpack.c.l.b16 %v439
  %v538 = vunpack.c.l.b16 %v440
  %v539 = vunpack.c.l.b16 %v441
  %v540 = vunpack.c.l.b16 %v442
  %v541 = vunpack.c.l.b16 %v443
  %v542 = vunpack.c.l.b16 %v444
  %v543 = vunpack.c.l.b16 %v445
  %v544 = vunpack.c.l.b16 %v446
  %v545 = vunpack.c.l.b16 %v447
  %v546 = vunpack.c.l.b16 %v448
  %v547 = vunpack.c.l.b16 %v449
  %v548 = vunpack.c.l.b16 %v450
  %v549 = vunpack.c.l.b16 %v451
  %v550 = vunpack.c.l.b16 %v452
  %v551 = vunpack.c.l.b16 %v453
  %v552 = vunpack.c.l.b16 %v454
  %v553 = vunpack.c.l.b16 %v455
  %v554 = vunpack.c.l.b16 %v456
  %v555 = vunpack.c.l.b16 %v457
  %v556 = vunpack.c.l.b16 %v458
  %v557 = vunpack.c.l.b16 %v459
  %v558 = vunpack.c.l.b16 %v460
  %v559 = vunpack.c.l.b16 %v461
  %v560 = vunpack.c.l.b16 %v462
  %v561 = vunpack.c.l.b16 %v463
  %v562 = vunpack.c.l.b16 %v464
  %v563 = vunpack.c.l.b16 %v465
  %v564 = vunpack.c.l.b16 %v466
  %v565 = vunpack.c.l.b16 %v467
  %v566 = vunpack.c.l.b16 %v468
  %v567 = vunpack.c.l.b16 %v469
  %v568 = vunpack.c.l.b16 %v470
  %v569 = vunpack.c.l.b16 %v471
  %v570 = vunpack.c.l.b16 %v472
  %v571 = vunpack.c.l.b16 %v473
  %v572 = vunpack.c.l.b16 %v474
  %v573 = vunpack.c.l.b16 %v475
  %v574 = vunpack.c.l.b16 %v476
  %v575 = vunpack.c.l.b16 %v477
  %v576 = vpack.c.b16 %v528, %v527
  %v577 = vpack.c.b16 %v530, %v529
  %v578 = vpack.c.b16 %v532, %v531
  %v579 = vpack.c.b16 %v534, %v533
  %v580 = vpack.c.b16 %v536, %v535
  %v581 = vpack.c.b16 %v538, %v537
  %v582 = vpack.c.b16 %v540, %v539
  %v583 = vpack.c.b16 %v542, %v541
  %v584 = vpack.c.b16 %v544, %v543
  %v585 = vpack.c.b16 %v546, %v545
  %v586 = vpack.c.b16 %v548, %v547
  %v587 = vpack.c.b16 %v550, %v549
  %v588 = vpack.c.b16 %v552, %v551
  %v589 = vpack.c.b16 %v554, %v553
  %v590 = vpack.c.b16 %v556, %v555
  %v591 = vpack.c.b16 %v558, %v557
  %v592 = vpack.c.b16 %v560, %v559
  %v593 = vpack.c.b16 %v562, %v561
  %v594 = vpack.c.b16 %v564, %v563
  %v595 = vpack.c.b16 %v566, %v565
  %v596 = vpack.c.b16 %v568, %v567
  %v597 = vpack.c.b16 %v570, %v569
  %v598 = vpack.c.b16 %v572, %v571
  %v599 = vpack.c.b16 %v574, %v573
  %v600 = vpack.c.b16 %v575, %v575
  %v602 = vsel %vm212, %v576, 0
  %v605 = vsel %vm212, %v577, 0
  %v608 = vsel %vm212, %v578, 0
  %v611 = vsel %vm212, %v579, 0
  %v614 = vsel %vm212, %v580, 0
  %v617 = vsel %vm212, %v581, 0
  %v620 = vsel %vm212, %v582, 0
  %v623 = vsel %vm212, %v583, 0
  %v626 = vsel %vm212, %v584, 0
  %v629 = vsel %vm212, %v585, 0
  %v632 = vsel %vm212, %v586, 0
  %v635 = vsel %vm212, %v587, 0
  %v638 = vsel %vm212, %v588, 0
  %v641 = vsel %vm212, %v589, 0
  %v644 = vsel %vm212, %v590, 0
  %v647 = vsel %vm212, %v591, 0
  %v650 = vsel %vm212, %v592, 0
  %v653 = vsel %vm212, %v593, 0
  %v656 = vsel %vm212, %v594, 0
  %v659 = vsel %vm212, %v595, 0
  %v662 = vsel %vm212, %v596, 0
  %v665 = vsel %vm212, %v597, 0
  %v668 = vsel %vm212, %v598, 0
  %v671 = vsel %vm212, %v599, 0
  %v674 = vsel %vm212, %v600, 0
  %676 = vmatpush.bf16.msra.mxu0 0
  %677 = vmatpush.bf16.msra.mxu0 0
  %678 = vmatpush.bf16.msra.mxu0 0
  %679 = vmatpush.bf16.msra.mxu0 0
  %680 = vmatpush.bf16.msra.mxu0 0
  %681 = vmatpush.bf16.msra.mxu0 0
  %682 = vmatpush.bf16.msra.mxu0 %v293
  %683 = vmatpush.bf16.msra.mxu0 %v209
  %684 = vmatmul.bf16.gmra.mxu0 %v602
  %v685 = vpop.f32.mrf.mxu0
  %v686 = vadd.f32 %v76, %v685
  %v687 = vpop.f32.mrf.mxu0
  %v688 = vadd.f32 %v76, %v687
  %689 = vmatmul.bf16.gmra.mxu0 %v605
  %v690 = vpop.f32.mrf.mxu0
  %v691 = vadd.f32 %v76, %v690
  %v692 = vpop.f32.mrf.mxu0
  %v693 = vadd.f32 %v76, %v692
  %694 = vmatmul.bf16.gmra.mxu0 %v608
  %v695 = vpop.f32.mrf.mxu0
  %v696 = vadd.f32 %v76, %v695
  %v697 = vpop.f32.mrf.mxu0
  %v698 = vadd.f32 %v76, %v697
  %699 = vmatmul.bf16.gmra.mxu0 %v611
  %v700 = vpop.f32.mrf.mxu0
  %v701 = vadd.f32 %v76, %v700
  %v702 = vpop.f32.mrf.mxu0
  %v703 = vadd.f32 %v76, %v702
  %704 = vmatmul.bf16.gmra.mxu0 %v614
  %v705 = vpop.f32.mrf.mxu0
  %v706 = vadd.f32 %v76, %v705
  %v707 = vpop.f32.mrf.mxu0
  %v708 = vadd.f32 %v76, %v707
  %709 = vmatmul.bf16.gmra.mxu0 %v617
  %v710 = vpop.f32.mrf.mxu0
  %v711 = vadd.f32 %v76, %v710
  %v712 = vpop.f32.mrf.mxu0
  %v713 = vadd.f32 %v76, %v712
  %714 = vmatmul.bf16.gmra.mxu0 %v620
  %v715 = vpop.f32.mrf.mxu0
  %v716 = vadd.f32 %v76, %v715
  %v717 = vpop.f32.mrf.mxu0
  %v718 = vadd.f32 %v76, %v717
  %719 = vmatmul.bf16.gmra.mxu0 %v623
  %v720 = vpop.f32.mrf.mxu0
  %v721 = vadd.f32 %v76, %v720
  %v722 = vpop.f32.mrf.mxu0
  %v723 = vadd.f32 %v76, %v722
  %724 = vmatmul.bf16.gmra.mxu0 %v626
  %v725 = vpop.f32.mrf.mxu0
  %v726 = vadd.f32 %v76, %v725
  %v727 = vpop.f32.mrf.mxu0
  %v728 = vadd.f32 %v76, %v727
  %729 = vmatmul.bf16.gmra.mxu0 %v629
  %v730 = vpop.f32.mrf.mxu0
  %v731 = vadd.f32 %v76, %v730
  %v732 = vpop.f32.mrf.mxu0
  %v733 = vadd.f32 %v76, %v732
  %734 = vmatmul.bf16.gmra.mxu0 %v632
  %v735 = vpop.f32.mrf.mxu0
  %v736 = vadd.f32 %v76, %v735
  %v737 = vpop.f32.mrf.mxu0
  %v738 = vadd.f32 %v76, %v737
  %739 = vmatmul.bf16.gmra.mxu0 %v635
  %v740 = vpop.f32.mrf.mxu0
  %v741 = vadd.f32 %v76, %v740
  %v742 = vpop.f32.mrf.mxu0
  %v743 = vadd.f32 %v76, %v742
  %744 = vmatmul.bf16.gmra.mxu0 %v638
  %v745 = vpop.f32.mrf.mxu0
  %v746 = vadd.f32 %v76, %v745
  %v747 = vpop.f32.mrf.mxu0
  %v748 = vadd.f32 %v76, %v747
  %749 = vmatmul.bf16.gmra.mxu0 %v641
  %v750 = vpop.f32.mrf.mxu0
  %v751 = vadd.f32 %v76, %v750
  %v752 = vpop.f32.mrf.mxu0
  %v753 = vadd.f32 %v76, %v752
  %754 = vmatmul.bf16.gmra.mxu0 %v644
  %v755 = vpop.f32.mrf.mxu0
  %v756 = vadd.f32 %v76, %v755
  %v757 = vpop.f32.mrf.mxu0
  %v758 = vadd.f32 %v76, %v757
  %759 = vmatmul.bf16.gmra.mxu0 %v647
  %v760 = vpop.f32.mrf.mxu0
  %v761 = vadd.f32 %v76, %v760
  %v762 = vpop.f32.mrf.mxu0
  %v763 = vadd.f32 %v76, %v762
  %764 = vmatmul.bf16.gmra.mxu0 %v650
  %v765 = vpop.f32.mrf.mxu0
  %v766 = vadd.f32 %v76, %v765
  %v767 = vpop.f32.mrf.mxu0
  %v768 = vadd.f32 %v76, %v767
  %769 = vmatmul.bf16.gmra.mxu0 %v653
  %v770 = vpop.f32.mrf.mxu0
  %v771 = vadd.f32 %v76, %v770
  %v772 = vpop.f32.mrf.mxu0
  %v773 = vadd.f32 %v76, %v772
  %774 = vmatmul.bf16.gmra.mxu0 %v656
  %v775 = vpop.f32.mrf.mxu0
  %v776 = vadd.f32 %v76, %v775
  %v777 = vpop.f32.mrf.mxu0
  %v778 = vadd.f32 %v76, %v777
  %779 = vmatmul.bf16.gmra.mxu0 %v659
  %v780 = vpop.f32.mrf.mxu0
  %v781 = vadd.f32 %v76, %v780
  %v782 = vpop.f32.mrf.mxu0
  %v783 = vadd.f32 %v76, %v782
  %784 = vmatmul.bf16.gmra.mxu0 %v662
  %v785 = vpop.f32.mrf.mxu0
  %v786 = vadd.f32 %v76, %v785
  %v787 = vpop.f32.mrf.mxu0
  %v788 = vadd.f32 %v76, %v787
  %789 = vmatmul.bf16.gmra.mxu0 %v665
  %v790 = vpop.f32.mrf.mxu0
  %v791 = vadd.f32 %v76, %v790
  %v792 = vpop.f32.mrf.mxu0
  %v793 = vadd.f32 %v76, %v792
  %794 = vmatmul.bf16.gmra.mxu0 %v668
  %v795 = vpop.f32.mrf.mxu0
  %v796 = vadd.f32 %v76, %v795
  %v797 = vpop.f32.mrf.mxu0
  %v798 = vadd.f32 %v76, %v797
  %799 = vmatmul.bf16.gmra.mxu0 %v671
  %v800 = vpop.f32.mrf.mxu0
  %v801 = vadd.f32 %v76, %v800
  %v802 = vpop.f32.mrf.mxu0
  %v803 = vadd.f32 %v76, %v802
  %804 = vmatmul.bf16.gmra.mxu0 %v674
  %v805 = vpop.f32.mrf.mxu0
  %v806 = vadd.f32 %v76, %v805
  %v807 = vpop.f32.mrf.mxu0
  %808 = vdwg.mxu0
  %s809 = scalar_lea.vmem %s0, 392
  %v810 = vld [vmem:[%s809] sm:$0xf]
  %v811 = vld [vmem:[%s809 + $0x4] sm:$0xf]
  %v812 = vld [vmem:[%s809 + $0x8] sm:$0xf]
  %v813 = vld [vmem:[%s809 + $0xc] sm:$0xf]
  %v814 = vld [vmem:[%s809 + $0x10] sm:$0xf]
  %v815 = vld [vmem:[%s809 + $0x14] sm:$0xf]
  %v816 = vld [vmem:[%s809 + $0x18] sm:$0xf]
  %v817 = vld [vmem:[%s809 + $0x1c] sm:$0xf]
  %v818 = vld [vmem:[%s809 + $0x20] sm:$0xf]
  %v819 = vld [vmem:[%s809 + $0x24] sm:$0xf]
  %v820 = vld [vmem:[%s809 + $0x28] sm:$0xf]
  %v821 = vld [vmem:[%s809 + $0x2c] sm:$0xf]
  %v822 = vld [vmem:[%s809 + $0x30] sm:$0xf]
  %v823 = vld [vmem:[%s809 + $0x34] sm:$0xf]
  %v824 = vld [vmem:[%s809 + $0x38] sm:$0xf]
  %v825 = vld [vmem:[%s809 + $0x3c] sm:$0xf]
  %v826 = vld [vmem:[%s809 + $0x40] sm:$0xf]
  %v827 = vld [vmem:[%s809 + $0x44] sm:$0xf]
  %v828 = vld [vmem:[%s809 + $0x48] sm:$0xf]
  %v829 = vld [vmem:[%s809 + $0x4c] sm:$0xf]
  %v830 = vld [vmem:[%s809 + $0x50] sm:$0xf]
  %v831 = vld [vmem:[%s809 + $0x54] sm:$0xf]
  %v832 = vld [vmem:[%s809 + $0x58] sm:$0xf]
  %v833 = vld [vmem:[%s809 + $0x5c] sm:$0xf]
  %v834 = vld [vmem:[%s809 + $0x60] sm:$0xf]
  %v835 = vld [vmem:[%s809 + $0x64] sm:$0xf]
  %v836 = vld [vmem:[%s809 + $0x68] sm:$0xf]
  %v837 = vld [vmem:[%s809 + $0x6c] sm:$0xf]
  %v838 = vld [vmem:[%s809 + $0x70] sm:$0xf]
  %v839 = vld [vmem:[%s809 + $0x74] sm:$0xf]
  %v840 = vld [vmem:[%s809 + $0x78] sm:$0xf]
  %v841 = vld [vmem:[%s809 + $0x7c] sm:$0xf]
  %v842 = vld [vmem:[%s809 + $0x80] sm:$0xf]
  %v843 = vld [vmem:[%s809 + $0x84] sm:$0xf]
  %v844 = vld [vmem:[%s809 + $0x88] sm:$0xf]
  %v845 = vld [vmem:[%s809 + $0x8c] sm:$0xf]
  %v846 = vld [vmem:[%s809 + $0x90] sm:$0xf]
  %v847 = vld [vmem:[%s809 + $0x94] sm:$0xf]
  %v848 = vld [vmem:[%s809 + $0x98] sm:$0xf]
  %v849 = vld [vmem:[%s809 + $0x9c] sm:$0xf]
  %v850 = vld [vmem:[%s809 + $0xa0] sm:$0xf]
  %v851 = vld [vmem:[%s809 + $0xa4] sm:$0xf]
  %v852 = vld [vmem:[%s809 + $0xa8] sm:$0xf]
  %v853 = vld [vmem:[%s809 + $0xac] sm:$0xf]
  %v854 = vld [vmem:[%s809 + $0xb0] sm:$0xf]
  %v855 = vld [vmem:[%s809 + $0xb4] sm:$0xf]
  %v856 = vld [vmem:[%s809 + $0xb8] sm:$0xf]
  %v857 = vld [vmem:[%s809 + $0xbc] sm:$0xf]
  %v858 = vld [vmem:[%s809 + $0xc0] sm:$0xf]
  %v908 = vunpack.c.l.b16 %v810
  %v909 = vunpack.c.l.b16 %v811
  %v910 = vunpack.c.l.b16 %v812
  %v911 = vunpack.c.l.b16 %v813
  %v912 = vunpack.c.l.b16 %v814
  %v913 = vunpack.c.l.b16 %v815
  %v914 = vunpack.c.l.b16 %v816
  %v915 = vunpack.c.l.b16 %v817
  %v916 = vunpack.c.l.b16 %v818
  %v917 = vunpack.c.l.b16 %v819
  %v918 = vunpack.c.l.b16 %v820
  %v919 = vunpack.c.l.b16 %v821
  %v920 = vunpack.c.l.b16 %v822
  %v921 = vunpack.c.l.b16 %v823
  %v922 = vunpack.c.l.b16 %v824
  %v923 = vunpack.c.l.b16 %v825
  %v924 = vunpack.c.l.b16 %v826
  %v925 = vunpack.c.l.b16 %v827
  %v926 = vunpack.c.l.b16 %v828
  %v927 = vunpack.c.l.b16 %v829
  %v928 = vunpack.c.l.b16 %v830
  %v929 = vunpack.c.l.b16 %v831
  %v930 = vunpack.c.l.b16 %v832
  %v931 = vunpack.c.l.b16 %v833
  %v932 = vunpack.c.l.b16 %v834
  %v933 = vunpack.c.l.b16 %v835
  %v934 = vunpack.c.l.b16 %v836
  %v935 = vunpack.c.l.b16 %v837
  %v936 = vunpack.c.l.b16 %v838
  %v937 = vunpack.c.l.b16 %v839
  %v938 = vunpack.c.l.b16 %v840
  %v939 = vunpack.c.l.b16 %v841
  %v940 = vunpack.c.l.b16 %v842
  %v941 = vunpack.c.l.b16 %v843
  %v942 = vunpack.c.l.b16 %v844
  %v943 = vunpack.c.l.b16 %v845
  %v944 = vunpack.c.l.b16 %v846
  %v945 = vunpack.c.l.b16 %v847
  %v946 = vunpack.c.l.b16 %v848
  %v947 = vunpack.c.l.b16 %v849
  %v948 = vunpack.c.l.b16 %v850
  %v949 = vunpack.c.l.b16 %v851
  %v950 = vunpack.c.l.b16 %v852
  %v951 = vunpack.c.l.b16 %v853
  %v952 = vunpack.c.l.b16 %v854
  %v953 = vunpack.c.l.b16 %v855
  %v954 = vunpack.c.l.b16 %v856
  %v955 = vunpack.c.l.b16 %v857
  %v956 = vunpack.c.l.b16 %v858
  %v957 = vpack.c.b16 %v909, %v908
  %v958 = vpack.c.b16 %v911, %v910
  %v959 = vpack.c.b16 %v913, %v912
  %v960 = vpack.c.b16 %v915, %v914
  %v961 = vpack.c.b16 %v917, %v916
  %v962 = vpack.c.b16 %v919, %v918
  %v963 = vpack.c.b16 %v921, %v920
  %v964 = vpack.c.b16 %v923, %v922
  %v965 = vpack.c.b16 %v925, %v924
  %v966 = vpack.c.b16 %v927, %v926
  %v967 = vpack.c.b16 %v929, %v928
  %v968 = vpack.c.b16 %v931, %v930
  %v969 = vpack.c.b16 %v933, %v932
  %v970 = vpack.c.b16 %v935, %v934
  %v971 = vpack.c.b16 %v937, %v936
  %v972 = vpack.c.b16 %v939, %v938
  %v973 = vpack.c.b16 %v941, %v940
  %v974 = vpack.c.b16 %v943, %v942
  %v975 = vpack.c.b16 %v945, %v944
  %v976 = vpack.c.b16 %v947, %v946
  %v977 = vpack.c.b16 %v949, %v948
  %v978 = vpack.c.b16 %v951, %v950
  %v979 = vpack.c.b16 %v953, %v952
  %v980 = vpack.c.b16 %v955, %v954
  %v981 = vpack.c.b16 %v956, %v956
  %v983 = vsel %vm212, %v957, 0
  %v986 = vsel %vm212, %v958, 0
  %v989 = vsel %vm212, %v959, 0
  %v992 = vsel %vm212, %v960, 0
  %v995 = vsel %vm212, %v961, 0
  %v998 = vsel %vm212, %v962, 0
  %v1001 = vsel %vm212, %v963, 0
  %v1004 = vsel %vm212, %v964, 0
  %v1007 = vsel %vm212, %v965, 0
  %v1010 = vsel %vm212, %v966, 0
  %v1013 = vsel %vm212, %v967, 0
  %v1016 = vsel %vm212, %v968, 0
  %v1019 = vsel %vm212, %v969, 0
  %v1022 = vsel %vm212, %v970, 0
  %v1025 = vsel %vm212, %v971, 0
  %v1028 = vsel %vm212, %v972, 0
  %v1031 = vsel %vm212, %v973, 0
  %v1034 = vsel %vm212, %v974, 0
  %v1037 = vsel %vm212, %v975, 0
  %v1040 = vsel %vm212, %v976, 0
  %v1043 = vsel %vm212, %v977, 0
  %v1046 = vsel %vm212, %v978, 0
  %v1049 = vsel %vm212, %v979, 0
  %v1052 = vsel %vm212, %v980, 0
  %v1055 = vsel %vm212, %v981, 0
  %1057 = vmatpush.bf16.msra.mxu0 0
  %1058 = vmatpush.bf16.msra.mxu0 0
  %1059 = vmatpush.bf16.msra.mxu0 0
  %1060 = vmatpush.bf16.msra.mxu0 0
  %1061 = vmatpush.bf16.msra.mxu0 0
  %1062 = vmatpush.bf16.msra.mxu0 0
  %1063 = vmatpush.bf16.msra.mxu0 %v293
  %1064 = vmatpush.bf16.msra.mxu0 %v209
  %1065 = vmatmul.bf16.gmra.mxu0 %v983
  %v1066 = vpop.f32.mrf.mxu0
  %v1067 = vadd.f32 %v76, %v1066
  %v1068 = vpop.f32.mrf.mxu0
  %v1069 = vadd.f32 %v76, %v1068
  %1070 = vmatmul.bf16.gmra.mxu0 %v986
  %v1071 = vpop.f32.mrf.mxu0
  %v1072 = vadd.f32 %v76, %v1071
  %v1073 = vpop.f32.mrf.mxu0
  %v1074 = vadd.f32 %v76, %v1073
  %1075 = vmatmul.bf16.gmra.mxu0 %v989
  %v1076 = vpop.f32.mrf.mxu0
  %v1077 = vadd.f32 %v76, %v1076
  %v1078 = vpop.f32.mrf.mxu0
  %v1079 = vadd.f32 %v76, %v1078
  %1080 = vmatmul.bf16.gmra.mxu0 %v992
  %v1081 = vpop.f32.mrf.mxu0
  %v1082 = vadd.f32 %v76, %v1081
  %v1083 = vpop.f32.mrf.mxu0
  %v1084 = vadd.f32 %v76, %v1083
  %1085 = vmatmul.bf16.gmra.mxu0 %v995
  %v1086 = vpop.f32.mrf.mxu0
  %v1087 = vadd.f32 %v76, %v1086
  %v1088 = vpop.f32.mrf.mxu0
  %v1089 = vadd.f32 %v76, %v1088
  %1090 = vmatmul.bf16.gmra.mxu0 %v998
  %v1091 = vpop.f32.mrf.mxu0
  %v1092 = vadd.f32 %v76, %v1091
  %v1093 = vpop.f32.mrf.mxu0
  %v1094 = vadd.f32 %v76, %v1093
  %1095 = vmatmul.bf16.gmra.mxu0 %v1001
  %v1096 = vpop.f32.mrf.mxu0
  %v1097 = vadd.f32 %v76, %v1096
  %v1098 = vpop.f32.mrf.mxu0
  %v1099 = vadd.f32 %v76, %v1098
  %1100 = vmatmul.bf16.gmra.mxu0 %v1004
  %v1101 = vpop.f32.mrf.mxu0
  %v1102 = vadd.f32 %v76, %v1101
  %v1103 = vpop.f32.mrf.mxu0
  %v1104 = vadd.f32 %v76, %v1103
  %1105 = vmatmul.bf16.gmra.mxu0 %v1007
  %v1106 = vpop.f32.mrf.mxu0
  %v1107 = vadd.f32 %v76, %v1106
  %v1108 = vpop.f32.mrf.mxu0
  %v1109 = vadd.f32 %v76, %v1108
  %1110 = vmatmul.bf16.gmra.mxu0 %v1010
  %v1111 = vpop.f32.mrf.mxu0
  %v1112 = vadd.f32 %v76, %v1111
  %v1113 = vpop.f32.mrf.mxu0
  %v1114 = vadd.f32 %v76, %v1113
  %1115 = vmatmul.bf16.gmra.mxu0 %v1013
  %v1116 = vpop.f32.mrf.mxu0
  %v1117 = vadd.f32 %v76, %v1116
  %v1118 = vpop.f32.mrf.mxu0
  %v1119 = vadd.f32 %v76, %v1118
  %1120 = vmatmul.bf16.gmra.mxu0 %v1016
  %v1121 = vpop.f32.mrf.mxu0
  %v1122 = vadd.f32 %v76, %v1121
  %v1123 = vpop.f32.mrf.mxu0
  %v1124 = vadd.f32 %v76, %v1123
  %1125 = vmatmul.bf16.gmra.mxu0 %v1019
  %v1126 = vpop.f32.mrf.mxu0
  %v1127 = vadd.f32 %v76, %v1126
  %v1128 = vpop.f32.mrf.mxu0
  %v1129 = vadd.f32 %v76, %v1128
  %1130 = vmatmul.bf16.gmra.mxu0 %v1022
  %v1131 = vpop.f32.mrf.mxu0
  %v1132 = vadd.f32 %v76, %v1131
  %v1133 = vpop.f32.mrf.mxu0
  %v1134 = vadd.f32 %v76, %v1133
  %1135 = vmatmul.bf16.gmra.mxu0 %v1025
  %v1136 = vpop.f32.mrf.mxu0
  %v1137 = vadd.f32 %v76, %v1136
  %v1138 = vpop.f32.mrf.mxu0
  %v1139 = vadd.f32 %v76, %v1138
  %1140 = vmatmul.bf16.gmra.mxu0 %v1028
  %v1141 = vpop.f32.mrf.mxu0
  %v1142 = vadd.f32 %v76, %v1141
  %v1143 = vpop.f32.mrf.mxu0
  %v1144 = vadd.f32 %v76, %v1143
  %1145 = vmatmul.bf16.gmra.mxu0 %v1031
  %v1146 = vpop.f32.mrf.mxu0
  %v1147 = vadd.f32 %v76, %v1146
  %v1148 = vpop.f32.mrf.mxu0
  %v1149 = vadd.f32 %v76, %v1148
  %1150 = vmatmul.bf16.gmra.mxu0 %v1034
  %v1151 = vpop.f32.mrf.mxu0
  %v1152 = vadd.f32 %v76, %v1151
  %v1153 = vpop.f32.mrf.mxu0
  %v1154 = vadd.f32 %v76, %v1153
  %1155 = vmatmul.bf16.gmra.mxu0 %v1037
  %v1156 = vpop.f32.mrf.mxu0
  %v1157 = vadd.f32 %v76, %v1156
  %v1158 = vpop.f32.mrf.mxu0
  %v1159 = vadd.f32 %v76, %v1158
  %1160 = vmatmul.bf16.gmra.mxu0 %v1040
  %v1161 = vpop.f32.mrf.mxu0
  %v1162 = vadd.f32 %v76, %v1161
  %v1163 = vpop.f32.mrf.mxu0
  %v1164 = vadd.f32 %v76, %v1163
  %1165 = vmatmul.bf16.gmra.mxu0 %v1043
  %v1166 = vpop.f32.mrf.mxu0
  %v1167 = vadd.f32 %v76, %v1166
  %v1168 = vpop.f32.mrf.mxu0
  %v1169 = vadd.f32 %v76, %v1168
  %1170 = vmatmul.bf16.gmra.mxu0 %v1046
  %v1171 = vpop.f32.mrf.mxu0
  %v1172 = vadd.f32 %v76, %v1171
  %v1173 = vpop.f32.mrf.mxu0
  %v1174 = vadd.f32 %v76, %v1173
  %1175 = vmatmul.bf16.gmra.mxu0 %v1049
  %v1176 = vpop.f32.mrf.mxu0
  %v1177 = vadd.f32 %v76, %v1176
  %v1178 = vpop.f32.mrf.mxu0
  %v1179 = vadd.f32 %v76, %v1178
  %1180 = vmatmul.bf16.gmra.mxu0 %v1052
  %v1181 = vpop.f32.mrf.mxu0
  %v1182 = vadd.f32 %v76, %v1181
  %v1183 = vpop.f32.mrf.mxu0
  %v1184 = vadd.f32 %v76, %v1183
  %1185 = vmatmul.bf16.gmra.mxu0 %v1055
  %v1186 = vpop.f32.mrf.mxu0
  %v1187 = vadd.f32 %v76, %v1186
  %v1188 = vpop.f32.mrf.mxu0
  %1189 = vdwg.mxu0
  %s1190 = scalar_lea.vmem %s0, 588
  %v1191 = vld [vmem:[%s1190] sm:$0xf]
  %v1192 = vld [vmem:[%s1190 + $0x4] sm:$0xf]
  %v1193 = vld [vmem:[%s1190 + $0x8] sm:$0xf]
  %v1194 = vld [vmem:[%s1190 + $0xc] sm:$0xf]
  %v1195 = vld [vmem:[%s1190 + $0x10] sm:$0xf]
  %v1196 = vld [vmem:[%s1190 + $0x14] sm:$0xf]
  %v1197 = vld [vmem:[%s1190 + $0x18] sm:$0xf]
  %v1198 = vld [vmem:[%s1190 + $0x1c] sm:$0xf]
  %v1199 = vld [vmem:[%s1190 + $0x20] sm:$0xf]
  %v1200 = vld [vmem:[%s1190 + $0x24] sm:$0xf]
  %v1201 = vld [vmem:[%s1190 + $0x28] sm:$0xf]
  %v1202 = vld [vmem:[%s1190 + $0x2c] sm:$0xf]
  %v1203 = vld [vmem:[%s1190 + $0x30] sm:$0xf]
  %v1204 = vld [vmem:[%s1190 + $0x34] sm:$0xf]
  %v1205 = vld [vmem:[%s1190 + $0x38] sm:$0xf]
  %v1206 = vld [vmem:[%s1190 + $0x3c] sm:$0xf]
  %v1207 = vld [vmem:[%s1190 + $0x40] sm:$0xf]
  %v1208 = vld [vmem:[%s1190 + $0x44] sm:$0xf]
  %v1209 = vld [vmem:[%s1190 + $0x48] sm:$0xf]
  %v1210 = vld [vmem:[%s1190 + $0x4c] sm:$0xf]
  %v1211 = vld [vmem:[%s1190 + $0x50] sm:$0xf]
  %v1212 = vld [vmem:[%s1190 + $0x54] sm:$0xf]
  %v1213 = vld [vmem:[%s1190 + $0x58] sm:$0xf]
  %v1214 = vld [vmem:[%s1190 + $0x5c] sm:$0xf]
  %v1215 = vld [vmem:[%s1190 + $0x60] sm:$0xf]
  %v1216 = vld [vmem:[%s1190 + $0x64] sm:$0xf]
  %v1217 = vld [vmem:[%s1190 + $0x68] sm:$0xf]
  %v1218 = vld [vmem:[%s1190 + $0x6c] sm:$0xf]
  %v1219 = vld [vmem:[%s1190 + $0x70] sm:$0xf]
  %v1220 = vld [vmem:[%s1190 + $0x74] sm:$0xf]
  %v1221 = vld [vmem:[%s1190 + $0x78] sm:$0xf]
  %v1222 = vld [vmem:[%s1190 + $0x7c] sm:$0xf]
  %v1223 = vld [vmem:[%s1190 + $0x80] sm:$0xf]
  %v1224 = vld [vmem:[%s1190 + $0x84] sm:$0xf]
  %v1225 = vld [vmem:[%s1190 + $0x88] sm:$0xf]
  %v1226 = vld [vmem:[%s1190 + $0x8c] sm:$0xf]
  %v1227 = vld [vmem:[%s1190 + $0x90] sm:$0xf]
  %v1228 = vld [vmem:[%s1190 + $0x94] sm:$0xf]
  %v1229 = vld [vmem:[%s1190 + $0x98] sm:$0xf]
  %v1230 = vld [vmem:[%s1190 + $0x9c] sm:$0xf]
  %v1231 = vld [vmem:[%s1190 + $0xa0] sm:$0xf]
  %v1232 = vld [vmem:[%s1190 + $0xa4] sm:$0xf]
  %v1233 = vld [vmem:[%s1190 + $0xa8] sm:$0xf]
  %v1234 = vld [vmem:[%s1190 + $0xac] sm:$0xf]
  %v1235 = vld [vmem:[%s1190 + $0xb0] sm:$0xf]
  %v1236 = vld [vmem:[%s1190 + $0xb4] sm:$0xf]
  %v1237 = vld [vmem:[%s1190 + $0xb8] sm:$0xf]
  %v1238 = vld [vmem:[%s1190 + $0xbc] sm:$0xf]
  %v1239 = vld [vmem:[%s1190 + $0xc0] sm:$0xf]
  %v1289 = vunpack.c.l.b16 %v1191
  %v1290 = vunpack.c.l.b16 %v1192
  %v1291 = vunpack.c.l.b16 %v1193
  %v1292 = vunpack.c.l.b16 %v1194
  %v1293 = vunpack.c.l.b16 %v1195
  %v1294 = vunpack.c.l.b16 %v1196
  %v1295 = vunpack.c.l.b16 %v1197
  %v1296 = vunpack.c.l.b16 %v1198
  %v1297 = vunpack.c.l.b16 %v1199
  %v1298 = vunpack.c.l.b16 %v1200
  %v1299 = vunpack.c.l.b16 %v1201
  %v1300 = vunpack.c.l.b16 %v1202
  %v1301 = vunpack.c.l.b16 %v1203
  %v1302 = vunpack.c.l.b16 %v1204
  %v1303 = vunpack.c.l.b16 %v1205
  %v1304 = vunpack.c.l.b16 %v1206
  %v1305 = vunpack.c.l.b16 %v1207
  %v1306 = vunpack.c.l.b16 %v1208
  %v1307 = vunpack.c.l.b16 %v1209
  %v1308 = vunpack.c.l.b16 %v1210
  %v1309 = vunpack.c.l.b16 %v1211
  %v1310 = vunpack.c.l.b16 %v1212
  %v1311 = vunpack.c.l.b16 %v1213
  %v1312 = vunpack.c.l.b16 %v1214
  %v1313 = vunpack.c.l.b16 %v1215
  %v1314 = vunpack.c.l.b16 %v1216
  %v1315 = vunpack.c.l.b16 %v1217
  %v1316 = vunpack.c.l.b16 %v1218
  %v1317 = vunpack.c.l.b16 %v1219
  %v1318 = vunpack.c.l.b16 %v1220
  %v1319 = vunpack.c.l.b16 %v1221
  %v1320 = vunpack.c.l.b16 %v1222
  %v1321 = vunpack.c.l.b16 %v1223
  %v1322 = vunpack.c.l.b16 %v1224
  %v1323 = vunpack.c.l.b16 %v1225
  %v1324 = vunpack.c.l.b16 %v1226
  %v1325 = vunpack.c.l.b16 %v1227
  %v1326 = vunpack.c.l.b16 %v1228
  %v1327 = vunpack.c.l.b16 %v1229
  %v1328 = vunpack.c.l.b16 %v1230
  %v1329 = vunpack.c.l.b16 %v1231
  %v1330 = vunpack.c.l.b16 %v1232
  %v1331 = vunpack.c.l.b16 %v1233
  %v1332 = vunpack.c.l.b16 %v1234
  %v1333 = vunpack.c.l.b16 %v1235
  %v1334 = vunpack.c.l.b16 %v1236
  %v1335 = vunpack.c.l.b16 %v1237
  %v1336 = vunpack.c.l.b16 %v1238
  %v1337 = vunpack.c.l.b16 %v1239
  %v1338 = vpack.c.b16 %v1290, %v1289
  %v1339 = vpack.c.b16 %v1292, %v1291
  %v1340 = vpack.c.b16 %v1294, %v1293
  %v1341 = vpack.c.b16 %v1296, %v1295
  %v1342 = vpack.c.b16 %v1298, %v1297
  %v1343 = vpack.c.b16 %v1300, %v1299
  %v1344 = vpack.c.b16 %v1302, %v1301
  %v1345 = vpack.c.b16 %v1304, %v1303
  %v1346 = vpack.c.b16 %v1306, %v1305
  %v1347 = vpack.c.b16 %v1308, %v1307
  %v1348 = vpack.c.b16 %v1310, %v1309
  %v1349 = vpack.c.b16 %v1312, %v1311
  %v1350 = vpack.c.b16 %v1314, %v1313
  %v1351 = vpack.c.b16 %v1316, %v1315
  %v1352 = vpack.c.b16 %v1318, %v1317
  %v1353 = vpack.c.b16 %v1320, %v1319
  %v1354 = vpack.c.b16 %v1322, %v1321
  %v1355 = vpack.c.b16 %v1324, %v1323
  %v1356 = vpack.c.b16 %v1326, %v1325
  %v1357 = vpack.c.b16 %v1328, %v1327
  %v1358 = vpack.c.b16 %v1330, %v1329
  %v1359 = vpack.c.b16 %v1332, %v1331
  %v1360 = vpack.c.b16 %v1334, %v1333
  %v1361 = vpack.c.b16 %v1336, %v1335
  %v1362 = vpack.c.b16 %v1337, %v1337
  %v1364 = vsel %vm212, %v1338, 0
  %v1367 = vsel %vm212, %v1339, 0
  %v1370 = vsel %vm212, %v1340, 0
  %v1373 = vsel %vm212, %v1341, 0
  %v1376 = vsel %vm212, %v1342, 0
  %v1379 = vsel %vm212, %v1343, 0
  %v1382 = vsel %vm212, %v1344, 0
  %v1385 = vsel %vm212, %v1345, 0
  %v1388 = vsel %vm212, %v1346, 0
  %v1391 = vsel %vm212, %v1347, 0
  %v1394 = vsel %vm212, %v1348, 0
  %v1397 = vsel %vm212, %v1349, 0
  %v1400 = vsel %vm212, %v1350, 0
  %v1403 = vsel %vm212, %v1351, 0
  %v1406 = vsel %vm212, %v1352, 0
  %v1409 = vsel %vm212, %v1353, 0
  %v1412 = vsel %vm212, %v1354, 0
  %v1415 = vsel %vm212, %v1355, 0
  %v1418 = vsel %vm212, %v1356, 0
  %v1421 = vsel %vm212, %v1357, 0
  %v1424 = vsel %vm212, %v1358, 0
  %v1427 = vsel %vm212, %v1359, 0
  %v1430 = vsel %vm212, %v1360, 0
  %v1433 = vsel %vm212, %v1361, 0
  %v1436 = vsel %vm212, %v1362, 0
  %1438 = vmatpush.bf16.msra.mxu0 0
  %1439 = vmatpush.bf16.msra.mxu0 0
  %1440 = vmatpush.bf16.msra.mxu0 0
  %1441 = vmatpush.bf16.msra.mxu0 0
  %1442 = vmatpush.bf16.msra.mxu0 0
  %1443 = vmatpush.bf16.msra.mxu0 0
  %1444 = vmatpush.bf16.msra.mxu0 %v293
  %1445 = vmatpush.bf16.msra.mxu0 %v209
  %1446 = vmatmul.bf16.gmra.mxu0 %v1364
  %v1447 = vpop.f32.mrf.mxu0
  %v1448 = vadd.f32 %v76, %v1447
  %v1449 = vpop.f32.mrf.mxu0
  %v1450 = vadd.f32 %v76, %v1449
  %1451 = vmatmul.bf16.gmra.mxu0 %v1367
  %v1452 = vpop.f32.mrf.mxu0
  %v1453 = vadd.f32 %v76, %v1452
  %v1454 = vpop.f32.mrf.mxu0
  %v1455 = vadd.f32 %v76, %v1454
  %1456 = vmatmul.bf16.gmra.mxu0 %v1370
  %v1457 = vpop.f32.mrf.mxu0
  %v1458 = vadd.f32 %v76, %v1457
  %v1459 = vpop.f32.mrf.mxu0
  %v1460 = vadd.f32 %v76, %v1459
  %1461 = vmatmul.bf16.gmra.mxu0 %v1373
  %v1462 = vpop.f32.mrf.mxu0
  %v1463 = vadd.f32 %v76, %v1462
  %v1464 = vpop.f32.mrf.mxu0
  %v1465 = vadd.f32 %v76, %v1464
  %1466 = vmatmul.bf16.gmra.mxu0 %v1376
  %v1467 = vpop.f32.mrf.mxu0
  %v1468 = vadd.f32 %v76, %v1467
  %v1469 = vpop.f32.mrf.mxu0
  %v1470 = vadd.f32 %v76, %v1469
  %1471 = vmatmul.bf16.gmra.mxu0 %v1379
  %v1472 = vpop.f32.mrf.mxu0
  %v1473 = vadd.f32 %v76, %v1472
  %v1474 = vpop.f32.mrf.mxu0
  %v1475 = vadd.f32 %v76, %v1474
  %1476 = vmatmul.bf16.gmra.mxu0 %v1382
  %v1477 = vpop.f32.mrf.mxu0
  %v1478 = vadd.f32 %v76, %v1477
  %v1479 = vpop.f32.mrf.mxu0
  %v1480 = vadd.f32 %v76, %v1479
  %1481 = vmatmul.bf16.gmra.mxu0 %v1385
  %v1482 = vpop.f32.mrf.mxu0
  %v1483 = vadd.f32 %v76, %v1482
  %v1484 = vpop.f32.mrf.mxu0
  %v1485 = vadd.f32 %v76, %v1484
  %1486 = vmatmul.bf16.gmra.mxu0 %v1388
  %v1487 = vpop.f32.mrf.mxu0
  %v1488 = vadd.f32 %v76, %v1487
  %v1489 = vpop.f32.mrf.mxu0
  %v1490 = vadd.f32 %v76, %v1489
  %1491 = vmatmul.bf16.gmra.mxu0 %v1391
  %v1492 = vpop.f32.mrf.mxu0
  %v1493 = vadd.f32 %v76, %v1492
  %v1494 = vpop.f32.mrf.mxu0
  %v1495 = vadd.f32 %v76, %v1494
  %1496 = vmatmul.bf16.gmra.mxu0 %v1394
  %v1497 = vpop.f32.mrf.mxu0
  %v1498 = vadd.f32 %v76, %v1497
  %v1499 = vpop.f32.mrf.mxu0
  %v1500 = vadd.f32 %v76, %v1499
  %1501 = vmatmul.bf16.gmra.mxu0 %v1397
  %v1502 = vpop.f32.mrf.mxu0
  %v1503 = vadd.f32 %v76, %v1502
  %v1504 = vpop.f32.mrf.mxu0
  %v1505 = vadd.f32 %v76, %v1504
  %1506 = vmatmul.bf16.gmra.mxu0 %v1400
  %v1507 = vpop.f32.mrf.mxu0
  %v1508 = vadd.f32 %v76, %v1507
  %v1509 = vpop.f32.mrf.mxu0
  %v1510 = vadd.f32 %v76, %v1509
  %1511 = vmatmul.bf16.gmra.mxu0 %v1403
  %v1512 = vpop.f32.mrf.mxu0
  %v1513 = vadd.f32 %v76, %v1512
  %v1514 = vpop.f32.mrf.mxu0
  %v1515 = vadd.f32 %v76, %v1514
  %1516 = vmatmul.bf16.gmra.mxu0 %v1406
  %v1517 = vpop.f32.mrf.mxu0
  %v1518 = vadd.f32 %v76, %v1517
  %v1519 = vpop.f32.mrf.mxu0
  %v1520 = vadd.f32 %v76, %v1519
  %1521 = vmatmul.bf16.gmra.mxu0 %v1409
  %v1522 = vpop.f32.mrf.mxu0
  %v1523 = vadd.f32 %v76, %v1522
  %v1524 = vpop.f32.mrf.mxu0
  %v1525 = vadd.f32 %v76, %v1524
  %1526 = vmatmul.bf16.gmra.mxu0 %v1412
  %v1527 = vpop.f32.mrf.mxu0
  %v1528 = vadd.f32 %v76, %v1527
  %v1529 = vpop.f32.mrf.mxu0
  %v1530 = vadd.f32 %v76, %v1529
  %1531 = vmatmul.bf16.gmra.mxu0 %v1415
  %v1532 = vpop.f32.mrf.mxu0
  %v1533 = vadd.f32 %v76, %v1532
  %v1534 = vpop.f32.mrf.mxu0
  %v1535 = vadd.f32 %v76, %v1534
  %1536 = vmatmul.bf16.gmra.mxu0 %v1418
  %v1537 = vpop.f32.mrf.mxu0
  %v1538 = vadd.f32 %v76, %v1537
  %v1539 = vpop.f32.mrf.mxu0
  %v1540 = vadd.f32 %v76, %v1539
  %1541 = vmatmul.bf16.gmra.mxu0 %v1421
  %v1542 = vpop.f32.mrf.mxu0
  %v1543 = vadd.f32 %v76, %v1542
  %v1544 = vpop.f32.mrf.mxu0
  %v1545 = vadd.f32 %v76, %v1544
  %1546 = vmatmul.bf16.gmra.mxu0 %v1424
  %v1547 = vpop.f32.mrf.mxu0
  %v1548 = vadd.f32 %v76, %v1547
  %v1549 = vpop.f32.mrf.mxu0
  %v1550 = vadd.f32 %v76, %v1549
  %1551 = vmatmul.bf16.gmra.mxu0 %v1427
  %v1552 = vpop.f32.mrf.mxu0
  %v1553 = vadd.f32 %v76, %v1552
  %v1554 = vpop.f32.mrf.mxu0
  %v1555 = vadd.f32 %v76, %v1554
  %1556 = vmatmul.bf16.gmra.mxu0 %v1430
  %v1557 = vpop.f32.mrf.mxu0
  %v1558 = vadd.f32 %v76, %v1557
  %v1559 = vpop.f32.mrf.mxu0
  %v1560 = vadd.f32 %v76, %v1559
  %1561 = vmatmul.bf16.gmra.mxu0 %v1433
  %v1562 = vpop.f32.mrf.mxu0
  %v1563 = vadd.f32 %v76, %v1562
  %v1564 = vpop.f32.mrf.mxu0
  %v1565 = vadd.f32 %v76, %v1564
  %1566 = vmatmul.bf16.gmra.mxu0 %v1436
  %v1567 = vpop.f32.mrf.mxu0
  %v1568 = vadd.f32 %v76, %v1567
  %v1569 = vpop.f32.mrf.mxu0
  %1570 = vdwg.mxu0
  %vm1571 = vcmask 48128
  %v1572 = vsel %vm1571, %v305, 0.0
  %v1573 = vsel %vm1571, %v307, 0.0
  %v1574 = vadd.f32 %v1572, %v1573
  %v1575 = vsel %vm1571, %v310, 0.0
  %v1576 = vadd.f32 %v1574, %v1575
  %v1577 = vsel %vm1571, %v312, 0.0
  %v1578 = vadd.f32 %v1576, %v1577
  %v1579 = vsel %vm1571, %v315, 0.0
  %v1580 = vadd.f32 %v1578, %v1579
  %v1581 = vsel %vm1571, %v317, 0.0
  %v1582 = vadd.f32 %v1580, %v1581
  %v1583 = vsel %vm1571, %v320, 0.0
  %v1584 = vadd.f32 %v1582, %v1583
  %v1585 = vsel %vm1571, %v322, 0.0
  %v1586 = vadd.f32 %v1584, %v1585
  %v1587 = vsel %vm1571, %v325, 0.0
  %v1588 = vadd.f32 %v1586, %v1587
  %v1589 = vsel %vm1571, %v327, 0.0
  %v1590 = vadd.f32 %v1588, %v1589
  %v1591 = vsel %vm1571, %v330, 0.0
  %v1592 = vadd.f32 %v1590, %v1591
  %v1593 = vsel %vm1571, %v332, 0.0
  %v1594 = vadd.f32 %v1592, %v1593
  %v1595 = vsel %vm1571, %v335, 0.0
  %v1596 = vadd.f32 %v1594, %v1595
  %v1597 = vsel %vm1571, %v337, 0.0
  %v1598 = vadd.f32 %v1596, %v1597
  %v1599 = vsel %vm1571, %v340, 0.0
  %v1600 = vadd.f32 %v1598, %v1599
  %v1601 = vsel %vm1571, %v342, 0.0
  %v1602 = vadd.f32 %v1600, %v1601
  %v1603 = vsel %vm1571, %v345, 0.0
  %v1604 = vadd.f32 %v1602, %v1603
  %v1605 = vsel %vm1571, %v347, 0.0
  %v1606 = vadd.f32 %v1604, %v1605
  %v1607 = vsel %vm1571, %v350, 0.0
  %v1608 = vadd.f32 %v1606, %v1607
  %v1609 = vsel %vm1571, %v352, 0.0
  %v1610 = vadd.f32 %v1608, %v1609
  %v1611 = vsel %vm1571, %v355, 0.0
  %v1612 = vadd.f32 %v1610, %v1611
  %v1613 = vsel %vm1571, %v357, 0.0
  %v1614 = vadd.f32 %v1612, %v1613
  %v1615 = vsel %vm1571, %v360, 0.0
  %v1616 = vadd.f32 %v1614, %v1615
  %v1617 = vsel %vm1571, %v362, 0.0
  %v1618 = vadd.f32 %v1616, %v1617
  %v1619 = vsel %vm1571, %v365, 0.0
  %v1620 = vadd.f32 %v1618, %v1619
  %v1621 = vsel %vm1571, %v367, 0.0
  %v1622 = vadd.f32 %v1620, %v1621
  %v1623 = vsel %vm1571, %v370, 0.0
  %v1624 = vadd.f32 %v1622, %v1623
  %v1625 = vsel %vm1571, %v372, 0.0
  %v1626 = vadd.f32 %v1624, %v1625
  %v1627 = vsel %vm1571, %v375, 0.0
  %v1628 = vadd.f32 %v1626, %v1627
  %v1629 = vsel %vm1571, %v377, 0.0
  %v1630 = vadd.f32 %v1628, %v1629
  %v1631 = vsel %vm1571, %v380, 0.0
  %v1632 = vadd.f32 %v1630, %v1631
  %v1633 = vsel %vm1571, %v382, 0.0
  %v1634 = vadd.f32 %v1632, %v1633
  %v1635 = vsel %vm1571, %v385, 0.0
  %v1636 = vadd.f32 %v1634, %v1635
  %v1637 = vsel %vm1571, %v387, 0.0
  %v1638 = vadd.f32 %v1636, %v1637
  %v1639 = vsel %vm1571, %v390, 0.0
  %v1640 = vadd.f32 %v1638, %v1639
  %v1641 = vsel %vm1571, %v392, 0.0
  %v1642 = vadd.f32 %v1640, %v1641
  %v1643 = vsel %vm1571, %v395, 0.0
  %v1644 = vadd.f32 %v1642, %v1643
  %v1645 = vsel %vm1571, %v397, 0.0
  %v1646 = vadd.f32 %v1644, %v1645
  %v1647 = vsel %vm1571, %v400, 0.0
  %v1648 = vadd.f32 %v1646, %v1647
  %v1649 = vsel %vm1571, %v402, 0.0
  %v1650 = vadd.f32 %v1648, %v1649
  %v1651 = vsel %vm1571, %v405, 0.0
  %v1652 = vadd.f32 %v1650, %v1651
  %v1653 = vsel %vm1571, %v407, 0.0
  %v1654 = vadd.f32 %v1652, %v1653
  %v1655 = vsel %vm1571, %v410, 0.0
  %v1656 = vadd.f32 %v1654, %v1655
  %v1657 = vsel %vm1571, %v412, 0.0
  %v1658 = vadd.f32 %v1656, %v1657
  %v1659 = vsel %vm1571, %v415, 0.0
  %v1660 = vadd.f32 %v1658, %v1659
  %v1661 = vsel %vm1571, %v417, 0.0
  %v1662 = vadd.f32 %v1660, %v1661
  %v1663 = vsel %vm1571, %v420, 0.0
  %v1664 = vadd.f32 %v1662, %v1663
  %v1665 = vsel %vm1571, %v422, 0.0
  %v1666 = vadd.f32 %v1664, %v1665
  %v1667 = vsel %vm1571, %v425, 0.0
  %v1668 = vadd.f32 %v1666, %v1667
  %v1669 = vrot.slane %v1668, 4
  %v1670 = vadd.f32 %v1668, %v1669
  %v1671 = vrot.slane %v1670, 2
  %v1672 = vadd.f32 %v1670, %v1671
  %v1673 = vrot.slane %v1672, 1
  %v1674 = vadd.f32 %v1672, %v1673
  %v1675 = vsel %vm1571, %v686, 0.0
  %v1676 = vsel %vm1571, %v688, 0.0
  %v1677 = vadd.f32 %v1675, %v1676
  %v1678 = vsel %vm1571, %v691, 0.0
  %v1679 = vadd.f32 %v1677, %v1678
  %v1680 = vsel %vm1571, %v693, 0.0
  %v1681 = vadd.f32 %v1679, %v1680
  %v1682 = vsel %vm1571, %v696, 0.0
  %v1683 = vadd.f32 %v1681, %v1682
  %v1684 = vsel %vm1571, %v698, 0.0
  %v1685 = vadd.f32 %v1683, %v1684
  %v1686 = vsel %vm1571, %v701, 0.0
  %v1687 = vadd.f32 %v1685, %v1686
  %v1688 = vsel %vm1571, %v703, 0.0
  %v1689 = vadd.f32 %v1687, %v1688
  %v1690 = vsel %vm1571, %v706, 0.0
  %v1691 = vadd.f32 %v1689, %v1690
  %v1692 = vsel %vm1571, %v708, 0.0
  %v1693 = vadd.f32 %v1691, %v1692
  %v1694 = vsel %vm1571, %v711, 0.0
  %v1695 = vadd.f32 %v1693, %v1694
  %v1696 = vsel %vm1571, %v713, 0.0
  %v1697 = vadd.f32 %v1695, %v1696
  %v1698 = vsel %vm1571, %v716, 0.0
  %v1699 = vadd.f32 %v1697, %v1698
  %v1700 = vsel %vm1571, %v718, 0.0
  %v1701 = vadd.f32 %v1699, %v1700
  %v1702 = vsel %vm1571, %v721, 0.0
  %v1703 = vadd.f32 %v1701, %v1702
  %v1704 = vsel %vm1571, %v723, 0.0
  %v1705 = vadd.f32 %v1703, %v1704
  %v1706 = vsel %vm1571, %v726, 0.0
  %v1707 = vadd.f32 %v1705, %v1706
  %v1708 = vsel %vm1571, %v728, 0.0
  %v1709 = vadd.f32 %v1707, %v1708
  %v1710 = vsel %vm1571, %v731, 0.0
  %v1711 = vadd.f32 %v1709, %v1710
  %v1712 = vsel %vm1571, %v733, 0.0
  %v1713 = vadd.f32 %v1711, %v1712
  %v1714 = vsel %vm1571, %v736, 0.0
  %v1715 = vadd.f32 %v1713, %v1714
  %v1716 = vsel %vm1571, %v738, 0.0
  %v1717 = vadd.f32 %v1715, %v1716
  %v1718 = vsel %vm1571, %v741, 0.0
  %v1719 = vadd.f32 %v1717, %v1718
  %v1720 = vsel %vm1571, %v743, 0.0
  %v1721 = vadd.f32 %v1719, %v1720
  %v1722 = vsel %vm1571, %v746, 0.0
  %v1723 = vadd.f32 %v1721, %v1722
  %v1724 = vsel %vm1571, %v748, 0.0
  %v1725 = vadd.f32 %v1723, %v1724
  %v1726 = vsel %vm1571, %v751, 0.0
  %v1727 = vadd.f32 %v1725, %v1726
  %v1728 = vsel %vm1571, %v753, 0.0
  %v1729 = vadd.f32 %v1727, %v1728
  %v1730 = vsel %vm1571, %v756, 0.0
  %v1731 = vadd.f32 %v1729, %v1730
  %v1732 = vsel %vm1571, %v758, 0.0
  %v1733 = vadd.f32 %v1731, %v1732
  %v1734 = vsel %vm1571, %v761, 0.0
  %v1735 = vadd.f32 %v1733, %v1734
  %v1736 = vsel %vm1571, %v763, 0.0
  %v1737 = vadd.f32 %v1735, %v1736
  %v1738 = vsel %vm1571, %v766, 0.0
  %v1739 = vadd.f32 %v1737, %v1738
  %v1740 = vsel %vm1571, %v768, 0.0
  %v1741 = vadd.f32 %v1739, %v1740
  %v1742 = vsel %vm1571, %v771, 0.0
  %v1743 = vadd.f32 %v1741, %v1742
  %v1744 = vsel %vm1571, %v773, 0.0
  %v1745 = vadd.f32 %v1743, %v1744
  %v1746 = vsel %vm1571, %v776, 0.0
  %v1747 = vadd.f32 %v1745, %v1746
  %v1748 = vsel %vm1571, %v778, 0.0
  %v1749 = vadd.f32 %v1747, %v1748
  %v1750 = vsel %vm1571, %v781, 0.0
  %v1751 = vadd.f32 %v1749, %v1750
  %v1752 = vsel %vm1571, %v783, 0.0
  %v1753 = vadd.f32 %v1751, %v1752
  %v1754 = vsel %vm1571, %v786, 0.0
  %v1755 = vadd.f32 %v1753, %v1754
  %v1756 = vsel %vm1571, %v788, 0.0
  %v1757 = vadd.f32 %v1755, %v1756
  %v1758 = vsel %vm1571, %v791, 0.0
  %v1759 = vadd.f32 %v1757, %v1758
  %v1760 = vsel %vm1571, %v793, 0.0
  %v1761 = vadd.f32 %v1759, %v1760
  %v1762 = vsel %vm1571, %v796, 0.0
  %v1763 = vadd.f32 %v1761, %v1762
  %v1764 = vsel %vm1571, %v798, 0.0
  %v1765 = vadd.f32 %v1763, %v1764
  %v1766 = vsel %vm1571, %v801, 0.0
  %v1767 = vadd.f32 %v1765, %v1766
  %v1768 = vsel %vm1571, %v803, 0.0
  %v1769 = vadd.f32 %v1767, %v1768
  %v1770 = vsel %vm1571, %v806, 0.0
  %v1771 = vadd.f32 %v1769, %v1770
  %v1772 = vrot.slane %v1771, 4
  %v1773 = vadd.f32 %v1771, %v1772
  %v1774 = vrot.slane %v1773, 2
  %v1775 = vadd.f32 %v1773, %v1774
  %v1776 = vrot.slane %v1775, 1
  %v1777 = vadd.f32 %v1775, %v1776
  %v1778 = vadd.f32 %v1674, %v1777
  %v1779 = vsel %vm1571, %v1067, 0.0
  %v1780 = vsel %vm1571, %v1069, 0.0
  %v1781 = vadd.f32 %v1779, %v1780
  %v1782 = vsel %vm1571, %v1072, 0.0
  %v1783 = vadd.f32 %v1781, %v1782
  %v1784 = vsel %vm1571, %v1074, 0.0
  %v1785 = vadd.f32 %v1783, %v1784
  %v1786 = vsel %vm1571, %v1077, 0.0
  %v1787 = vadd.f32 %v1785, %v1786
  %v1788 = vsel %vm1571, %v1079, 0.0
  %v1789 = vadd.f32 %v1787, %v1788
  %v1790 = vsel %vm1571, %v1082, 0.0
  %v1791 = vadd.f32 %v1789, %v1790
  %v1792 = vsel %vm1571, %v1084, 0.0
  %v1793 = vadd.f32 %v1791, %v1792
  %v1794 = vsel %vm1571, %v1087, 0.0
  %v1795 = vadd.f32 %v1793, %v1794
  %v1796 = vsel %vm1571, %v1089, 0.0
  %v1797 = vadd.f32 %v1795, %v1796
  %v1798 = vsel %vm1571, %v1092, 0.0
  %v1799 = vadd.f32 %v1797, %v1798
  %v1800 = vsel %vm1571, %v1094, 0.0
  %v1801 = vadd.f32 %v1799, %v1800
  %v1802 = vsel %vm1571, %v1097, 0.0
  %v1803 = vadd.f32 %v1801, %v1802
  %v1804 = vsel %vm1571, %v1099, 0.0
  %v1805 = vadd.f32 %v1803, %v1804
  %v1806 = vsel %vm1571, %v1102, 0.0
  %v1807 = vadd.f32 %v1805, %v1806
  %v1808 = vsel %vm1571, %v1104, 0.0
  %v1809 = vadd.f32 %v1807, %v1808
  %v1810 = vsel %vm1571, %v1107, 0.0
  %v1811 = vadd.f32 %v1809, %v1810
  %v1812 = vsel %vm1571, %v1109, 0.0
  %v1813 = vadd.f32 %v1811, %v1812
  %v1814 = vsel %vm1571, %v1112, 0.0
  %v1815 = vadd.f32 %v1813, %v1814
  %v1816 = vsel %vm1571, %v1114, 0.0
  %v1817 = vadd.f32 %v1815, %v1816
  %v1818 = vsel %vm1571, %v1117, 0.0
  %v1819 = vadd.f32 %v1817, %v1818
  %v1820 = vsel %vm1571, %v1119, 0.0
  %v1821 = vadd.f32 %v1819, %v1820
  %v1822 = vsel %vm1571, %v1122, 0.0
  %v1823 = vadd.f32 %v1821, %v1822
  %v1824 = vsel %vm1571, %v1124, 0.0
  %v1825 = vadd.f32 %v1823, %v1824
  %v1826 = vsel %vm1571, %v1127, 0.0
  %v1827 = vadd.f32 %v1825, %v1826
  %v1828 = vsel %vm1571, %v1129, 0.0
  %v1829 = vadd.f32 %v1827, %v1828
  %v1830 = vsel %vm1571, %v1132, 0.0
  %v1831 = vadd.f32 %v1829, %v1830
  %v1832 = vsel %vm1571, %v1134, 0.0
  %v1833 = vadd.f32 %v1831, %v1832
  %v1834 = vsel %vm1571, %v1137, 0.0
  %v1835 = vadd.f32 %v1833, %v1834
  %v1836 = vsel %vm1571, %v1139, 0.0
  %v1837 = vadd.f32 %v1835, %v1836
  %v1838 = vsel %vm1571, %v1142, 0.0
  %v1839 = vadd.f32 %v1837, %v1838
  %v1840 = vsel %vm1571, %v1144, 0.0
  %v1841 = vadd.f32 %v1839, %v1840
  %v1842 = vsel %vm1571, %v1147, 0.0
  %v1843 = vadd.f32 %v1841, %v1842
  %v1844 = vsel %vm1571, %v1149, 0.0
  %v1845 = vadd.f32 %v1843, %v1844
  %v1846 = vsel %vm1571, %v1152, 0.0
  %v1847 = vadd.f32 %v1845, %v1846
  %v1848 = vsel %vm1571, %v1154, 0.0
  %v1849 = vadd.f32 %v1847, %v1848
  %v1850 = vsel %vm1571, %v1157, 0.0
  %v1851 = vadd.f32 %v1849, %v1850
  %v1852 = vsel %vm1571, %v1159, 0.0
  %v1853 = vadd.f32 %v1851, %v1852
  %v1854 = vsel %vm1571, %v1162, 0.0
  %v1855 = vadd.f32 %v1853, %v1854
  %v1856 = vsel %vm1571, %v1164, 0.0
  %v1857 = vadd.f32 %v1855, %v1856
  %v1858 = vsel %vm1571, %v1167, 0.0
  %v1859 = vadd.f32 %v1857, %v1858
  %v1860 = vsel %vm1571, %v1169, 0.0
  %v1861 = vadd.f32 %v1859, %v1860
  %v1862 = vsel %vm1571, %v1172, 0.0
  %v1863 = vadd.f32 %v1861, %v1862
  %v1864 = vsel %vm1571, %v1174, 0.0
  %v1865 = vadd.f32 %v1863, %v1864
  %v1866 = vsel %vm1571, %v1177, 0.0
  %v1867 = vadd.f32 %v1865, %v1866
  %v1868 = vsel %vm1571, %v1179, 0.0
  %v1869 = vadd.f32 %v1867, %v1868
  %v1870 = vsel %vm1571, %v1182, 0.0
  %v1871 = vadd.f32 %v1869, %v1870
  %v1872 = vsel %vm1571, %v1184, 0.0
  %v1873 = vadd.f32 %v1871, %v1872
  %v1874 = vsel %vm1571, %v1187, 0.0
  %v1875 = vadd.f32 %v1873, %v1874
  %v1876 = vrot.slane %v1875, 4
  %v1877 = vadd.f32 %v1875, %v1876
  %v1878 = vrot.slane %v1877, 2
  %v1879 = vadd.f32 %v1877, %v1878
  %v1880 = vrot.slane %v1879, 1
  %v1881 = vadd.f32 %v1879, %v1880
  %v1882 = vadd.f32 %v1778, %v1881
  %v1883 = vsel %vm1571, %v1448, 0.0
  %v1884 = vsel %vm1571, %v1450, 0.0
  %v1885 = vadd.f32 %v1883, %v1884
  %v1886 = vsel %vm1571, %v1453, 0.0
  %v1887 = vadd.f32 %v1885, %v1886
  %v1888 = vsel %vm1571, %v1455, 0.0
  %v1889 = vadd.f32 %v1887, %v1888
  %v1890 = vsel %vm1571, %v1458, 0.0
  %v1891 = vadd.f32 %v1889, %v1890
  %v1892 = vsel %vm1571, %v1460, 0.0
  %v1893 = vadd.f32 %v1891, %v1892
  %v1894 = vsel %vm1571, %v1463, 0.0
  %v1895 = vadd.f32 %v1893, %v1894
  %v1896 = vsel %vm1571, %v1465, 0.0
  %v1897 = vadd.f32 %v1895, %v1896
  %v1898 = vsel %vm1571, %v1468, 0.0
  %v1899 = vadd.f32 %v1897, %v1898
  %v1900 = vsel %vm1571, %v1470, 0.0
  %v1901 = vadd.f32 %v1899, %v1900
  %v1902 = vsel %vm1571, %v1473, 0.0
  %v1903 = vadd.f32 %v1901, %v1902
  %v1904 = vsel %vm1571, %v1475, 0.0
  %v1905 = vadd.f32 %v1903, %v1904
  %v1906 = vsel %vm1571, %v1478, 0.0
  %v1907 = vadd.f32 %v1905, %v1906
  %v1908 = vsel %vm1571, %v1480, 0.0
  %v1909 = vadd.f32 %v1907, %v1908
  %v1910 = vsel %vm1571, %v1483, 0.0
  %v1911 = vadd.f32 %v1909, %v1910
  %v1912 = vsel %vm1571, %v1485, 0.0
  %v1913 = vadd.f32 %v1911, %v1912
  %v1914 = vsel %vm1571, %v1488, 0.0
  %v1915 = vadd.f32 %v1913, %v1914
  %v1916 = vsel %vm1571, %v1490, 0.0
  %v1917 = vadd.f32 %v1915, %v1916
  %v1918 = vsel %vm1571, %v1493, 0.0
  %v1919 = vadd.f32 %v1917, %v1918
  %v1920 = vsel %vm1571, %v1495, 0.0
  %v1921 = vadd.f32 %v1919, %v1920
  %v1922 = vsel %vm1571, %v1498, 0.0
  %v1923 = vadd.f32 %v1921, %v1922
  %v1924 = vsel %vm1571, %v1500, 0.0
  %v1925 = vadd.f32 %v1923, %v1924
  %v1926 = vsel %vm1571, %v1503, 0.0
  %v1927 = vadd.f32 %v1925, %v1926
  %v1928 = vsel %vm1571, %v1505, 0.0
  %v1929 = vadd.f32 %v1927, %v1928
  %v1930 = vsel %vm1571, %v1508, 0.0
  %v1931 = vadd.f32 %v1929, %v1930
  %v1932 = vsel %vm1571, %v1510, 0.0
  %v1933 = vadd.f32 %v1931, %v1932
  %v1934 = vsel %vm1571, %v1513, 0.0
  %v1935 = vadd.f32 %v1933, %v1934
  %v1936 = vsel %vm1571, %v1515, 0.0
  %v1937 = vadd.f32 %v1935, %v1936
  %v1938 = vsel %vm1571, %v1518, 0.0
  %v1939 = vadd.f32 %v1937, %v1938
  %v1940 = vsel %vm1571, %v1520, 0.0
  %v1941 = vadd.f32 %v1939, %v1940
  %v1942 = vsel %vm1571, %v1523, 0.0
  %v1943 = vadd.f32 %v1941, %v1942
  %v1944 = vsel %vm1571, %v1525, 0.0
  %v1945 = vadd.f32 %v1943, %v1944
  %v1946 = vsel %vm1571, %v1528, 0.0
  %v1947 = vadd.f32 %v1945, %v1946
  %v1948 = vsel %vm1571, %v1530, 0.0
  %v1949 = vadd.f32 %v1947, %v1948
  %v1950 = vsel %vm1571, %v1533, 0.0
  %v1951 = vadd.f32 %v1949, %v1950
  %v1952 = vsel %vm1571, %v1535, 0.0
  %v1953 = vadd.f32 %v1951, %v1952
  %v1954 = vsel %vm1571, %v1538, 0.0
  %v1955 = vadd.f32 %v1953, %v1954
  %v1956 = vsel %vm1571, %v1540, 0.0
  %v1957 = vadd.f32 %v1955, %v1956
  %v1958 = vsel %vm1571, %v1543, 0.0
  %v1959 = vadd.f32 %v1957, %v1958
  %v1960 = vsel %vm1571, %v1545, 0.0
  %v1961 = vadd.f32 %v1959, %v1960
  %v1962 = vsel %vm1571, %v1548, 0.0
  %v1963 = vadd.f32 %v1961, %v1962
  %v1964 = vsel %vm1571, %v1550, 0.0
  %v1965 = vadd.f32 %v1963, %v1964
  %v1966 = vsel %vm1571, %v1553, 0.0
  %v1967 = vadd.f32 %v1965, %v1966
  %v1968 = vsel %vm1571, %v1555, 0.0
  %v1969 = vadd.f32 %v1967, %v1968
  %v1970 = vsel %vm1571, %v1558, 0.0
  %v1971 = vadd.f32 %v1969, %v1970
  %v1972 = vsel %vm1571, %v1560, 0.0
  %v1973 = vadd.f32 %v1971, %v1972
  %v1974 = vsel %vm1571, %v1563, 0.0
  %v1975 = vadd.f32 %v1973, %v1974
  %v1976 = vsel %vm1571, %v1565, 0.0
  %v1977 = vadd.f32 %v1975, %v1976
  %v1978 = vsel %vm1571, %v1568, 0.0
  %v1979 = vadd.f32 %v1977, %v1978
  %v1980 = vrot.slane %v1979, 4
  %v1981 = vadd.f32 %v1979, %v1980
  %v1982 = vrot.slane %v1981, 2
  %v1983 = vadd.f32 %v1981, %v1982
  %v1984 = vrot.slane %v1983, 1
  %v1985 = vadd.f32 %v1983, %v1984
  %v1986 = vadd.f32 %v1882, %v1985
  %v1987 = vmul.f32 %v1986, 0.0006377551
  %v1988 = vsub.f32 %v305, %v1987
  %v1989 = vsub.f32 %v307, %v1987
  %v1990 = vsub.f32 %v310, %v1987
  %v1991 = vsub.f32 %v312, %v1987
  %v1992 = vsub.f32 %v315, %v1987
  %v1993 = vsub.f32 %v317, %v1987
  %v1994 = vsub.f32 %v320, %v1987
  %v1995 = vsub.f32 %v322, %v1987
  %v1996 = vsub.f32 %v325, %v1987
  %v1997 = vsub.f32 %v327, %v1987
  %v1998 = vsub.f32 %v330, %v1987
  %v1999 = vsub.f32 %v332, %v1987
  %v2000 = vsub.f32 %v335, %v1987
  %v2001 = vsub.f32 %v337, %v1987
  %v2002 = vsub.f32 %v340, %v1987
  %v2003 = vsub.f32 %v342, %v1987
  %v2004 = vsub.f32 %v345, %v1987
  %v2005 = vsub.f32 %v347, %v1987
  %v2006 = vsub.f32 %v350, %v1987
  %v2007 = vsub.f32 %v352, %v1987
  %v2008 = vsub.f32 %v355, %v1987
  %v2009 = vsub.f32 %v357, %v1987
  %v2010 = vsub.f32 %v360, %v1987
  %v2011 = vsub.f32 %v362, %v1987
  %v2012 = vsub.f32 %v365, %v1987
  %v2013 = vsub.f32 %v367, %v1987
  %v2014 = vsub.f32 %v370, %v1987
  %v2015 = vsub.f32 %v372, %v1987
  %v2016 = vsub.f32 %v375, %v1987
  %v2017 = vsub.f32 %v377, %v1987
  %v2018 = vsub.f32 %v380, %v1987
  %v2019 = vsub.f32 %v382, %v1987
  %v2020 = vsub.f32 %v385, %v1987
  %v2021 = vsub.f32 %v387, %v1987
  %v2022 = vsub.f32 %v390, %v1987
  %v2023 = vsub.f32 %v392, %v1987
  %v2024 = vsub.f32 %v395, %v1987
  %v2025 = vsub.f32 %v397, %v1987
  %v2026 = vsub.f32 %v400, %v1987
  %v2027 = vsub.f32 %v402, %v1987
  %v2028 = vsub.f32 %v405, %v1987
  %v2029 = vsub.f32 %v407, %v1987
  %v2030 = vsub.f32 %v410, %v1987
  %v2031 = vsub.f32 %v412, %v1987
  %v2032 = vsub.f32 %v415, %v1987
  %v2033 = vsub.f32 %v417, %v1987
  %v2034 = vsub.f32 %v420, %v1987
  %v2035 = vsub.f32 %v422, %v1987
  %v2036 = vsub.f32 %v425, %v1987
  %v2037 = vmul.f32 %v1988, %v1988
  %v2038 = vmul.f32 %v1989, %v1989
  %v2039 = vmul.f32 %v1990, %v1990
  %v2040 = vmul.f32 %v1991, %v1991
  %v2041 = vmul.f32 %v1992, %v1992
  %v2042 = vmul.f32 %v1993, %v1993
  %v2043 = vmul.f32 %v1994, %v1994
  %v2044 = vmul.f32 %v1995, %v1995
  %v2045 = vmul.f32 %v1996, %v1996
  %v2046 = vmul.f32 %v1997, %v1997
  %v2047 = vmul.f32 %v1998, %v1998
  %v2048 = vmul.f32 %v1999, %v1999
  %v2049 = vmul.f32 %v2000, %v2000
  %v2050 = vmul.f32 %v2001, %v2001
  %v2051 = vmul.f32 %v2002, %v2002
  %v2052 = vmul.f32 %v2003, %v2003
  %v2053 = vmul.f32 %v2004, %v2004
  %v2054 = vmul.f32 %v2005, %v2005
  %v2055 = vmul.f32 %v2006, %v2006
  %v2056 = vmul.f32 %v2007, %v2007
  %v2057 = vmul.f32 %v2008, %v2008
  %v2058 = vmul.f32 %v2009, %v2009
  %v2059 = vmul.f32 %v2010, %v2010
  %v2060 = vmul.f32 %v2011, %v2011
  %v2061 = vmul.f32 %v2012, %v2012
  %v2062 = vmul.f32 %v2013, %v2013
  %v2063 = vmul.f32 %v2014, %v2014
  %v2064 = vmul.f32 %v2015, %v2015
  %v2065 = vmul.f32 %v2016, %v2016
  %v2066 = vmul.f32 %v2017, %v2017
  %v2067 = vmul.f32 %v2018, %v2018
  %v2068 = vmul.f32 %v2019, %v2019
  %v2069 = vmul.f32 %v2020, %v2020
  %v2070 = vmul.f32 %v2021, %v2021
  %v2071 = vmul.f32 %v2022, %v2022
  %v2072 = vmul.f32 %v2023, %v2023
  %v2073 = vmul.f32 %v2024, %v2024
  %v2074 = vmul.f32 %v2025, %v2025
  %v2075 = vmul.f32 %v2026, %v2026
  %v2076 = vmul.f32 %v2027, %v2027
  %v2077 = vmul.f32 %v2028, %v2028
  %v2078 = vmul.f32 %v2029, %v2029
  %v2079 = vmul.f32 %v2030, %v2030
  %v2080 = vmul.f32 %v2031, %v2031
  %v2081 = vmul.f32 %v2032, %v2032
  %v2082 = vmul.f32 %v2033, %v2033
  %v2083 = vmul.f32 %v2034, %v2034
  %v2084 = vmul.f32 %v2035, %v2035
  %v2085 = vmul.f32 %v2036, %v2036
  %v2086 = vsel %vm1571, %v2037, 0.0
  %v2087 = vsel %vm1571, %v2038, 0.0
  %v2088 = vadd.f32 %v2086, %v2087
  %v2089 = vsel %vm1571, %v2039, 0.0
  %v2090 = vadd.f32 %v2088, %v2089
  %v2091 = vsel %vm1571, %v2040, 0.0
  %v2092 = vadd.f32 %v2090, %v2091
  %v2093 = vsel %vm1571, %v2041, 0.0
  %v2094 = vadd.f32 %v2092, %v2093
  %v2095 = vsel %vm1571, %v2042, 0.0
  %v2096 = vadd.f32 %v2094, %v2095
  %v2097 = vsel %vm1571, %v2043, 0.0
  %v2098 = vadd.f32 %v2096, %v2097
  %v2099 = vsel %vm1571, %v2044, 0.0
  %v2100 = vadd.f32 %v2098, %v2099
  %v2101 = vsel %vm1571, %v2045, 0.0
  %v2102 = vadd.f32 %v2100, %v2101
  %v2103 = vsel %vm1571, %v2046, 0.0
  %v2104 = vadd.f32 %v2102, %v2103
  %v2105 = vsel %vm1571, %v2047, 0.0
  %v2106 = vadd.f32 %v2104, %v2105
  %v2107 = vsel %vm1571, %v2048, 0.0
  %v2108 = vadd.f32 %v2106, %v2107
  %v2109 = vsel %vm1571, %v2049, 0.0
  %v2110 = vadd.f32 %v2108, %v2109
  %v2111 = vsel %vm1571, %v2050, 0.0
  %v2112 = vadd.f32 %v2110, %v2111
  %v2113 = vsel %vm1571, %v2051, 0.0
  %v2114 = vadd.f32 %v2112, %v2113
  %v2115 = vsel %vm1571, %v2052, 0.0
  %v2116 = vadd.f32 %v2114, %v2115
  %v2117 = vsel %vm1571, %v2053, 0.0
  %v2118 = vadd.f32 %v2116, %v2117
  %v2119 = vsel %vm1571, %v2054, 0.0
  %v2120 = vadd.f32 %v2118, %v2119
  %v2121 = vsel %vm1571, %v2055, 0.0
  %v2122 = vadd.f32 %v2120, %v2121
  %v2123 = vsel %vm1571, %v2056, 0.0
  %v2124 = vadd.f32 %v2122, %v2123
  %v2125 = vsel %vm1571, %v2057, 0.0
  %v2126 = vadd.f32 %v2124, %v2125
  %v2127 = vsel %vm1571, %v2058, 0.0
  %v2128 = vadd.f32 %v2126, %v2127
  %v2129 = vsel %vm1571, %v2059, 0.0
  %v2130 = vadd.f32 %v2128, %v2129
  %v2131 = vsel %vm1571, %v2060, 0.0
  %v2132 = vadd.f32 %v2130, %v2131
  %v2133 = vsel %vm1571, %v2061, 0.0
  %v2134 = vadd.f32 %v2132, %v2133
  %v2135 = vsel %vm1571, %v2062, 0.0
  %v2136 = vadd.f32 %v2134, %v2135
  %v2137 = vsel %vm1571, %v2063, 0.0
  %v2138 = vadd.f32 %v2136, %v2137
  %v2139 = vsel %vm1571, %v2064, 0.0
  %v2140 = vadd.f32 %v2138, %v2139
  %v2141 = vsel %vm1571, %v2065, 0.0
  %v2142 = vadd.f32 %v2140, %v2141
  %v2143 = vsel %vm1571, %v2066, 0.0
  %v2144 = vadd.f32 %v2142, %v2143
  %v2145 = vsel %vm1571, %v2067, 0.0
  %v2146 = vadd.f32 %v2144, %v2145
  %v2147 = vsel %vm1571, %v2068, 0.0
  %v2148 = vadd.f32 %v2146, %v2147
  %v2149 = vsel %vm1571, %v2069, 0.0
  %v2150 = vadd.f32 %v2148, %v2149
  %v2151 = vsel %vm1571, %v2070, 0.0
  %v2152 = vadd.f32 %v2150, %v2151
  %v2153 = vsel %vm1571, %v2071, 0.0
  %v2154 = vadd.f32 %v2152, %v2153
  %v2155 = vsel %vm1571, %v2072, 0.0
  %v2156 = vadd.f32 %v2154, %v2155
  %v2157 = vsel %vm1571, %v2073, 0.0
  %v2158 = vadd.f32 %v2156, %v2157
  %v2159 = vsel %vm1571, %v2074, 0.0
  %v2160 = vadd.f32 %v2158, %v2159
  %v2161 = vsel %vm1571, %v2075, 0.0
  %v2162 = vadd.f32 %v2160, %v2161
  %v2163 = vsel %vm1571, %v2076, 0.0
  %v2164 = vadd.f32 %v2162, %v2163
  %v2165 = vsel %vm1571, %v2077, 0.0
  %v2166 = vadd.f32 %v2164, %v2165
  %v2167 = vsel %vm1571, %v2078, 0.0
  %v2168 = vadd.f32 %v2166, %v2167
  %v2169 = vsel %vm1571, %v2079, 0.0
  %v2170 = vadd.f32 %v2168, %v2169
  %v2171 = vsel %vm1571, %v2080, 0.0
  %v2172 = vadd.f32 %v2170, %v2171
  %v2173 = vsel %vm1571, %v2081, 0.0
  %v2174 = vadd.f32 %v2172, %v2173
  %v2175 = vsel %vm1571, %v2082, 0.0
  %v2176 = vadd.f32 %v2174, %v2175
  %v2177 = vsel %vm1571, %v2083, 0.0
  %v2178 = vadd.f32 %v2176, %v2177
  %v2179 = vsel %vm1571, %v2084, 0.0
  %v2180 = vadd.f32 %v2178, %v2179
  %v2181 = vsel %vm1571, %v2085, 0.0
  %v2182 = vadd.f32 %v2180, %v2181
  %v2183 = vrot.slane %v2182, 4
  %v2184 = vadd.f32 %v2182, %v2183
  %v2185 = vrot.slane %v2184, 2
  %v2186 = vadd.f32 %v2184, %v2185
  %v2187 = vrot.slane %v2186, 1
  %v2188 = vadd.f32 %v2186, %v2187
  %v2189 = vsub.f32 %v686, %v1987
  %v2190 = vsub.f32 %v688, %v1987
  %v2191 = vsub.f32 %v691, %v1987
  %v2192 = vsub.f32 %v693, %v1987
  %v2193 = vsub.f32 %v696, %v1987
  %v2194 = vsub.f32 %v698, %v1987
  %v2195 = vsub.f32 %v701, %v1987
  %v2196 = vsub.f32 %v703, %v1987
  %v2197 = vsub.f32 %v706, %v1987
  %v2198 = vsub.f32 %v708, %v1987
  %v2199 = vsub.f32 %v711, %v1987
  %v2200 = vsub.f32 %v713, %v1987
  %v2201 = vsub.f32 %v716, %v1987
  %v2202 = vsub.f32 %v718, %v1987
  %v2203 = vsub.f32 %v721, %v1987
  %v2204 = vsub.f32 %v723, %v1987
  %v2205 = vsub.f32 %v726, %v1987
  %v2206 = vsub.f32 %v728, %v1987
  %v2207 = vsub.f32 %v731, %v1987
  %v2208 = vsub.f32 %v733, %v1987
  %v2209 = vsub.f32 %v736, %v1987
  %v2210 = vsub.f32 %v738, %v1987
  %v2211 = vsub.f32 %v741, %v1987
  %v2212 = vsub.f32 %v743, %v1987
  %v2213 = vsub.f32 %v746, %v1987
  %v2214 = vsub.f32 %v748, %v1987
  %v2215 = vsub.f32 %v751, %v1987
  %v2216 = vsub.f32 %v753, %v1987
  %v2217 = vsub.f32 %v756, %v1987
  %v2218 = vsub.f32 %v758, %v1987
  %v2219 = vsub.f32 %v761, %v1987
  %v2220 = vsub.f32 %v763, %v1987
  %v2221 = vsub.f32 %v766, %v1987
  %v2222 = vsub.f32 %v768, %v1987
  %v2223 = vsub.f32 %v771, %v1987
  %v2224 = vsub.f32 %v773, %v1987
  %v2225 = vsub.f32 %v776, %v1987
  %v2226 = vsub.f32 %v778, %v1987
  %v2227 = vsub.f32 %v781, %v1987
  %v2228 = vsub.f32 %v783, %v1987
  %v2229 = vsub.f32 %v786, %v1987
  %v2230 = vsub.f32 %v788, %v1987
  %v2231 = vsub.f32 %v791, %v1987
  %v2232 = vsub.f32 %v793, %v1987
  %v2233 = vsub.f32 %v796, %v1987
  %v2234 = vsub.f32 %v798, %v1987
  %v2235 = vsub.f32 %v801, %v1987
  %v2236 = vsub.f32 %v803, %v1987
  %v2237 = vsub.f32 %v806, %v1987
  %v2238 = vmul.f32 %v2189, %v2189
  %v2239 = vmul.f32 %v2190, %v2190
  %v2240 = vmul.f32 %v2191, %v2191
  %v2241 = vmul.f32 %v2192, %v2192
  %v2242 = vmul.f32 %v2193, %v2193
  %v2243 = vmul.f32 %v2194, %v2194
  %v2244 = vmul.f32 %v2195, %v2195
  %v2245 = vmul.f32 %v2196, %v2196
  %v2246 = vmul.f32 %v2197, %v2197
  %v2247 = vmul.f32 %v2198, %v2198
  %v2248 = vmul.f32 %v2199, %v2199
  %v2249 = vmul.f32 %v2200, %v2200
  %v2250 = vmul.f32 %v2201, %v2201
  %v2251 = vmul.f32 %v2202, %v2202
  %v2252 = vmul.f32 %v2203, %v2203
  %v2253 = vmul.f32 %v2204, %v2204
  %v2254 = vmul.f32 %v2205, %v2205
  %v2255 = vmul.f32 %v2206, %v2206
  %v2256 = vmul.f32 %v2207, %v2207
  %v2257 = vmul.f32 %v2208, %v2208
  %v2258 = vmul.f32 %v2209, %v2209
  %v2259 = vmul.f32 %v2210, %v2210
  %v2260 = vmul.f32 %v2211, %v2211
  %v2261 = vmul.f32 %v2212, %v2212
  %v2262 = vmul.f32 %v2213, %v2213
  %v2263 = vmul.f32 %v2214, %v2214
  %v2264 = vmul.f32 %v2215, %v2215
  %v2265 = vmul.f32 %v2216, %v2216
  %v2266 = vmul.f32 %v2217, %v2217
  %v2267 = vmul.f32 %v2218, %v2218
  %v2268 = vmul.f32 %v2219, %v2219
  %v2269 = vmul.f32 %v2220, %v2220
  %v2270 = vmul.f32 %v2221, %v2221
  %v2271 = vmul.f32 %v2222, %v2222
  %v2272 = vmul.f32 %v2223, %v2223
  %v2273 = vmul.f32 %v2224, %v2224
  %v2274 = vmul.f32 %v2225, %v2225
  %v2275 = vmul.f32 %v2226, %v2226
  %v2276 = vmul.f32 %v2227, %v2227
  %v2277 = vmul.f32 %v2228, %v2228
  %v2278 = vmul.f32 %v2229, %v2229
  %v2279 = vmul.f32 %v2230, %v2230
  %v2280 = vmul.f32 %v2231, %v2231
  %v2281 = vmul.f32 %v2232, %v2232
  %v2282 = vmul.f32 %v2233, %v2233
  %v2283 = vmul.f32 %v2234, %v2234
  %v2284 = vmul.f32 %v2235, %v2235
  %v2285 = vmul.f32 %v2236, %v2236
  %v2286 = vmul.f32 %v2237, %v2237
  %v2287 = vsel %vm1571, %v2238, 0.0
  %v2288 = vsel %vm1571, %v2239, 0.0
  %v2289 = vadd.f32 %v2287, %v2288
  %v2290 = vsel %vm1571, %v2240, 0.0
  %v2291 = vadd.f32 %v2289, %v2290
  %v2292 = vsel %vm1571, %v2241, 0.0
  %v2293 = vadd.f32 %v2291, %v2292
  %v2294 = vsel %vm1571, %v2242, 0.0
  %v2295 = vadd.f32 %v2293, %v2294
  %v2296 = vsel %vm1571, %v2243, 0.0
  %v2297 = vadd.f32 %v2295, %v2296
  %v2298 = vsel %vm1571, %v2244, 0.0
  %v2299 = vadd.f32 %v2297, %v2298
  %v2300 = vsel %vm1571, %v2245, 0.0
  %v2301 = vadd.f32 %v2299, %v2300
  %v2302 = vsel %vm1571, %v2246, 0.0
  %v2303 = vadd.f32 %v2301, %v2302
  %v2304 = vsel %vm1571, %v2247, 0.0
  %v2305 = vadd.f32 %v2303, %v2304
  %v2306 = vsel %vm1571, %v2248, 0.0
  %v2307 = vadd.f32 %v2305, %v2306
  %v2308 = vsel %vm1571, %v2249, 0.0
  %v2309 = vadd.f32 %v2307, %v2308
  %v2310 = vsel %vm1571, %v2250, 0.0
  %v2311 = vadd.f32 %v2309, %v2310
  %v2312 = vsel %vm1571, %v2251, 0.0
  %v2313 = vadd.f32 %v2311, %v2312
  %v2314 = vsel %vm1571, %v2252, 0.0
  %v2315 = vadd.f32 %v2313, %v2314
  %v2316 = vsel %vm1571, %v2253, 0.0
  %v2317 = vadd.f32 %v2315, %v2316
  %v2318 = vsel %vm1571, %v2254, 0.0
  %v2319 = vadd.f32 %v2317, %v2318
  %v2320 = vsel %vm1571, %v2255, 0.0
  %v2321 = vadd.f32 %v2319, %v2320
  %v2322 = vsel %vm1571, %v2256, 0.0
  %v2323 = vadd.f32 %v2321, %v2322
  %v2324 = vsel %vm1571, %v2257, 0.0
  %v2325 = vadd.f32 %v2323, %v2324
  %v2326 = vsel %vm1571, %v2258, 0.0
  %v2327 = vadd.f32 %v2325, %v2326
  %v2328 = vsel %vm1571, %v2259, 0.0
  %v2329 = vadd.f32 %v2327, %v2328
  %v2330 = vsel %vm1571, %v2260, 0.0
  %v2331 = vadd.f32 %v2329, %v2330
  %v2332 = vsel %vm1571, %v2261, 0.0
  %v2333 = vadd.f32 %v2331, %v2332
  %v2334 = vsel %vm1571, %v2262, 0.0
  %v2335 = vadd.f32 %v2333, %v2334
  %v2336 = vsel %vm1571, %v2263, 0.0
  %v2337 = vadd.f32 %v2335, %v2336
  %v2338 = vsel %vm1571, %v2264, 0.0
  %v2339 = vadd.f32 %v2337, %v2338
  %v2340 = vsel %vm1571, %v2265, 0.0
  %v2341 = vadd.f32 %v2339, %v2340
  %v2342 = vsel %vm1571, %v2266, 0.0
  %v2343 = vadd.f32 %v2341, %v2342
  %v2344 = vsel %vm1571, %v2267, 0.0
  %v2345 = vadd.f32 %v2343, %v2344
  %v2346 = vsel %vm1571, %v2268, 0.0
  %v2347 = vadd.f32 %v2345, %v2346
  %v2348 = vsel %vm1571, %v2269, 0.0
  %v2349 = vadd.f32 %v2347, %v2348
  %v2350 = vsel %vm1571, %v2270, 0.0
  %v2351 = vadd.f32 %v2349, %v2350
  %v2352 = vsel %vm1571, %v2271, 0.0
  %v2353 = vadd.f32 %v2351, %v2352
  %v2354 = vsel %vm1571, %v2272, 0.0
  %v2355 = vadd.f32 %v2353, %v2354
  %v2356 = vsel %vm1571, %v2273, 0.0
  %v2357 = vadd.f32 %v2355, %v2356
  %v2358 = vsel %vm1571, %v2274, 0.0
  %v2359 = vadd.f32 %v2357, %v2358
  %v2360 = vsel %vm1571, %v2275, 0.0
  %v2361 = vadd.f32 %v2359, %v2360
  %v2362 = vsel %vm1571, %v2276, 0.0
  %v2363 = vadd.f32 %v2361, %v2362
  %v2364 = vsel %vm1571, %v2277, 0.0
  %v2365 = vadd.f32 %v2363, %v2364
  %v2366 = vsel %vm1571, %v2278, 0.0
  %v2367 = vadd.f32 %v2365, %v2366
  %v2368 = vsel %vm1571, %v2279, 0.0
  %v2369 = vadd.f32 %v2367, %v2368
  %v2370 = vsel %vm1571, %v2280, 0.0
  %v2371 = vadd.f32 %v2369, %v2370
  %v2372 = vsel %vm1571, %v2281, 0.0
  %v2373 = vadd.f32 %v2371, %v2372
  %v2374 = vsel %vm1571, %v2282, 0.0
  %v2375 = vadd.f32 %v2373, %v2374
  %v2376 = vsel %vm1571, %v2283, 0.0
  %v2377 = vadd.f32 %v2375, %v2376
  %v2378 = vsel %vm1571, %v2284, 0.0
  %v2379 = vadd.f32 %v2377, %v2378
  %v2380 = vsel %vm1571, %v2285, 0.0
  %v2381 = vadd.f32 %v2379, %v2380
  %v2382 = vsel %vm1571, %v2286, 0.0
  %v2383 = vadd.f32 %v2381, %v2382
  %v2384 = vrot.slane %v2383, 4
  %v2385 = vadd.f32 %v2383, %v2384
  %v2386 = vrot.slane %v2385, 2
  %v2387 = vadd.f32 %v2385, %v2386
  %v2388 = vrot.slane %v2387, 1
  %v2389 = vadd.f32 %v2387, %v2388
  %v2390 = vadd.f32 %v2188, %v2389
  %v2391 = vsub.f32 %v1067, %v1987
  %v2392 = vsub.f32 %v1069, %v1987
  %v2393 = vsub.f32 %v1072, %v1987
  %v2394 = vsub.f32 %v1074, %v1987
  %v2395 = vsub.f32 %v1077, %v1987
  %v2396 = vsub.f32 %v1079, %v1987
  %v2397 = vsub.f32 %v1082, %v1987
  %v2398 = vsub.f32 %v1084, %v1987
  %v2399 = vsub.f32 %v1087, %v1987
  %v2400 = vsub.f32 %v1089, %v1987
  %v2401 = vsub.f32 %v1092, %v1987
  %v2402 = vsub.f32 %v1094, %v1987
  %v2403 = vsub.f32 %v1097, %v1987
  %v2404 = vsub.f32 %v1099, %v1987
  %v2405 = vsub.f32 %v1102, %v1987
  %v2406 = vsub.f32 %v1104, %v1987
  %v2407 = vsub.f32 %v1107, %v1987
  %v2408 = vsub.f32 %v1109, %v1987
  %v2409 = vsub.f32 %v1112, %v1987
  %v2410 = vsub.f32 %v1114, %v1987
  %v2411 = vsub.f32 %v1117, %v1987
  %v2412 = vsub.f32 %v1119, %v1987
  %v2413 = vsub.f32 %v1122, %v1987
  %v2414 = vsub.f32 %v1124, %v1987
  %v2415 = vsub.f32 %v1127, %v1987
  %v2416 = vsub.f32 %v1129, %v1987
  %v2417 = vsub.f32 %v1132, %v1987
  %v2418 = vsub.f32 %v1134, %v1987
  %v2419 = vsub.f32 %v1137, %v1987
  %v2420 = vsub.f32 %v1139, %v1987
  %v2421 = vsub.f32 %v1142, %v1987
  %v2422 = vsub.f32 %v1144, %v1987
  %v2423 = vsub.f32 %v1147, %v1987
  %v2424 = vsub.f32 %v1149, %v1987
  %v2425 = vsub.f32 %v1152, %v1987
  %v2426 = vsub.f32 %v1154, %v1987
  %v2427 = vsub.f32 %v1157, %v1987
  %v2428 = vsub.f32 %v1159, %v1987
  %v2429 = vsub.f32 %v1162, %v1987
  %v2430 = vsub.f32 %v1164, %v1987
  %v2431 = vsub.f32 %v1167, %v1987
  %v2432 = vsub.f32 %v1169, %v1987
  %v2433 = vsub.f32 %v1172, %v1987
  %v2434 = vsub.f32 %v1174, %v1987
  %v2435 = vsub.f32 %v1177, %v1987
  %v2436 = vsub.f32 %v1179, %v1987
  %v2437 = vsub.f32 %v1182, %v1987
  %v2438 = vsub.f32 %v1184, %v1987
  %v2439 = vsub.f32 %v1187, %v1987
  %v2440 = vmul.f32 %v2391, %v2391
  %v2441 = vmul.f32 %v2392, %v2392
  %v2442 = vmul.f32 %v2393, %v2393
  %v2443 = vmul.f32 %v2394, %v2394
  %v2444 = vmul.f32 %v2395, %v2395
  %v2445 = vmul.f32 %v2396, %v2396
  %v2446 = vmul.f32 %v2397, %v2397
  %v2447 = vmul.f32 %v2398, %v2398
  %v2448 = vmul.f32 %v2399, %v2399
  %v2449 = vmul.f32 %v2400, %v2400
  %v2450 = vmul.f32 %v2401, %v2401
  %v2451 = vmul.f32 %v2402, %v2402
  %v2452 = vmul.f32 %v2403, %v2403
  %v2453 = vmul.f32 %v2404, %v2404
  %v2454 = vmul.f32 %v2405, %v2405
  %v2455 = vmul.f32 %v2406, %v2406
  %v2456 = vmul.f32 %v2407, %v2407
  %v2457 = vmul.f32 %v2408, %v2408
  %v2458 = vmul.f32 %v2409, %v2409
  %v2459 = vmul.f32 %v2410, %v2410
  %v2460 = vmul.f32 %v2411, %v2411
  %v2461 = vmul.f32 %v2412, %v2412
  %v2462 = vmul.f32 %v2413, %v2413
  %v2463 = vmul.f32 %v2414, %v2414
  %v2464 = vmul.f32 %v2415, %v2415
  %v2465 = vmul.f32 %v2416, %v2416
  %v2466 = vmul.f32 %v2417, %v2417
  %v2467 = vmul.f32 %v2418, %v2418
  %v2468 = vmul.f32 %v2419, %v2419
  %v2469 = vmul.f32 %v2420, %v2420
  %v2470 = vmul.f32 %v2421, %v2421
  %v2471 = vmul.f32 %v2422, %v2422
  %v2472 = vmul.f32 %v2423, %v2423
  %v2473 = vmul.f32 %v2424, %v2424
  %v2474 = vmul.f32 %v2425, %v2425
  %v2475 = vmul.f32 %v2426, %v2426
  %v2476 = vmul.f32 %v2427, %v2427
  %v2477 = vmul.f32 %v2428, %v2428
  %v2478 = vmul.f32 %v2429, %v2429
  %v2479 = vmul.f32 %v2430, %v2430
  %v2480 = vmul.f32 %v2431, %v2431
  %v2481 = vmul.f32 %v2432, %v2432
  %v2482 = vmul.f32 %v2433, %v2433
  %v2483 = vmul.f32 %v2434, %v2434
  %v2484 = vmul.f32 %v2435, %v2435
  %v2485 = vmul.f32 %v2436, %v2436
  %v2486 = vmul.f32 %v2437, %v2437
  %v2487 = vmul.f32 %v2438, %v2438
  %v2488 = vmul.f32 %v2439, %v2439
  %v2489 = vsel %vm1571, %v2440, 0.0
  %v2490 = vsel %vm1571, %v2441, 0.0
  %v2491 = vadd.f32 %v2489, %v2490
  %v2492 = vsel %vm1571, %v2442, 0.0
  %v2493 = vadd.f32 %v2491, %v2492
  %v2494 = vsel %vm1571, %v2443, 0.0
  %v2495 = vadd.f32 %v2493, %v2494
  %v2496 = vsel %vm1571, %v2444, 0.0
  %v2497 = vadd.f32 %v2495, %v2496
  %v2498 = vsel %vm1571, %v2445, 0.0
  %v2499 = vadd.f32 %v2497, %v2498
  %v2500 = vsel %vm1571, %v2446, 0.0
  %v2501 = vadd.f32 %v2499, %v2500
  %v2502 = vsel %vm1571, %v2447, 0.0
  %v2503 = vadd.f32 %v2501, %v2502
  %v2504 = vsel %vm1571, %v2448, 0.0
  %v2505 = vadd.f32 %v2503, %v2504
  %v2506 = vsel %vm1571, %v2449, 0.0
  %v2507 = vadd.f32 %v2505, %v2506
  %v2508 = vsel %vm1571, %v2450, 0.0
  %v2509 = vadd.f32 %v2507, %v2508
  %v2510 = vsel %vm1571, %v2451, 0.0
  %v2511 = vadd.f32 %v2509, %v2510
  %v2512 = vsel %vm1571, %v2452, 0.0
  %v2513 = vadd.f32 %v2511, %v2512
  %v2514 = vsel %vm1571, %v2453, 0.0
  %v2515 = vadd.f32 %v2513, %v2514
  %v2516 = vsel %vm1571, %v2454, 0.0
  %v2517 = vadd.f32 %v2515, %v2516
  %v2518 = vsel %vm1571, %v2455, 0.0
  %v2519 = vadd.f32 %v2517, %v2518
  %v2520 = vsel %vm1571, %v2456, 0.0
  %v2521 = vadd.f32 %v2519, %v2520
  %v2522 = vsel %vm1571, %v2457, 0.0
  %v2523 = vadd.f32 %v2521, %v2522
  %v2524 = vsel %vm1571, %v2458, 0.0
  %v2525 = vadd.f32 %v2523, %v2524
  %v2526 = vsel %vm1571, %v2459, 0.0
  %v2527 = vadd.f32 %v2525, %v2526
  %v2528 = vsel %vm1571, %v2460, 0.0
  %v2529 = vadd.f32 %v2527, %v2528
  %v2530 = vsel %vm1571, %v2461, 0.0
  %v2531 = vadd.f32 %v2529, %v2530
  %v2532 = vsel %vm1571, %v2462, 0.0
  %v2533 = vadd.f32 %v2531, %v2532
  %v2534 = vsel %vm1571, %v2463, 0.0
  %v2535 = vadd.f32 %v2533, %v2534
  %v2536 = vsel %vm1571, %v2464, 0.0
  %v2537 = vadd.f32 %v2535, %v2536
  %v2538 = vsel %vm1571, %v2465, 0.0
  %v2539 = vadd.f32 %v2537, %v2538
  %v2540 = vsel %vm1571, %v2466, 0.0
  %v2541 = vadd.f32 %v2539, %v2540
  %v2542 = vsel %vm1571, %v2467, 0.0
  %v2543 = vadd.f32 %v2541, %v2542
  %v2544 = vsel %vm1571, %v2468, 0.0
  %v2545 = vadd.f32 %v2543, %v2544
  %v2546 = vsel %vm1571, %v2469, 0.0
  %v2547 = vadd.f32 %v2545, %v2546
  %v2548 = vsel %vm1571, %v2470, 0.0
  %v2549 = vadd.f32 %v2547, %v2548
  %v2550 = vsel %vm1571, %v2471, 0.0
  %v2551 = vadd.f32 %v2549, %v2550
  %v2552 = vsel %vm1571, %v2472, 0.0
  %v2553 = vadd.f32 %v2551, %v2552
  %v2554 = vsel %vm1571, %v2473, 0.0
  %v2555 = vadd.f32 %v2553, %v2554
  %v2556 = vsel %vm1571, %v2474, 0.0
  %v2557 = vadd.f32 %v2555, %v2556
  %v2558 = vsel %vm1571, %v2475, 0.0
  %v2559 = vadd.f32 %v2557, %v2558
  %v2560 = vsel %vm1571, %v2476, 0.0
  %v2561 = vadd.f32 %v2559, %v2560
  %v2562 = vsel %vm1571, %v2477, 0.0
  %v2563 = vadd.f32 %v2561, %v2562
  %v2564 = vsel %vm1571, %v2478, 0.0
  %v2565 = vadd.f32 %v2563, %v2564
  %v2566 = vsel %vm1571, %v2479, 0.0
  %v2567 = vadd.f32 %v2565, %v2566
  %v2568 = vsel %vm1571, %v2480, 0.0
  %v2569 = vadd.f32 %v2567, %v2568
  %v2570 = vsel %vm1571, %v2481, 0.0
  %v2571 = vadd.f32 %v2569, %v2570
  %v2572 = vsel %vm1571, %v2482, 0.0
  %v2573 = vadd.f32 %v2571, %v2572
  %v2574 = vsel %vm1571, %v2483, 0.0
  %v2575 = vadd.f32 %v2573, %v2574
  %v2576 = vsel %vm1571, %v2484, 0.0
  %v2577 = vadd.f32 %v2575, %v2576
  %v2578 = vsel %vm1571, %v2485, 0.0
  %v2579 = vadd.f32 %v2577, %v2578
  %v2580 = vsel %vm1571, %v2486, 0.0
  %v2581 = vadd.f32 %v2579, %v2580
  %v2582 = vsel %vm1571, %v2487, 0.0
  %v2583 = vadd.f32 %v2581, %v2582
  %v2584 = vsel %vm1571, %v2488, 0.0
  %v2585 = vadd.f32 %v2583, %v2584
  %v2586 = vrot.slane %v2585, 4
  %v2587 = vadd.f32 %v2585, %v2586
  %v2588 = vrot.slane %v2587, 2
  %v2589 = vadd.f32 %v2587, %v2588
  %v2590 = vrot.slane %v2589, 1
  %v2591 = vadd.f32 %v2589, %v2590
  %v2592 = vadd.f32 %v2390, %v2591
  %v2593 = vsub.f32 %v1448, %v1987
  %v2594 = vsub.f32 %v1450, %v1987
  %v2595 = vsub.f32 %v1453, %v1987
  %v2596 = vsub.f32 %v1455, %v1987
  %v2597 = vsub.f32 %v1458, %v1987
  %v2598 = vsub.f32 %v1460, %v1987
  %v2599 = vsub.f32 %v1463, %v1987
  %v2600 = vsub.f32 %v1465, %v1987
  %v2601 = vsub.f32 %v1468, %v1987
  %v2602 = vsub.f32 %v1470, %v1987
  %v2603 = vsub.f32 %v1473, %v1987
  %v2604 = vsub.f32 %v1475, %v1987
  %v2605 = vsub.f32 %v1478, %v1987
  %v2606 = vsub.f32 %v1480, %v1987
  %v2607 = vsub.f32 %v1483, %v1987
  %v2608 = vsub.f32 %v1485, %v1987
  %v2609 = vsub.f32 %v1488, %v1987
  %v2610 = vsub.f32 %v1490, %v1987
  %v2611 = vsub.f32 %v1493, %v1987
  %v2612 = vsub.f32 %v1495, %v1987
  %v2613 = vsub.f32 %v1498, %v1987
  %v2614 = vsub.f32 %v1500, %v1987
  %v2615 = vsub.f32 %v1503, %v1987
  %v2616 = vsub.f32 %v1505, %v1987
  %v2617 = vsub.f32 %v1508, %v1987
  %v2618 = vsub.f32 %v1510, %v1987
  %v2619 = vsub.f32 %v1513, %v1987
  %v2620 = vsub.f32 %v1515, %v1987
  %v2621 = vsub.f32 %v1518, %v1987
  %v2622 = vsub.f32 %v1520, %v1987
  %v2623 = vsub.f32 %v1523, %v1987
  %v2624 = vsub.f32 %v1525, %v1987
  %v2625 = vsub.f32 %v1528, %v1987
  %v2626 = vsub.f32 %v1530, %v1987
  %v2627 = vsub.f32 %v1533, %v1987
  %v2628 = vsub.f32 %v1535, %v1987
  %v2629 = vsub.f32 %v1538, %v1987
  %v2630 = vsub.f32 %v1540, %v1987
  %v2631 = vsub.f32 %v1543, %v1987
  %v2632 = vsub.f32 %v1545, %v1987
  %v2633 = vsub.f32 %v1548, %v1987
  %v2634 = vsub.f32 %v1550, %v1987
  %v2635 = vsub.f32 %v1553, %v1987
  %v2636 = vsub.f32 %v1555, %v1987
  %v2637 = vsub.f32 %v1558, %v1987
  %v2638 = vsub.f32 %v1560, %v1987
  %v2639 = vsub.f32 %v1563, %v1987
  %v2640 = vsub.f32 %v1565, %v1987
  %v2641 = vsub.f32 %v1568, %v1987
  %v2642 = vmul.f32 %v2593, %v2593
  %v2643 = vmul.f32 %v2594, %v2594
  %v2644 = vmul.f32 %v2595, %v2595
  %v2645 = vmul.f32 %v2596, %v2596
  %v2646 = vmul.f32 %v2597, %v2597
  %v2647 = vmul.f32 %v2598, %v2598
  %v2648 = vmul.f32 %v2599, %v2599
  %v2649 = vmul.f32 %v2600, %v2600
  %v2650 = vmul.f32 %v2601, %v2601
  %v2651 = vmul.f32 %v2602, %v2602
  %v2652 = vmul.f32 %v2603, %v2603
  %v2653 = vmul.f32 %v2604, %v2604
  %v2654 = vmul.f32 %v2605, %v2605
  %v2655 = vmul.f32 %v2606, %v2606
  %v2656 = vmul.f32 %v2607, %v2607
  %v2657 = vmul.f32 %v2608, %v2608
  %v2658 = vmul.f32 %v2609, %v2609
  %v2659 = vmul.f32 %v2610, %v2610
  %v2660 = vmul.f32 %v2611, %v2611
  %v2661 = vmul.f32 %v2612, %v2612
  %v2662 = vmul.f32 %v2613, %v2613
  %v2663 = vmul.f32 %v2614, %v2614
  %v2664 = vmul.f32 %v2615, %v2615
  %v2665 = vmul.f32 %v2616, %v2616
  %v2666 = vmul.f32 %v2617, %v2617
  %v2667 = vmul.f32 %v2618, %v2618
  %v2668 = vmul.f32 %v2619, %v2619
  %v2669 = vmul.f32 %v2620, %v2620
  %v2670 = vmul.f32 %v2621, %v2621
  %v2671 = vmul.f32 %v2622, %v2622
  %v2672 = vmul.f32 %v2623, %v2623
  %v2673 = vmul.f32 %v2624, %v2624
  %v2674 = vmul.f32 %v2625, %v2625
  %v2675 = vmul.f32 %v2626, %v2626
  %v2676 = vmul.f32 %v2627, %v2627
  %v2677 = vmul.f32 %v2628, %v2628
  %v2678 = vmul.f32 %v2629, %v2629
  %v2679 = vmul.f32 %v2630, %v2630
  %v2680 = vmul.f32 %v2631, %v2631
  %v2681 = vmul.f32 %v2632, %v2632
  %v2682 = vmul.f32 %v2633, %v2633
  %v2683 = vmul.f32 %v2634, %v2634
  %v2684 = vmul.f32 %v2635, %v2635
  %v2685 = vmul.f32 %v2636, %v2636
  %v2686 = vmul.f32 %v2637, %v2637
  %v2687 = vmul.f32 %v2638, %v2638
  %v2688 = vmul.f32 %v2639, %v2639
  %v2689 = vmul.f32 %v2640, %v2640
  %v2690 = vmul.f32 %v2641, %v2641
  %v2691 = vsel %vm1571, %v2642, 0.0
  %v2692 = vsel %vm1571, %v2643, 0.0
  %v2693 = vadd.f32 %v2691, %v2692
  %v2694 = vsel %vm1571, %v2644, 0.0
  %v2695 = vadd.f32 %v2693, %v2694
  %v2696 = vsel %vm1571, %v2645, 0.0
  %v2697 = vadd.f32 %v2695, %v2696
  %v2698 = vsel %vm1571, %v2646, 0.0
  %v2699 = vadd.f32 %v2697, %v2698
  %v2700 = vsel %vm1571, %v2647, 0.0
  %v2701 = vadd.f32 %v2699, %v2700
  %v2702 = vsel %vm1571, %v2648, 0.0
  %v2703 = vadd.f32 %v2701, %v2702
  %v2704 = vsel %vm1571, %v2649, 0.0
  %v2705 = vadd.f32 %v2703, %v2704
  %v2706 = vsel %vm1571, %v2650, 0.0
  %v2707 = vadd.f32 %v2705, %v2706
  %v2708 = vsel %vm1571, %v2651, 0.0
  %v2709 = vadd.f32 %v2707, %v2708
  %v2710 = vsel %vm1571, %v2652, 0.0
  %v2711 = vadd.f32 %v2709, %v2710
  %v2712 = vsel %vm1571, %v2653, 0.0
  %v2713 = vadd.f32 %v2711, %v2712
  %v2714 = vsel %vm1571, %v2654, 0.0
  %v2715 = vadd.f32 %v2713, %v2714
  %v2716 = vsel %vm1571, %v2655, 0.0
  %v2717 = vadd.f32 %v2715, %v2716
  %v2718 = vsel %vm1571, %v2656, 0.0
  %v2719 = vadd.f32 %v2717, %v2718
  %v2720 = vsel %vm1571, %v2657, 0.0
  %v2721 = vadd.f32 %v2719, %v2720
  %v2722 = vsel %vm1571, %v2658, 0.0
  %v2723 = vadd.f32 %v2721, %v2722
  %v2724 = vsel %vm1571, %v2659, 0.0
  %v2725 = vadd.f32 %v2723, %v2724
  %v2726 = vsel %vm1571, %v2660, 0.0
  %v2727 = vadd.f32 %v2725, %v2726
  %v2728 = vsel %vm1571, %v2661, 0.0
  %v2729 = vadd.f32 %v2727, %v2728
  %v2730 = vsel %vm1571, %v2662, 0.0
  %v2731 = vadd.f32 %v2729, %v2730
  %v2732 = vsel %vm1571, %v2663, 0.0
  %v2733 = vadd.f32 %v2731, %v2732
  %v2734 = vsel %vm1571, %v2664, 0.0
  %v2735 = vadd.f32 %v2733, %v2734
  %v2736 = vsel %vm1571, %v2665, 0.0
  %v2737 = vadd.f32 %v2735, %v2736
  %v2738 = vsel %vm1571, %v2666, 0.0
  %v2739 = vadd.f32 %v2737, %v2738
  %v2740 = vsel %vm1571, %v2667, 0.0
  %v2741 = vadd.f32 %v2739, %v2740
  %v2742 = vsel %vm1571, %v2668, 0.0
  %v2743 = vadd.f32 %v2741, %v2742
  %v2744 = vsel %vm1571, %v2669, 0.0
  %v2745 = vadd.f32 %v2743, %v2744
  %v2746 = vsel %vm1571, %v2670, 0.0
  %v2747 = vadd.f32 %v2745, %v2746
  %v2748 = vsel %vm1571, %v2671, 0.0
  %v2749 = vadd.f32 %v2747, %v2748
  %v2750 = vsel %vm1571, %v2672, 0.0
  %v2751 = vadd.f32 %v2749, %v2750
  %v2752 = vsel %vm1571, %v2673, 0.0
  %v2753 = vadd.f32 %v2751, %v2752
  %v2754 = vsel %vm1571, %v2674, 0.0
  %v2755 = vadd.f32 %v2753, %v2754
  %v2756 = vsel %vm1571, %v2675, 0.0
  %v2757 = vadd.f32 %v2755, %v2756
  %v2758 = vsel %vm1571, %v2676, 0.0
  %v2759 = vadd.f32 %v2757, %v2758
  %v2760 = vsel %vm1571, %v2677, 0.0
  %v2761 = vadd.f32 %v2759, %v2760
  %v2762 = vsel %vm1571, %v2678, 0.0
  %v2763 = vadd.f32 %v2761, %v2762
  %v2764 = vsel %vm1571, %v2679, 0.0
  %v2765 = vadd.f32 %v2763, %v2764
  %v2766 = vsel %vm1571, %v2680, 0.0
  %v2767 = vadd.f32 %v2765, %v2766
  %v2768 = vsel %vm1571, %v2681, 0.0
  %v2769 = vadd.f32 %v2767, %v2768
  %v2770 = vsel %vm1571, %v2682, 0.0
  %v2771 = vadd.f32 %v2769, %v2770
  %v2772 = vsel %vm1571, %v2683, 0.0
  %v2773 = vadd.f32 %v2771, %v2772
  %v2774 = vsel %vm1571, %v2684, 0.0
  %v2775 = vadd.f32 %v2773, %v2774
  %v2776 = vsel %vm1571, %v2685, 0.0
  %v2777 = vadd.f32 %v2775, %v2776
  %v2778 = vsel %vm1571, %v2686, 0.0
  %v2779 = vadd.f32 %v2777, %v2778
  %v2780 = vsel %vm1571, %v2687, 0.0
  %v2781 = vadd.f32 %v2779, %v2780
  %v2782 = vsel %vm1571, %v2688, 0.0
  %v2783 = vadd.f32 %v2781, %v2782
  %v2784 = vsel %vm1571, %v2689, 0.0
  %v2785 = vadd.f32 %v2783, %v2784
  %v2786 = vsel %vm1571, %v2690, 0.0
  %v2787 = vadd.f32 %v2785, %v2786
  %v2788 = vrot.slane %v2787, 4
  %v2789 = vadd.f32 %v2787, %v2788
  %v2790 = vrot.slane %v2789, 2
  %v2791 = vadd.f32 %v2789, %v2790
  %v2792 = vrot.slane %v2791, 1
  %v2793 = vadd.f32 %v2791, %v2792
  %v2794 = vadd.f32 %v2592, %v2793
  %v2795 = vmul.f32 %v2794, 0.0006377551
  %v2796 = vld [vmem:[%s3] sm:$0x1]
  %v2797 = vadd.f32 %v2795, 1e-05
  %v2798 = vrsqrt.pop %v2797
  %v2799 = vmul.f32 %v2798, %v2797
  %v2800 = vmul.f32 %v2799, %v2798
  %v2801 = vmul.f32 0.5, %v2800
  %v2802 = vsub.f32 1.5, %v2801
  %v2803 = vmul.f32 %v2798, %v2802
  %vm2804 = vweird.f32 %v2797
  %vm2805 = vweird.f32 %v2798
  %vm2806 = vmor %vm2804, %vm2805
  %v2807 = vsel %vm2806, %v2798, %v2803
  %v2808 = vmul.f32 %v2796, %v2807
  %v2809 = vld [vmem:[%s4] sm:$0x1]
  %v2810 = vmul.f32 %v1987, %v2808
  %v2811 = vsub.f32 %v2809, %v2810
  %v2813 = vperm.slane %v2808, 0
  %v2815 = vmul.f32 %v305, %v2813
  %v2816 = vmul.f32 %v307, %v2813
  %v2817 = vmul.f32 %v310, %v2813
  %v2818 = vmul.f32 %v312, %v2813
  %v2819 = vmul.f32 %v315, %v2813
  %v2820 = vmul.f32 %v317, %v2813
  %v2821 = vmul.f32 %v320, %v2813
  %v2822 = vmul.f32 %v322, %v2813
  %v2823 = vmul.f32 %v325, %v2813
  %v2824 = vmul.f32 %v327, %v2813
  %v2825 = vmul.f32 %v330, %v2813
  %v2826 = vmul.f32 %v332, %v2813
  %v2827 = vmul.f32 %v335, %v2813
  %v2828 = vmul.f32 %v337, %v2813
  %v2829 = vmul.f32 %v340, %v2813
  %v2830 = vmul.f32 %v342, %v2813
  %v2831 = vmul.f32 %v345, %v2813
  %v2832 = vmul.f32 %v347, %v2813
  %v2833 = vmul.f32 %v350, %v2813
  %v2834 = vmul.f32 %v352, %v2813
  %v2835 = vmul.f32 %v355, %v2813
  %v2836 = vmul.f32 %v357, %v2813
  %v2837 = vmul.f32 %v360, %v2813
  %v2838 = vmul.f32 %v362, %v2813
  %v2839 = vmul.f32 %v365, %v2813
  %v2840 = vmul.f32 %v367, %v2813
  %v2841 = vmul.f32 %v370, %v2813
  %v2842 = vmul.f32 %v372, %v2813
  %v2843 = vmul.f32 %v375, %v2813
  %v2844 = vmul.f32 %v377, %v2813
  %v2845 = vmul.f32 %v380, %v2813
  %v2846 = vmul.f32 %v382, %v2813
  %v2847 = vmul.f32 %v385, %v2813
  %v2848 = vmul.f32 %v387, %v2813
  %v2849 = vmul.f32 %v390, %v2813
  %v2850 = vmul.f32 %v392, %v2813
  %v2851 = vmul.f32 %v395, %v2813
  %v2852 = vmul.f32 %v397, %v2813
  %v2853 = vmul.f32 %v400, %v2813
  %v2854 = vmul.f32 %v402, %v2813
  %v2855 = vmul.f32 %v405, %v2813
  %v2856 = vmul.f32 %v407, %v2813
  %v2857 = vmul.f32 %v410, %v2813
  %v2858 = vmul.f32 %v412, %v2813
  %v2859 = vmul.f32 %v415, %v2813
  %v2860 = vmul.f32 %v417, %v2813
  %v2861 = vmul.f32 %v420, %v2813
  %v2862 = vmul.f32 %v422, %v2813
  %v2863 = vmul.f32 %v425, %v2813
  %v2865 = vperm.slane %v2811, 0
  %v2867 = vadd.f32 %v2815, %v2865
  %v2868 = vadd.f32 %v2816, %v2865
  %v2869 = vadd.f32 %v2817, %v2865
  %v2870 = vadd.f32 %v2818, %v2865
  %v2871 = vadd.f32 %v2819, %v2865
  %v2872 = vadd.f32 %v2820, %v2865
  %v2873 = vadd.f32 %v2821, %v2865
  %v2874 = vadd.f32 %v2822, %v2865
  %v2875 = vadd.f32 %v2823, %v2865
  %v2876 = vadd.f32 %v2824, %v2865
  %v2877 = vadd.f32 %v2825, %v2865
  %v2878 = vadd.f32 %v2826, %v2865
  %v2879 = vadd.f32 %v2827, %v2865
  %v2880 = vadd.f32 %v2828, %v2865
  %v2881 = vadd.f32 %v2829, %v2865
  %v2882 = vadd.f32 %v2830, %v2865
  %v2883 = vadd.f32 %v2831, %v2865
  %v2884 = vadd.f32 %v2832, %v2865
  %v2885 = vadd.f32 %v2833, %v2865
  %v2886 = vadd.f32 %v2834, %v2865
  %v2887 = vadd.f32 %v2835, %v2865
  %v2888 = vadd.f32 %v2836, %v2865
  %v2889 = vadd.f32 %v2837, %v2865
  %v2890 = vadd.f32 %v2838, %v2865
  %v2891 = vadd.f32 %v2839, %v2865
  %v2892 = vadd.f32 %v2840, %v2865
  %v2893 = vadd.f32 %v2841, %v2865
  %v2894 = vadd.f32 %v2842, %v2865
  %v2895 = vadd.f32 %v2843, %v2865
  %v2896 = vadd.f32 %v2844, %v2865
  %v2897 = vadd.f32 %v2845, %v2865
  %v2898 = vadd.f32 %v2846, %v2865
  %v2899 = vadd.f32 %v2847, %v2865
  %v2900 = vadd.f32 %v2848, %v2865
  %v2901 = vadd.f32 %v2849, %v2865
  %v2902 = vadd.f32 %v2850, %v2865
  %v2903 = vadd.f32 %v2851, %v2865
  %v2904 = vadd.f32 %v2852, %v2865
  %v2905 = vadd.f32 %v2853, %v2865
  %v2906 = vadd.f32 %v2854, %v2865
  %v2907 = vadd.f32 %v2855, %v2865
  %v2908 = vadd.f32 %v2856, %v2865
  %v2909 = vadd.f32 %v2857, %v2865
  %v2910 = vadd.f32 %v2858, %v2865
  %v2911 = vadd.f32 %v2859, %v2865
  %v2912 = vadd.f32 %v2860, %v2865
  %v2913 = vadd.f32 %v2861, %v2865
  %v2914 = vadd.f32 %v2862, %v2865
  %v2915 = vadd.f32 %v2863, %v2865
  %v2916 = vmax.f32 %v2867, 0.0
  %v2917 = vmax.f32 %v2868, 0.0
  %v2918 = vmax.f32 %v2869, 0.0
  %v2919 = vmax.f32 %v2870, 0.0
  %v2920 = vmax.f32 %v2871, 0.0
  %v2921 = vmax.f32 %v2872, 0.0
  %v2922 = vmax.f32 %v2873, 0.0
  %v2923 = vmax.f32 %v2874, 0.0
  %v2924 = vmax.f32 %v2875, 0.0
  %v2925 = vmax.f32 %v2876, 0.0
  %v2926 = vmax.f32 %v2877, 0.0
  %v2927 = vmax.f32 %v2878, 0.0
  %v2928 = vmax.f32 %v2879, 0.0
  %v2929 = vmax.f32 %v2880, 0.0
  %v2930 = vmax.f32 %v2881, 0.0
  %v2931 = vmax.f32 %v2882, 0.0
  %v2932 = vmax.f32 %v2883, 0.0
  %v2933 = vmax.f32 %v2884, 0.0
  %v2934 = vmax.f32 %v2885, 0.0
  %v2935 = vmax.f32 %v2886, 0.0
  %v2936 = vmax.f32 %v2887, 0.0
  %v2937 = vmax.f32 %v2888, 0.0
  %v2938 = vmax.f32 %v2889, 0.0
  %v2939 = vmax.f32 %v2890, 0.0
  %v2940 = vmax.f32 %v2891, 0.0
  %v2941 = vmax.f32 %v2892, 0.0
  %v2942 = vmax.f32 %v2893, 0.0
  %v2943 = vmax.f32 %v2894, 0.0
  %v2944 = vmax.f32 %v2895, 0.0
  %v2945 = vmax.f32 %v2896, 0.0
  %v2946 = vmax.f32 %v2897, 0.0
  %v2947 = vmax.f32 %v2898, 0.0
  %v2948 = vmax.f32 %v2899, 0.0
  %v2949 = vmax.f32 %v2900, 0.0
  %v2950 = vmax.f32 %v2901, 0.0
  %v2951 = vmax.f32 %v2902, 0.0
  %v2952 = vmax.f32 %v2903, 0.0
  %v2953 = vmax.f32 %v2904, 0.0
  %v2954 = vmax.f32 %v2905, 0.0
  %v2955 = vmax.f32 %v2906, 0.0
  %v2956 = vmax.f32 %v2907, 0.0
  %v2957 = vmax.f32 %v2908, 0.0
  %v2958 = vmax.f32 %v2909, 0.0
  %v2959 = vmax.f32 %v2910, 0.0
  %v2960 = vmax.f32 %v2911, 0.0
  %v2961 = vmax.f32 %v2912, 0.0
  %v2962 = vmax.f32 %v2913, 0.0
  %v2963 = vmax.f32 %v2914, 0.0
  %v2964 = vmax.f32 %v2915, 0.0
  %v2965 = vmul.f32 %v686, %v2813
  %v2966 = vmul.f32 %v688, %v2813
  %v2967 = vmul.f32 %v691, %v2813
  %v2968 = vmul.f32 %v693, %v2813
  %v2969 = vmul.f32 %v696, %v2813
  %v2970 = vmul.f32 %v698, %v2813
  %v2971 = vmul.f32 %v701, %v2813
  %v2972 = vmul.f32 %v703, %v2813
  %v2973 = vmul.f32 %v706, %v2813
  %v2974 = vmul.f32 %v708, %v2813
  %v2975 = vmul.f32 %v711, %v2813
  %v2976 = vmul.f32 %v713, %v2813
  %v2977 = vmul.f32 %v716, %v2813
  %v2978 = vmul.f32 %v718, %v2813
  %v2979 = vmul.f32 %v721, %v2813
  %v2980 = vmul.f32 %v723, %v2813
  %v2981 = vmul.f32 %v726, %v2813
  %v2982 = vmul.f32 %v728, %v2813
  %v2983 = vmul.f32 %v731, %v2813
  %v2984 = vmul.f32 %v733, %v2813
  %v2985 = vmul.f32 %v736, %v2813
  %v2986 = vmul.f32 %v738, %v2813
  %v2987 = vmul.f32 %v741, %v2813
  %v2988 = vmul.f32 %v743, %v2813
  %v2989 = vmul.f32 %v746, %v2813
  %v2990 = vmul.f32 %v748, %v2813
  %v2991 = vmul.f32 %v751, %v2813
  %v2992 = vmul.f32 %v753, %v2813
  %v2993 = vmul.f32 %v756, %v2813
  %v2994 = vmul.f32 %v758, %v2813
  %v2995 = vmul.f32 %v761, %v2813
  %v2996 = vmul.f32 %v763, %v2813
  %v2997 = vmul.f32 %v766, %v2813
  %v2998 = vmul.f32 %v768, %v2813
  %v2999 = vmul.f32 %v771, %v2813
  %v3000 = vmul.f32 %v773, %v2813
  %v3001 = vmul.f32 %v776, %v2813
  %v3002 = vmul.f32 %v778, %v2813
  %v3003 = vmul.f32 %v781, %v2813
  %v3004 = vmul.f32 %v783, %v2813
  %v3005 = vmul.f32 %v786, %v2813
  %v3006 = vmul.f32 %v788, %v2813
  %v3007 = vmul.f32 %v791, %v2813
  %v3008 = vmul.f32 %v793, %v2813
  %v3009 = vmul.f32 %v796, %v2813
  %v3010 = vmul.f32 %v798, %v2813
  %v3011 = vmul.f32 %v801, %v2813
  %v3012 = vmul.f32 %v803, %v2813
  %v3013 = vmul.f32 %v806, %v2813
  %v3014 = vadd.f32 %v2965, %v2865
  %v3015 = vadd.f32 %v2966, %v2865
  %v3016 = vadd.f32 %v2967, %v2865
  %v3017 = vadd.f32 %v2968, %v2865
  %v3018 = vadd.f32 %v2969, %v2865
  %v3019 = vadd.f32 %v2970, %v2865
  %v3020 = vadd.f32 %v2971, %v2865
  %v3021 = vadd.f32 %v2972, %v2865
  %v3022 = vadd.f32 %v2973, %v2865
  %v3023 = vadd.f32 %v2974, %v2865
  %v3024 = vadd.f32 %v2975, %v2865
  %v3025 = vadd.f32 %v2976, %v2865
  %v3026 = vadd.f32 %v2977, %v2865
  %v3027 = vadd.f32 %v2978, %v2865
  %v3028 = vadd.f32 %v2979, %v2865
  %v3029 = vadd.f32 %v2980, %v2865
  %v3030 = vadd.f32 %v2981, %v2865
  %v3031 = vadd.f32 %v2982, %v2865
  %v3032 = vadd.f32 %v2983, %v2865
  %v3033 = vadd.f32 %v2984, %v2865
  %v3034 = vadd.f32 %v2985, %v2865
  %v3035 = vadd.f32 %v2986, %v2865
  %v3036 = vadd.f32 %v2987, %v2865
  %v3037 = vadd.f32 %v2988, %v2865
  %v3038 = vadd.f32 %v2989, %v2865
  %v3039 = vadd.f32 %v2990, %v2865
  %v3040 = vadd.f32 %v2991, %v2865
  %v3041 = vadd.f32 %v2992, %v2865
  %v3042 = vadd.f32 %v2993, %v2865
  %v3043 = vadd.f32 %v2994, %v2865
  %v3044 = vadd.f32 %v2995, %v2865
  %v3045 = vadd.f32 %v2996, %v2865
  %v3046 = vadd.f32 %v2997, %v2865
  %v3047 = vadd.f32 %v2998, %v2865
  %v3048 = vadd.f32 %v2999, %v2865
  %v3049 = vadd.f32 %v3000, %v2865
  %v3050 = vadd.f32 %v3001, %v2865
  %v3051 = vadd.f32 %v3002, %v2865
  %v3052 = vadd.f32 %v3003, %v2865
  %v3053 = vadd.f32 %v3004, %v2865
  %v3054 = vadd.f32 %v3005, %v2865
  %v3055 = vadd.f32 %v3006, %v2865
  %v3056 = vadd.f32 %v3007, %v2865
  %v3057 = vadd.f32 %v3008, %v2865
  %v3058 = vadd.f32 %v3009, %v2865
  %v3059 = vadd.f32 %v3010, %v2865
  %v3060 = vadd.f32 %v3011, %v2865
  %v3061 = vadd.f32 %v3012, %v2865
  %v3062 = vadd.f32 %v3013, %v2865
  %v3063 = vmax.f32 %v3014, 0.0
  %v3064 = vmax.f32 %v3015, 0.0
  %v3065 = vmax.f32 %v3016, 0.0
  %v3066 = vmax.f32 %v3017, 0.0
  %v3067 = vmax.f32 %v3018, 0.0
  %v3068 = vmax.f32 %v3019, 0.0
  %v3069 = vmax.f32 %v3020, 0.0
  %v3070 = vmax.f32 %v3021, 0.0
  %v3071 = vmax.f32 %v3022, 0.0
  %v3072 = vmax.f32 %v3023, 0.0
  %v3073 = vmax.f32 %v3024, 0.0
  %v3074 = vmax.f32 %v3025, 0.0
  %v3075 = vmax.f32 %v3026, 0.0
  %v3076 = vmax.f32 %v3027, 0.0
  %v3077 = vmax.f32 %v3028, 0.0
  %v3078 = vmax.f32 %v3029, 0.0
  %v3079 = vmax.f32 %v3030, 0.0
  %v3080 = vmax.f32 %v3031, 0.0
  %v3081 = vmax.f32 %v3032, 0.0
  %v3082 = vmax.f32 %v3033, 0.0
  %v3083 = vmax.f32 %v3034, 0.0
  %v3084 = vmax.f32 %v3035, 0.0
  %v3085 = vmax.f32 %v3036, 0.0
  %v3086 = vmax.f32 %v3037, 0.0
  %v3087 = vmax.f32 %v3038, 0.0
  %v3088 = vmax.f32 %v3039, 0.0
  %v3089 = vmax.f32 %v3040, 0.0
  %v3090 = vmax.f32 %v3041, 0.0
  %v3091 = vmax.f32 %v3042, 0.0
  %v3092 = vmax.f32 %v3043, 0.0
  %v3093 = vmax.f32 %v3044, 0.0
  %v3094 = vmax.f32 %v3045, 0.0
  %v3095 = vmax.f32 %v3046, 0.0
  %v3096 = vmax.f32 %v3047, 0.0
  %v3097 = vmax.f32 %v3048, 0.0
  %v3098 = vmax.f32 %v3049, 0.0
  %v3099 = vmax.f32 %v3050, 0.0
  %v3100 = vmax.f32 %v3051, 0.0
  %v3101 = vmax.f32 %v3052, 0.0
  %v3102 = vmax.f32 %v3053, 0.0
  %v3103 = vmax.f32 %v3054, 0.0
  %v3104 = vmax.f32 %v3055, 0.0
  %v3105 = vmax.f32 %v3056, 0.0
  %v3106 = vmax.f32 %v3057, 0.0
  %v3107 = vmax.f32 %v3058, 0.0
  %v3108 = vmax.f32 %v3059, 0.0
  %v3109 = vmax.f32 %v3060, 0.0
  %v3110 = vmax.f32 %v3061, 0.0
  %v3111 = vmax.f32 %v3062, 0.0
  %v3112 = vmax.f32 %v2916, %v3063
  %v3113 = vmax.f32 %v2917, %v3064
  %v3114 = vmax.f32 %v2918, %v3065
  %v3115 = vmax.f32 %v2919, %v3066
  %v3116 = vmax.f32 %v2920, %v3067
  %v3117 = vmax.f32 %v2921, %v3068
  %v3118 = vmax.f32 %v2922, %v3069
  %v3119 = vmax.f32 %v2923, %v3070
  %v3120 = vmax.f32 %v2924, %v3071
  %v3121 = vmax.f32 %v2925, %v3072
  %v3122 = vmax.f32 %v2926, %v3073
  %v3123 = vmax.f32 %v2927, %v3074
  %v3124 = vmax.f32 %v2928, %v3075
  %v3125 = vmax.f32 %v2929, %v3076
  %v3126 = vmax.f32 %v2930, %v3077
  %v3127 = vmax.f32 %v2931, %v3078
  %v3128 = vmax.f32 %v2932, %v3079
  %v3129 = vmax.f32 %v2933, %v3080
  %v3130 = vmax.f32 %v2934, %v3081
  %v3131 = vmax.f32 %v2935, %v3082
  %v3132 = vmax.f32 %v2936, %v3083
  %v3133 = vmax.f32 %v2937, %v3084
  %v3134 = vmax.f32 %v2938, %v3085
  %v3135 = vmax.f32 %v2939, %v3086
  %v3136 = vmax.f32 %v2940, %v3087
  %v3137 = vmax.f32 %v2941, %v3088
  %v3138 = vmax.f32 %v2942, %v3089
  %v3139 = vmax.f32 %v2943, %v3090
  %v3140 = vmax.f32 %v2944, %v3091
  %v3141 = vmax.f32 %v2945, %v3092
  %v3142 = vmax.f32 %v2946, %v3093
  %v3143 = vmax.f32 %v2947, %v3094
  %v3144 = vmax.f32 %v2948, %v3095
  %v3145 = vmax.f32 %v2949, %v3096
  %v3146 = vmax.f32 %v2950, %v3097
  %v3147 = vmax.f32 %v2951, %v3098
  %v3148 = vmax.f32 %v2952, %v3099
  %v3149 = vmax.f32 %v2953, %v3100
  %v3150 = vmax.f32 %v2954, %v3101
  %v3151 = vmax.f32 %v2955, %v3102
  %v3152 = vmax.f32 %v2956, %v3103
  %v3153 = vmax.f32 %v2957, %v3104
  %v3154 = vmax.f32 %v2958, %v3105
  %v3155 = vmax.f32 %v2959, %v3106
  %v3156 = vmax.f32 %v2960, %v3107
  %v3157 = vmax.f32 %v2961, %v3108
  %v3158 = vmax.f32 %v2962, %v3109
  %v3159 = vmax.f32 %v2963, %v3110
  %v3160 = vmax.f32 %v2964, %v3111
  %v3161 = vmul.f32 %v1067, %v2813
  %v3162 = vmul.f32 %v1069, %v2813
  %v3163 = vmul.f32 %v1072, %v2813
  %v3164 = vmul.f32 %v1074, %v2813
  %v3165 = vmul.f32 %v1077, %v2813
  %v3166 = vmul.f32 %v1079, %v2813
  %v3167 = vmul.f32 %v1082, %v2813
  %v3168 = vmul.f32 %v1084, %v2813
  %v3169 = vmul.f32 %v1087, %v2813
  %v3170 = vmul.f32 %v1089, %v2813
  %v3171 = vmul.f32 %v1092, %v2813
  %v3172 = vmul.f32 %v1094, %v2813
  %v3173 = vmul.f32 %v1097, %v2813
  %v3174 = vmul.f32 %v1099, %v2813
  %v3175 = vmul.f32 %v1102, %v2813
  %v3176 = vmul.f32 %v1104, %v2813
  %v3177 = vmul.f32 %v1107, %v2813
  %v3178 = vmul.f32 %v1109, %v2813
  %v3179 = vmul.f32 %v1112, %v2813
  %v3180 = vmul.f32 %v1114, %v2813
  %v3181 = vmul.f32 %v1117, %v2813
  %v3182 = vmul.f32 %v1119, %v2813
  %v3183 = vmul.f32 %v1122, %v2813
  %v3184 = vmul.f32 %v1124, %v2813
  %v3185 = vmul.f32 %v1127, %v2813
  %v3186 = vmul.f32 %v1129, %v2813
  %v3187 = vmul.f32 %v1132, %v2813
  %v3188 = vmul.f32 %v1134, %v2813
  %v3189 = vmul.f32 %v1137, %v2813
  %v3190 = vmul.f32 %v1139, %v2813
  %v3191 = vmul.f32 %v1142, %v2813
  %v3192 = vmul.f32 %v1144, %v2813
  %v3193 = vmul.f32 %v1147, %v2813
  %v3194 = vmul.f32 %v1149, %v2813
  %v3195 = vmul.f32 %v1152, %v2813
  %v3196 = vmul.f32 %v1154, %v2813
  %v3197 = vmul.f32 %v1157, %v2813
  %v3198 = vmul.f32 %v1159, %v2813
  %v3199 = vmul.f32 %v1162, %v2813
  %v3200 = vmul.f32 %v1164, %v2813
  %v3201 = vmul.f32 %v1167, %v2813
  %v3202 = vmul.f32 %v1169, %v2813
  %v3203 = vmul.f32 %v1172, %v2813
  %v3204 = vmul.f32 %v1174, %v2813
  %v3205 = vmul.f32 %v1177, %v2813
  %v3206 = vmul.f32 %v1179, %v2813
  %v3207 = vmul.f32 %v1182, %v2813
  %v3208 = vmul.f32 %v1184, %v2813
  %v3209 = vmul.f32 %v1187, %v2813
  %v3210 = vadd.f32 %v3161, %v2865
  %v3211 = vadd.f32 %v3162, %v2865
  %v3212 = vadd.f32 %v3163, %v2865
  %v3213 = vadd.f32 %v3164, %v2865
  %v3214 = vadd.f32 %v3165, %v2865
  %v3215 = vadd.f32 %v3166, %v2865
  %v3216 = vadd.f32 %v3167, %v2865
  %v3217 = vadd.f32 %v3168, %v2865
  %v3218 = vadd.f32 %v3169, %v2865
  %v3219 = vadd.f32 %v3170, %v2865
  %v3220 = vadd.f32 %v3171, %v2865
  %v3221 = vadd.f32 %v3172, %v2865
  %v3222 = vadd.f32 %v3173, %v2865
  %v3223 = vadd.f32 %v3174, %v2865
  %v3224 = vadd.f32 %v3175, %v2865
  %v3225 = vadd.f32 %v3176, %v2865
  %v3226 = vadd.f32 %v3177, %v2865
  %v3227 = vadd.f32 %v3178, %v2865
  %v3228 = vadd.f32 %v3179, %v2865
  %v3229 = vadd.f32 %v3180, %v2865
  %v3230 = vadd.f32 %v3181, %v2865
  %v3231 = vadd.f32 %v3182, %v2865
  %v3232 = vadd.f32 %v3183, %v2865
  %v3233 = vadd.f32 %v3184, %v2865
  %v3234 = vadd.f32 %v3185, %v2865
  %v3235 = vadd.f32 %v3186, %v2865
  %v3236 = vadd.f32 %v3187, %v2865
  %v3237 = vadd.f32 %v3188, %v2865
  %v3238 = vadd.f32 %v3189, %v2865
  %v3239 = vadd.f32 %v3190, %v2865
  %v3240 = vadd.f32 %v3191, %v2865
  %v3241 = vadd.f32 %v3192, %v2865
  %v3242 = vadd.f32 %v3193, %v2865
  %v3243 = vadd.f32 %v3194, %v2865
  %v3244 = vadd.f32 %v3195, %v2865
  %v3245 = vadd.f32 %v3196, %v2865
  %v3246 = vadd.f32 %v3197, %v2865
  %v3247 = vadd.f32 %v3198, %v2865
  %v3248 = vadd.f32 %v3199, %v2865
  %v3249 = vadd.f32 %v3200, %v2865
  %v3250 = vadd.f32 %v3201, %v2865
  %v3251 = vadd.f32 %v3202, %v2865
  %v3252 = vadd.f32 %v3203, %v2865
  %v3253 = vadd.f32 %v3204, %v2865
  %v3254 = vadd.f32 %v3205, %v2865
  %v3255 = vadd.f32 %v3206, %v2865
  %v3256 = vadd.f32 %v3207, %v2865
  %v3257 = vadd.f32 %v3208, %v2865
  %v3258 = vadd.f32 %v3209, %v2865
  %v3259 = vmax.f32 %v3210, 0.0
  %v3260 = vmax.f32 %v3211, 0.0
  %v3261 = vmax.f32 %v3212, 0.0
  %v3262 = vmax.f32 %v3213, 0.0
  %v3263 = vmax.f32 %v3214, 0.0
  %v3264 = vmax.f32 %v3215, 0.0
  %v3265 = vmax.f32 %v3216, 0.0
  %v3266 = vmax.f32 %v3217, 0.0
  %v3267 = vmax.f32 %v3218, 0.0
  %v3268 = vmax.f32 %v3219, 0.0
  %v3269 = vmax.f32 %v3220, 0.0
  %v3270 = vmax.f32 %v3221, 0.0
  %v3271 = vmax.f32 %v3222, 0.0
  %v3272 = vmax.f32 %v3223, 0.0
  %v3273 = vmax.f32 %v3224, 0.0
  %v3274 = vmax.f32 %v3225, 0.0
  %v3275 = vmax.f32 %v3226, 0.0
  %v3276 = vmax.f32 %v3227, 0.0
  %v3277 = vmax.f32 %v3228, 0.0
  %v3278 = vmax.f32 %v3229, 0.0
  %v3279 = vmax.f32 %v3230, 0.0
  %v3280 = vmax.f32 %v3231, 0.0
  %v3281 = vmax.f32 %v3232, 0.0
  %v3282 = vmax.f32 %v3233, 0.0
  %v3283 = vmax.f32 %v3234, 0.0
  %v3284 = vmax.f32 %v3235, 0.0
  %v3285 = vmax.f32 %v3236, 0.0
  %v3286 = vmax.f32 %v3237, 0.0
  %v3287 = vmax.f32 %v3238, 0.0
  %v3288 = vmax.f32 %v3239, 0.0
  %v3289 = vmax.f32 %v3240, 0.0
  %v3290 = vmax.f32 %v3241, 0.0
  %v3291 = vmax.f32 %v3242, 0.0
  %v3292 = vmax.f32 %v3243, 0.0
  %v3293 = vmax.f32 %v3244, 0.0
  %v3294 = vmax.f32 %v3245, 0.0
  %v3295 = vmax.f32 %v3246, 0.0
  %v3296 = vmax.f32 %v3247, 0.0
  %v3297 = vmax.f32 %v3248, 0.0
  %v3298 = vmax.f32 %v3249, 0.0
  %v3299 = vmax.f32 %v3250, 0.0
  %v3300 = vmax.f32 %v3251, 0.0
  %v3301 = vmax.f32 %v3252, 0.0
  %v3302 = vmax.f32 %v3253, 0.0
  %v3303 = vmax.f32 %v3254, 0.0
  %v3304 = vmax.f32 %v3255, 0.0
  %v3305 = vmax.f32 %v3256, 0.0
  %v3306 = vmax.f32 %v3257, 0.0
  %v3307 = vmax.f32 %v3258, 0.0
  %v3308 = vmax.f32 %v3112, %v3259
  %v3309 = vmax.f32 %v3113, %v3260
  %v3310 = vmax.f32 %v3114, %v3261
  %v3311 = vmax.f32 %v3115, %v3262
  %v3312 = vmax.f32 %v3116, %v3263
  %v3313 = vmax.f32 %v3117, %v3264
  %v3314 = vmax.f32 %v3118, %v3265
  %v3315 = vmax.f32 %v3119, %v3266
  %v3316 = vmax.f32 %v3120, %v3267
  %v3317 = vmax.f32 %v3121, %v3268
  %v3318 = vmax.f32 %v3122, %v3269
  %v3319 = vmax.f32 %v3123, %v3270
  %v3320 = vmax.f32 %v3124, %v3271
  %v3321 = vmax.f32 %v3125, %v3272
  %v3322 = vmax.f32 %v3126, %v3273
  %v3323 = vmax.f32 %v3127, %v3274
  %v3324 = vmax.f32 %v3128, %v3275
  %v3325 = vmax.f32 %v3129, %v3276
  %v3326 = vmax.f32 %v3130, %v3277
  %v3327 = vmax.f32 %v3131, %v3278
  %v3328 = vmax.f32 %v3132, %v3279
  %v3329 = vmax.f32 %v3133, %v3280
  %v3330 = vmax.f32 %v3134, %v3281
  %v3331 = vmax.f32 %v3135, %v3282
  %v3332 = vmax.f32 %v3136, %v3283
  %v3333 = vmax.f32 %v3137, %v3284
  %v3334 = vmax.f32 %v3138, %v3285
  %v3335 = vmax.f32 %v3139, %v3286
  %v3336 = vmax.f32 %v3140, %v3287
  %v3337 = vmax.f32 %v3141, %v3288
  %v3338 = vmax.f32 %v3142, %v3289
  %v3339 = vmax.f32 %v3143, %v3290
  %v3340 = vmax.f32 %v3144, %v3291
  %v3341 = vmax.f32 %v3145, %v3292
  %v3342 = vmax.f32 %v3146, %v3293
  %v3343 = vmax.f32 %v3147, %v3294
  %v3344 = vmax.f32 %v3148, %v3295
  %v3345 = vmax.f32 %v3149, %v3296
  %v3346 = vmax.f32 %v3150, %v3297
  %v3347 = vmax.f32 %v3151, %v3298
  %v3348 = vmax.f32 %v3152, %v3299
  %v3349 = vmax.f32 %v3153, %v3300
  %v3350 = vmax.f32 %v3154, %v3301
  %v3351 = vmax.f32 %v3155, %v3302
  %v3352 = vmax.f32 %v3156, %v3303
  %v3353 = vmax.f32 %v3157, %v3304
  %v3354 = vmax.f32 %v3158, %v3305
  %v3355 = vmax.f32 %v3159, %v3306
  %v3356 = vmax.f32 %v3160, %v3307
  %v3357 = vmul.f32 %v1448, %v2813
  %v3358 = vmul.f32 %v1450, %v2813
  %v3359 = vmul.f32 %v1453, %v2813
  %v3360 = vmul.f32 %v1455, %v2813
  %v3361 = vmul.f32 %v1458, %v2813
  %v3362 = vmul.f32 %v1460, %v2813
  %v3363 = vmul.f32 %v1463, %v2813
  %v3364 = vmul.f32 %v1465, %v2813
  %v3365 = vmul.f32 %v1468, %v2813
  %v3366 = vmul.f32 %v1470, %v2813
  %v3367 = vmul.f32 %v1473, %v2813
  %v3368 = vmul.f32 %v1475, %v2813
  %v3369 = vmul.f32 %v1478, %v2813
  %v3370 = vmul.f32 %v1480, %v2813
  %v3371 = vmul.f32 %v1483, %v2813
  %v3372 = vmul.f32 %v1485, %v2813
  %v3373 = vmul.f32 %v1488, %v2813
  %v3374 = vmul.f32 %v1490, %v2813
  %v3375 = vmul.f32 %v1493, %v2813
  %v3376 = vmul.f32 %v1495, %v2813
  %v3377 = vmul.f32 %v1498, %v2813
  %v3378 = vmul.f32 %v1500, %v2813
  %v3379 = vmul.f32 %v1503, %v2813
  %v3380 = vmul.f32 %v1505, %v2813
  %v3381 = vmul.f32 %v1508, %v2813
  %v3382 = vmul.f32 %v1510, %v2813
  %v3383 = vmul.f32 %v1513, %v2813
  %v3384 = vmul.f32 %v1515, %v2813
  %v3385 = vmul.f32 %v1518, %v2813
  %v3386 = vmul.f32 %v1520, %v2813
  %v3387 = vmul.f32 %v1523, %v2813
  %v3388 = vmul.f32 %v1525, %v2813
  %v3389 = vmul.f32 %v1528, %v2813
  %v3390 = vmul.f32 %v1530, %v2813
  %v3391 = vmul.f32 %v1533, %v2813
  %v3392 = vmul.f32 %v1535, %v2813
  %v3393 = vmul.f32 %v1538, %v2813
  %v3394 = vmul.f32 %v1540, %v2813
  %v3395 = vmul.f32 %v1543, %v2813
  %v3396 = vmul.f32 %v1545, %v2813
  %v3397 = vmul.f32 %v1548, %v2813
  %v3398 = vmul.f32 %v1550, %v2813
  %v3399 = vmul.f32 %v1553, %v2813
  %v3400 = vmul.f32 %v1555, %v2813
  %v3401 = vmul.f32 %v1558, %v2813
  %v3402 = vmul.f32 %v1560, %v2813
  %v3403 = vmul.f32 %v1563, %v2813
  %v3404 = vmul.f32 %v1565, %v2813
  %v3405 = vmul.f32 %v1568, %v2813
  %v3406 = vadd.f32 %v3357, %v2865
  %v3407 = vadd.f32 %v3358, %v2865
  %v3408 = vadd.f32 %v3359, %v2865
  %v3409 = vadd.f32 %v3360, %v2865
  %v3410 = vadd.f32 %v3361, %v2865
  %v3411 = vadd.f32 %v3362, %v2865
  %v3412 = vadd.f32 %v3363, %v2865
  %v3413 = vadd.f32 %v3364, %v2865
  %v3414 = vadd.f32 %v3365, %v2865
  %v3415 = vadd.f32 %v3366, %v2865
  %v3416 = vadd.f32 %v3367, %v2865
  %v3417 = vadd.f32 %v3368, %v2865
  %v3418 = vadd.f32 %v3369, %v2865
  %v3419 = vadd.f32 %v3370, %v2865
  %v3420 = vadd.f32 %v3371, %v2865
  %v3421 = vadd.f32 %v3372, %v2865
  %v3422 = vadd.f32 %v3373, %v2865
  %v3423 = vadd.f32 %v3374, %v2865
  %v3424 = vadd.f32 %v3375, %v2865
  %v3425 = vadd.f32 %v3376, %v2865
  %v3426 = vadd.f32 %v3377, %v2865
  %v3427 = vadd.f32 %v3378, %v2865
  %v3428 = vadd.f32 %v3379, %v2865
  %v3429 = vadd.f32 %v3380, %v2865
  %v3430 = vadd.f32 %v3381, %v2865
  %v3431 = vadd.f32 %v3382, %v2865
  %v3432 = vadd.f32 %v3383, %v2865
  %v3433 = vadd.f32 %v3384, %v2865
  %v3434 = vadd.f32 %v3385, %v2865
  %v3435 = vadd.f32 %v3386, %v2865
  %v3436 = vadd.f32 %v3387, %v2865
  %v3437 = vadd.f32 %v3388, %v2865
  %v3438 = vadd.f32 %v3389, %v2865
  %v3439 = vadd.f32 %v3390, %v2865
  %v3440 = vadd.f32 %v3391, %v2865
  %v3441 = vadd.f32 %v3392, %v2865
  %v3442 = vadd.f32 %v3393, %v2865
  %v3443 = vadd.f32 %v3394, %v2865
  %v3444 = vadd.f32 %v3395, %v2865
  %v3445 = vadd.f32 %v3396, %v2865
  %v3446 = vadd.f32 %v3397, %v2865
  %v3447 = vadd.f32 %v3398, %v2865
  %v3448 = vadd.f32 %v3399, %v2865
  %v3449 = vadd.f32 %v3400, %v2865
  %v3450 = vadd.f32 %v3401, %v2865
  %v3451 = vadd.f32 %v3402, %v2865
  %v3452 = vadd.f32 %v3403, %v2865
  %v3453 = vadd.f32 %v3404, %v2865
  %v3454 = vadd.f32 %v3405, %v2865
  %v3455 = vmax.f32 %v3406, 0.0
  %v3456 = vmax.f32 %v3407, 0.0
  %v3457 = vmax.f32 %v3408, 0.0
  %v3458 = vmax.f32 %v3409, 0.0
  %v3459 = vmax.f32 %v3410, 0.0
  %v3460 = vmax.f32 %v3411, 0.0
  %v3461 = vmax.f32 %v3412, 0.0
  %v3462 = vmax.f32 %v3413, 0.0
  %v3463 = vmax.f32 %v3414, 0.0
  %v3464 = vmax.f32 %v3415, 0.0
  %v3465 = vmax.f32 %v3416, 0.0
  %v3466 = vmax.f32 %v3417, 0.0
  %v3467 = vmax.f32 %v3418, 0.0
  %v3468 = vmax.f32 %v3419, 0.0
  %v3469 = vmax.f32 %v3420, 0.0
  %v3470 = vmax.f32 %v3421, 0.0
  %v3471 = vmax.f32 %v3422, 0.0
  %v3472 = vmax.f32 %v3423, 0.0
  %v3473 = vmax.f32 %v3424, 0.0
  %v3474 = vmax.f32 %v3425, 0.0
  %v3475 = vmax.f32 %v3426, 0.0
  %v3476 = vmax.f32 %v3427, 0.0
  %v3477 = vmax.f32 %v3428, 0.0
  %v3478 = vmax.f32 %v3429, 0.0
  %v3479 = vmax.f32 %v3430, 0.0
  %v3480 = vmax.f32 %v3431, 0.0
  %v3481 = vmax.f32 %v3432, 0.0
  %v3482 = vmax.f32 %v3433, 0.0
  %v3483 = vmax.f32 %v3434, 0.0
  %v3484 = vmax.f32 %v3435, 0.0
  %v3485 = vmax.f32 %v3436, 0.0
  %v3486 = vmax.f32 %v3437, 0.0
  %v3487 = vmax.f32 %v3438, 0.0
  %v3488 = vmax.f32 %v3439, 0.0
  %v3489 = vmax.f32 %v3440, 0.0
  %v3490 = vmax.f32 %v3441, 0.0
  %v3491 = vmax.f32 %v3442, 0.0
  %v3492 = vmax.f32 %v3443, 0.0
  %v3493 = vmax.f32 %v3444, 0.0
  %v3494 = vmax.f32 %v3445, 0.0
  %v3495 = vmax.f32 %v3446, 0.0
  %v3496 = vmax.f32 %v3447, 0.0
  %v3497 = vmax.f32 %v3448, 0.0
  %v3498 = vmax.f32 %v3449, 0.0
  %v3499 = vmax.f32 %v3450, 0.0
  %v3500 = vmax.f32 %v3451, 0.0
  %v3501 = vmax.f32 %v3452, 0.0
  %v3502 = vmax.f32 %v3453, 0.0
  %v3503 = vmax.f32 %v3454, 0.0
  %v3504 = vmax.f32 %v3308, %v3455
  %v3505 = vmax.f32 %v3309, %v3456
  %v3506 = vmax.f32 %v3310, %v3457
  %v3507 = vmax.f32 %v3311, %v3458
  %v3508 = vmax.f32 %v3312, %v3459
  %v3509 = vmax.f32 %v3313, %v3460
  %v3510 = vmax.f32 %v3314, %v3461
  %v3511 = vmax.f32 %v3315, %v3462
  %v3512 = vmax.f32 %v3316, %v3463
  %v3513 = vmax.f32 %v3317, %v3464
  %v3514 = vmax.f32 %v3318, %v3465
  %v3515 = vmax.f32 %v3319, %v3466
  %v3516 = vmax.f32 %v3320, %v3467
  %v3517 = vmax.f32 %v3321, %v3468
  %v3518 = vmax.f32 %v3322, %v3469
  %v3519 = vmax.f32 %v3323, %v3470
  %v3520 = vmax.f32 %v3324, %v3471
  %v3521 = vmax.f32 %v3325, %v3472
  %v3522 = vmax.f32 %v3326, %v3473
  %v3523 = vmax.f32 %v3327, %v3474
  %v3524 = vmax.f32 %v3328, %v3475
  %v3525 = vmax.f32 %v3329, %v3476
  %v3526 = vmax.f32 %v3330, %v3477
  %v3527 = vmax.f32 %v3331, %v3478
  %v3528 = vmax.f32 %v3332, %v3479
  %v3529 = vmax.f32 %v3333, %v3480
  %v3530 = vmax.f32 %v3334, %v3481
  %v3531 = vmax.f32 %v3335, %v3482
  %v3532 = vmax.f32 %v3336, %v3483
  %v3533 = vmax.f32 %v3337, %v3484
  %v3534 = vmax.f32 %v3338, %v3485
  %v3535 = vmax.f32 %v3339, %v3486
  %v3536 = vmax.f32 %v3340, %v3487
  %v3537 = vmax.f32 %v3341, %v3488
  %v3538 = vmax.f32 %v3342, %v3489
  %v3539 = vmax.f32 %v3343, %v3490
  %v3540 = vmax.f32 %v3344, %v3491
  %v3541 = vmax.f32 %v3345, %v3492
  %v3542 = vmax.f32 %v3346, %v3493
  %v3543 = vmax.f32 %v3347, %v3494
  %v3544 = vmax.f32 %v3348, %v3495
  %v3545 = vmax.f32 %v3349, %v3496
  %v3546 = vmax.f32 %v3350, %v3497
  %v3547 = vmax.f32 %v3351, %v3498
  %v3548 = vmax.f32 %v3352, %v3499
  %v3549 = vmax.f32 %v3353, %v3500
  %v3550 = vmax.f32 %v3354, %v3501
  %v3551 = vmax.f32 %v3355, %v3502
  %v3552 = vmax.f32 %v3356, %v3503
  %3553 = vst.msk [vmem:[%s5] sm:$0xff] %vm1571, %v3504
  %3554 = vst.msk [vmem:[%s5 + $0x8] sm:$0xff] %vm1571, %v3505
  %3555 = vst.msk [vmem:[%s5 + $0x10] sm:$0xff] %vm1571, %v3506
  %3556 = vst.msk [vmem:[%s5 + $0x18] sm:$0xff] %vm1571, %v3507
  %3557 = vst.msk [vmem:[%s5 + $0x20] sm:$0xff] %vm1571, %v3508
  %3558 = vst.msk [vmem:[%s5 + $0x28] sm:$0xff] %vm1571, %v3509
  %3559 = vst.msk [vmem:[%s5 + $0x30] sm:$0xff] %vm1571, %v3510
  %3560 = vst.msk [vmem:[%s5 + $0x38] sm:$0xff] %vm1571, %v3511
  %3561 = vst.msk [vmem:[%s5 + $0x40] sm:$0xff] %vm1571, %v3512
  %3562 = vst.msk [vmem:[%s5 + $0x48] sm:$0xff] %vm1571, %v3513
  %3563 = vst.msk [vmem:[%s5 + $0x50] sm:$0xff] %vm1571, %v3514
  %3564 = vst.msk [vmem:[%s5 + $0x58] sm:$0xff] %vm1571, %v3515
  %3565 = vst.msk [vmem:[%s5 + $0x60] sm:$0xff] %vm1571, %v3516
  %3566 = vst.msk [vmem:[%s5 + $0x68] sm:$0xff] %vm1571, %v3517
  %3567 = vst.msk [vmem:[%s5 + $0x70] sm:$0xff] %vm1571, %v3518
  %3568 = vst.msk [vmem:[%s5 + $0x78] sm:$0xff] %vm1571, %v3519
  %3569 = vst.msk [vmem:[%s5 + $0x80] sm:$0xff] %vm1571, %v3520
  %3570 = vst.msk [vmem:[%s5 + $0x88] sm:$0xff] %vm1571, %v3521
  %3571 = vst.msk [vmem:[%s5 + $0x90] sm:$0xff] %vm1571, %v3522
  %3572 = vst.msk [vmem:[%s5 + $0x98] sm:$0xff] %vm1571, %v3523
  %3573 = vst.msk [vmem:[%s5 + $0xa0] sm:$0xff] %vm1571, %v3524
  %3574 = vst.msk [vmem:[%s5 + $0xa8] sm:$0xff] %vm1571, %v3525
  %3575 = vst.msk [vmem:[%s5 + $0xb0] sm:$0xff] %vm1571, %v3526
  %3576 = vst.msk [vmem:[%s5 + $0xb8] sm:$0xff] %vm1571, %v3527
  %3577 = vst.msk [vmem:[%s5 + $0xc0] sm:$0xff] %vm1571, %v3528
  %3578 = vst.msk [vmem:[%s5 + $0xc8] sm:$0xff] %vm1571, %v3529
  %3579 = vst.msk [vmem:[%s5 + $0xd0] sm:$0xff] %vm1571, %v3530
  %3580 = vst.msk [vmem:[%s5 + $0xd8] sm:$0xff] %vm1571, %v3531
  %3581 = vst.msk [vmem:[%s5 + $0xe0] sm:$0xff] %vm1571, %v3532
  %3582 = vst.msk [vmem:[%s5 + $0xe8] sm:$0xff] %vm1571, %v3533
  %3583 = vst.msk [vmem:[%s5 + $0xf0] sm:$0xff] %vm1571, %v3534
  %3584 = vst.msk [vmem:[%s5 + $0xf8] sm:$0xff] %vm1571, %v3535
  %3585 = vst.msk [vmem:[%s5 + $0x100] sm:$0xff] %vm1571, %v3536
  %3586 = vst.msk [vmem:[%s5 + $0x108] sm:$0xff] %vm1571, %v3537
  %3587 = vst.msk [vmem:[%s5 + $0x110] sm:$0xff] %vm1571, %v3538
  %3588 = vst.msk [vmem:[%s5 + $0x118] sm:$0xff] %vm1571, %v3539
  %3589 = vst.msk [vmem:[%s5 + $0x120] sm:$0xff] %vm1571, %v3540
  %3590 = vst.msk [vmem:[%s5 + $0x128] sm:$0xff] %vm1571, %v3541
  %3591 = vst.msk [vmem:[%s5 + $0x130] sm:$0xff] %vm1571, %v3542
  %3592 = vst.msk [vmem:[%s5 + $0x138] sm:$0xff] %vm1571, %v3543
  %3593 = vst.msk [vmem:[%s5 + $0x140] sm:$0xff] %vm1571, %v3544
  %3594 = vst.msk [vmem:[%s5 + $0x148] sm:$0xff] %vm1571, %v3545
  %3595 = vst.msk [vmem:[%s5 + $0x150] sm:$0xff] %vm1571, %v3546
  %3596 = vst.msk [vmem:[%s5 + $0x158] sm:$0xff] %vm1571, %v3547
  %3597 = vst.msk [vmem:[%s5 + $0x160] sm:$0xff] %vm1571, %v3548
  %3598 = vst.msk [vmem:[%s5 + $0x168] sm:$0xff] %vm1571, %v3549
  %3599 = vst.msk [vmem:[%s5 + $0x170] sm:$0xff] %vm1571, %v3550
  %3600 = vst.msk [vmem:[%s5 + $0x178] sm:$0xff] %vm1571, %v3551
  %3601 = vst.msk [vmem:[%s5 + $0x180] sm:$0xff] %vm1571, %v3552
  // Predicated region
  $region22: #{lenet5_forward.3} parent=0 // pred_check
    _
  $region23: #{lenet5_forward.3} parent=0 // pred_check_branch
    %3603 = sbr.rel (0) target = $region25
  $region24: #{lenet5_forward.3} parent=0 // pred_region
    _
  $region25: #{lenet5_forward.3} parent=0 // pred_fallthru
    _
  // Predicated region
  $region26: #{lenet5_forward.3} parent=0 // pred_check
    _
  $region27: #{lenet5_forward.3} parent=0 // pred_check_branch
    %3605 = sbr.rel (0) target = $region29
  $region28: #{lenet5_forward.3} parent=0 // pred_region
    _
  $region29: #{lenet5_forward.3} parent=0 // pred_fallthru
    _

// kernel: lenet5_forward.4
$region0: #{lenet5_forward.4}
  #allocation0 [shape = 'u32[]', space=smem, size = 0x4, offset = 0x4, fixed_abs, tag = 'smem constant byte address 0x4 - core index']
  #allocation1 [shape = 'u32[72,128]{1,0:T(1,128)}', space=vmem, size = 0x9000, scoped, tag = 'internal scratch']
  %s0 = inlined_call_operand.vmem [shape: bf16[4,50,150], index: 0, kind: input, shape index: {}]
  %s1 = inlined_call_operand.vmem [shape: bf16[150,16], index: 1, kind: input, shape index: {}]
  %s2 = inlined_call_operand.vmem [shape: f32[1,16], index: 2, kind: input, shape index: {}]
  %s3 = inlined_call_operand.vmem [shape: f32[1,16], index: 3, kind: input, shape index: {}]
  %s4 = inlined_call_operand.vmem [shape: f32[1,16], index: 4, kind: input, shape index: {}]
  %s5 = inlined_call_operand.vmem [shape: f32[50,16], index: 5, kind: output, shape index: {}]
  %s6 = sld [smem:[#allocation0]]
  $region30: #{lenet5_forward.4} parent=0
    _
  %s8 = ssub.s32 1, %s6
  %s9 = scalar_select 0, %s8, %s6
  // Predicated region
  $region2: #{lenet5_forward.4} parent=0 // pred_check
    _
  $region3: #{lenet5_forward.4} parent=0 // pred_check_branch
    %11 = sbr.rel (0) target = $region5
  $region4: #{lenet5_forward.4} parent=0 // pred_region
    _
  $region5: #{lenet5_forward.4} parent=0 // pred_fallthru
    _
  // Predicated region
  $region6: #{lenet5_forward.4} parent=0 // pred_check
    _
  $region7: #{lenet5_forward.4} parent=0 // pred_check_branch
    %13 = sbr.rel (0) target = $region9
  $region8: #{lenet5_forward.4} parent=0 // pred_region
    _
  $region9: #{lenet5_forward.4} parent=0 // pred_fallthru
    _
  // Predicated region
  $region10: #{lenet5_forward.4} parent=0 // pred_check
    _
  $region11: #{lenet5_forward.4} parent=0 // pred_check_branch
    %15 = sbr.rel (0) target = $region13
  $region12: #{lenet5_forward.4} parent=0 // pred_region
    _
  $region13: #{lenet5_forward.4} parent=0 // pred_fallthru
    _
  // Predicated region
  $region14: #{lenet5_forward.4} parent=0 // pred_check
    _
  $region15: #{lenet5_forward.4} parent=0 // pred_check_branch
    %17 = sbr.rel (0) target = $region17
  $region16: #{lenet5_forward.4} parent=0 // pred_region
    _
  $region17: #{lenet5_forward.4} parent=0 // pred_fallthru
    _
  // Predicated region
  $region18: #{lenet5_forward.4} parent=0 // pred_check
    _
  $region19: #{lenet5_forward.4} parent=0 // pred_check_branch
    %19 = sbr.rel (0) target = $region21
  $region20: #{lenet5_forward.4} parent=0 // pred_region
    _
  $region21: #{lenet5_forward.4} parent=0 // pred_fallthru
    _
  %v21 = vld [vmem:[%s0] sm:$0xff]
  %v22 = vld [vmem:[%s0 + $0x8] sm:$0xff]
  %v23 = vld [vmem:[%s0 + $0x10] sm:$0xff]
  %v24 = vld [vmem:[%s0 + $0x18] sm:$0xff]
  %v25 = vld [vmem:[%s0 + $0x20] sm:$0xff]
  %v26 = vld [vmem:[%s0 + $0x28] sm:$0xff]
  %v27 = vld [vmem:[%s0 + $0x30] sm:$0x11]
  %v28 = vld [vmem:[%s1] sm:$0xf]
  %v29 = vld [vmem:[%s1 + $0x4] sm:$0xf]
  %v30 = vld [vmem:[%s1 + $0x8] sm:$0xf]
  %v31 = vld [vmem:[%s1 + $0xc] sm:$0xf]
  %v32 = vld [vmem:[%s1 + $0x10] sm:$0xf]
  %v33 = vld [vmem:[%s1 + $0x14] sm:$0xf]
  %v34 = vld [vmem:[%s1 + $0x18] sm:$0xf]
  %v35 = vld [vmem:[%s1 + $0x1c] sm:$0xf]
  %v36 = vld [vmem:[%s1 + $0x20] sm:$0xf]
  %v37 = vld [vmem:[%s1 + $0x24] sm:$0xf]
  %v38 = vld [vmem:[%s1 + $0x28] sm:$0xf]
  %v39 = vld [vmem:[%s1 + $0x2c] sm:$0xf]
  %v40 = vld [vmem:[%s1 + $0x30] sm:$0xf]
  %v41 = vld [vmem:[%s1 + $0x34] sm:$0xf]
  %v42 = vld [vmem:[%s1 + $0x38] sm:$0xf]
  %v43 = vld [vmem:[%s1 + $0x3c] sm:$0xf]
  %v44 = vld [vmem:[%s1 + $0x40] sm:$0xf]
  %v45 = vld [vmem:[%s1 + $0x44] sm:$0xf]
  %v46 = vld [vmem:[%s1 + $0x48] sm:$0x7]
  %v47 = vld [vmem:[%s2] sm:$0x1]
  %v49 = vperm.slane %v47, 0
  %v58 = vunpack.c.l.b16 %v21
  %v59 = vunpack.c.h.b16 %v21
  %v60 = vunpack.c.l.b16 %v22
  %v61 = vunpack.c.h.b16 %v22
  %v62 = vunpack.c.l.b16 %v23
  %v63 = vunpack.c.h.b16 %v23
  %v64 = vunpack.c.l.b16 %v24
  %v65 = vunpack.c.h.b16 %v24
  %v66 = vunpack.c.l.b16 %v25
  %v67 = vunpack.c.h.b16 %v25
  %v68 = vunpack.c.l.b16 %v26
  %v69 = vunpack.c.h.b16 %v26
  %v70 = vunpack.c.l.b16 %v27
  %v71 = vunpack.c.h.b16 %v27
  %v72 = vpack.c.b16 %v60, %v58
  %v73 = vpack.c.b16 %v61, %v59
  %v74 = vpack.c.b16 %v64, %v62
  %v75 = vpack.c.b16 %v65, %v63
  %v76 = vpack.c.b16 %v68, %v66
  %v77 = vpack.c.b16 %v69, %v67
  %v78 = vpack.c.b16 %v70, %v70
  %v79 = vpack.c.b16 %v71, %v71
  %v103 = vunpack.c.l.b16 %v28
  %v104 = vunpack.c.l.b16 %v29
  %v105 = vunpack.c.l.b16 %v30
  %v106 = vunpack.c.l.b16 %v31
  %v107 = vunpack.c.l.b16 %v32
  %v108 = vunpack.c.l.b16 %v33
  %v109 = vunpack.c.l.b16 %v34
  %v110 = vunpack.c.l.b16 %v35
  %v111 = vunpack.c.l.b16 %v36
  %v112 = vunpack.c.l.b16 %v37
  %v113 = vunpack.c.l.b16 %v38
  %v114 = vunpack.c.l.b16 %v39
  %v115 = vunpack.c.l.b16 %v40
  %v116 = vunpack.c.l.b16 %v41
  %v117 = vunpack.c.l.b16 %v42
  %v118 = vunpack.c.l.b16 %v43
  %v119 = vunpack.c.l.b16 %v44
  %v120 = vunpack.c.l.b16 %v45
  %v121 = vunpack.c.l.b16 %v46
  %v122 = vpack.c.b16 %v104, %v103
  %v123 = vpack.c.b16 %v106, %v105
  %v124 = vpack.c.b16 %v108, %v107
  %v125 = vpack.c.b16 %v110, %v109
  %v126 = vpack.c.b16 %v112, %v111
  %v127 = vpack.c.b16 %v114, %v113
  %v128 = vpack.c.b16 %v116, %v115
  %v129 = vpack.c.b16 %v118, %v117
  %v130 = vpack.c.b16 %v120, %v119
  %v131 = vpack.c.b16 %v121, %v121
  %vm141 = vcmask 179200
  %v143 = vsel %vm141, %v73, 0
  %v146 = vsel %vm141, %v75, 0
  %v149 = vsel %vm141, %v77, 0
  %v152 = vsel %vm141, %v79, 0
  %vm154 = vcmask 1042432
  %v156 = vsel %vm154, %v131, 0
  %158 = vmatpush.bf16.msra.mxu0 %v129
  %159 = vmatpush.bf16.msra.mxu0 %v128
  %160 = vmatpush.bf16.msra.mxu0 %v127
  %161 = vmatpush.bf16.msra.mxu0 %v126
  %162 = vmatpush.bf16.msra.mxu0 %v125
  %163 = vmatpush.bf16.msra.mxu0 %v124
  %164 = vmatpush.bf16.msra.mxu0 %v123
  %165 = vmatpush.bf16.msra.mxu0 %v122
  %166 = vmatmul.bf16.gmra.mxu0 %v72
  %v167 = vpop.f32.mrf.mxu0
  %v168 = vadd.f32 %v49, %v167
  %v169 = vpop.f32.mrf.mxu0
  %v170 = vadd.f32 %v49, %v169
  %171 = vmatmul.bf16.gmra.mxu0 %v74
  %v172 = vpop.f32.mrf.mxu0
  %v173 = vadd.f32 %v49, %v172
  %v174 = vpop.f32.mrf.mxu0
  %v175 = vadd.f32 %v49, %v174
  %176 = vmatmul.bf16.gmra.mxu0 %v76
  %v177 = vpop.f32.mrf.mxu0
  %v178 = vadd.f32 %v49, %v177
  %v179 = vpop.f32.mrf.mxu0
  %v180 = vadd.f32 %v49, %v179
  %181 = vmatmul.bf16.gmra.mxu0 %v78
  %v182 = vpop.f32.mrf.mxu0
  %v183 = vadd.f32 %v49, %v182
  %v184 = vpop.f32.mrf.mxu0
  %185 = vdwg.mxu0
  %186 = vmatpush.bf16.msra.mxu0 0
  %187 = vmatpush.bf16.msra.mxu0 0
  %188 = vmatpush.bf16.msra.mxu0 0
  %189 = vmatpush.bf16.msra.mxu0 0
  %190 = vmatpush.bf16.msra.mxu0 0
  %191 = vmatpush.bf16.msra.mxu0 0
  %192 = vmatpush.bf16.msra.mxu0 %v156
  %193 = vmatpush.bf16.msra.mxu0 %v130
  %194 = vmatmul.bf16.gmra.mxu0 %v143
  %v195 = vpop.f32.mrf.mxu0
  %v196 = vadd.f32 %v168, %v195
  %v197 = vpop.f32.mrf.mxu0
  %v198 = vadd.f32 %v170, %v197
  %199 = vmatmul.bf16.gmra.mxu0 %v146
  %v200 = vpop.f32.mrf.mxu0
  %v201 = vadd.f32 %v173, %v200
  %v202 = vpop.f32.mrf.mxu0
  %v203 = vadd.f32 %v175, %v202
  %204 = vmatmul.bf16.gmra.mxu0 %v149
  %v205 = vpop.f32.mrf.mxu0
  %v206 = vadd.f32 %v178, %v205
  %v207 = vpop.f32.mrf.mxu0
  %v208 = vadd.f32 %v180, %v207
  %209 = vmatmul.bf16.gmra.mxu0 %v152
  %v210 = vpop.f32.mrf.mxu0
  %v211 = vadd.f32 %v183, %v210
  %v212 = vpop.f32.mrf.mxu0
  %213 = vdwg.mxu0
  %s214 = scalar_lea.vmem %s0, 56
  %v215 = vld [vmem:[%s214] sm:$0xff]
  %v216 = vld [vmem:[%s214 + $0x8] sm:$0xff]
  %v217 = vld [vmem:[%s214 + $0x10] sm:$0xff]
  %v218 = vld [vmem:[%s214 + $0x18] sm:$0xff]
  %v219 = vld [vmem:[%s214 + $0x20] sm:$0xff]
  %v220 = vld [vmem:[%s214 + $0x28] sm:$0xff]
  %v221 = vld [vmem:[%s214 + $0x30] sm:$0x11]
  %v229 = vunpack.c.l.b16 %v215
  %v230 = vunpack.c.h.b16 %v215
  %v231 = vunpack.c.l.b16 %v216
  %v232 = vunpack.c.h.b16 %v216
  %v233 = vunpack.c.l.b16 %v217
  %v234 = vunpack.c.h.b16 %v217
  %v235 = vunpack.c.l.b16 %v218
  %v236 = vunpack.c.h.b16 %v218
  %v237 = vunpack.c.l.b16 %v219
  %v238 = vunpack.c.h.b16 %v219
  %v239 = vunpack.c.l.b16 %v220
  %v240 = vunpack.c.h.b16 %v220
  %v241 = vunpack.c.l.b16 %v221
  %v242 = vunpack.c.h.b16 %v221
  %v243 = vpack.c.b16 %v231, %v229
  %v244 = vpack.c.b16 %v232, %v230
  %v245 = vpack.c.b16 %v235, %v233
  %v246 = vpack.c.b16 %v236, %v234
  %v247 = vpack.c.b16 %v239, %v237
  %v248 = vpack.c.b16 %v240, %v238
  %v249 = vpack.c.b16 %v241, %v241
  %v250 = vpack.c.b16 %v242, %v242
  %v256 = vsel %vm141, %v244, 0
  %v259 = vsel %vm141, %v246, 0
  %v262 = vsel %vm141, %v248, 0
  %v265 = vsel %vm141, %v250, 0
  %267 = vmatpush.bf16.msra.mxu0 %v129
  %268 = vmatpush.bf16.msra.mxu0 %v128
  %269 = vmatpush.bf16.msra.mxu0 %v127
  %270 = vmatpush.bf16.msra.mxu0 %v126
  %271 = vmatpush.bf16.msra.mxu0 %v125
  %272 = vmatpush.bf16.msra.mxu0 %v124
  %273 = vmatpush.bf16.msra.mxu0 %v123
  %274 = vmatpush.bf16.msra.mxu0 %v122
  %275 = vmatmul.bf16.gmra.mxu0 %v243
  %v276 = vpop.f32.mrf.mxu0
  %v277 = vadd.f32 %v49, %v276
  %v278 = vpop.f32.mrf.mxu0
  %v279 = vadd.f32 %v49, %v278
  %280 = vmatmul.bf16.gmra.mxu0 %v245
  %v281 = vpop.f32.mrf.mxu0
  %v282 = vadd.f32 %v49, %v281
  %v283 = vpop.f32.mrf.mxu0
  %v284 = vadd.f32 %v49, %v283
  %285 = vmatmul.bf16.gmra.mxu0 %v247
  %v286 = vpop.f32.mrf.mxu0
  %v287 = vadd.f32 %v49, %v286
  %v288 = vpop.f32.mrf.mxu0
  %v289 = vadd.f32 %v49, %v288
  %290 = vmatmul.bf16.gmra.mxu0 %v249
  %v291 = vpop.f32.mrf.mxu0
  %v292 = vadd.f32 %v49, %v291
  %v293 = vpop.f32.mrf.mxu0
  %294 = vdwg.mxu0
  %295 = vmatpush.bf16.msra.mxu0 0
  %296 = vmatpush.bf16.msra.mxu0 0
  %297 = vmatpush.bf16.msra.mxu0 0
  %298 = vmatpush.bf16.msra.mxu0 0
  %299 = vmatpush.bf16.msra.mxu0 0
  %300 = vmatpush.bf16.msra.mxu0 0
  %301 = vmatpush.bf16.msra.mxu0 %v156
  %302 = vmatpush.bf16.msra.mxu0 %v130
  %303 = vmatmul.bf16.gmra.mxu0 %v256
  %v304 = vpop.f32.mrf.mxu0
  %v305 = vadd.f32 %v277, %v304
  %v306 = vpop.f32.mrf.mxu0
  %v307 = vadd.f32 %v279, %v306
  %308 = vmatmul.bf16.gmra.mxu0 %v259
  %v309 = vpop.f32.mrf.mxu0
  %v310 = vadd.f32 %v282, %v309
  %v311 = vpop.f32.mrf.mxu0
  %v312 = vadd.f32 %v284, %v311
  %313 = vmatmul.bf16.gmra.mxu0 %v262
  %v314 = vpop.f32.mrf.mxu0
  %v315 = vadd.f32 %v287, %v314
  %v316 = vpop.f32.mrf.mxu0
  %v317 = vadd.f32 %v289, %v316
  %318 = vmatmul.bf16.gmra.mxu0 %v265
  %v319 = vpop.f32.mrf.mxu0
  %v320 = vadd.f32 %v292, %v319
  %v321 = vpop.f32.mrf.mxu0
  %322 = vdwg.mxu0
  %s323 = scalar_lea.vmem %s0, 112
  %v324 = vld [vmem:[%s323] sm:$0xff]
  %v325 = vld [vmem:[%s323 + $0x8] sm:$0xff]
  %v326 = vld [vmem:[%s323 + $0x10] sm:$0xff]
  %v327 = vld [vmem:[%s323 + $0x18] sm:$0xff]
  %v328 = vld [vmem:[%s323 + $0x20] sm:$0xff]
  %v329 = vld [vmem:[%s323 + $0x28] sm:$0xff]
  %v330 = vld [vmem:[%s323 + $0x30] sm:$0x11]
  %v338 = vunpack.c.l.b16 %v324
  %v339 = vunpack.c.h.b16 %v324
  %v340 = vunpack.c.l.b16 %v325
  %v341 = vunpack.c.h.b16 %v325
  %v342 = vunpack.c.l.b16 %v326
  %v343 = vunpack.c.h.b16 %v326
  %v344 = vunpack.c.l.b16 %v327
  %v345 = vunpack.c.h.b16 %v327
  %v346 = vunpack.c.l.b16 %v328
  %v347 = vunpack.c.h.b16 %v328
  %v348 = vunpack.c.l.b16 %v329
  %v349 = vunpack.c.h.b16 %v329
  %v350 = vunpack.c.l.b16 %v330
  %v351 = vunpack.c.h.b16 %v330
  %v352 = vpack.c.b16 %v340, %v338
  %v353 = vpack.c.b16 %v341, %v339
  %v354 = vpack.c.b16 %v344, %v342
  %v355 = vpack.c.b16 %v345, %v343
  %v356 = vpack.c.b16 %v348, %v346
  %v357 = vpack.c.b16 %v349, %v347
  %v358 = vpack.c.b16 %v350, %v350
  %v359 = vpack.c.b16 %v351, %v351
  %v365 = vsel %vm141, %v353, 0
  %v368 = vsel %vm141, %v355, 0
  %v371 = vsel %vm141, %v357, 0
  %v374 = vsel %vm141, %v359, 0
  %376 = vmatpush.bf16.msra.mxu0 %v129
  %377 = vmatpush.bf16.msra.mxu0 %v128
  %378 = vmatpush.bf16.msra.mxu0 %v127
  %379 = vmatpush.bf16.msra.mxu0 %v126
  %380 = vmatpush.bf16.msra.mxu0 %v125
  %381 = vmatpush.bf16.msra.mxu0 %v124
  %382 = vmatpush.bf16.msra.mxu0 %v123
  %383 = vmatpush.bf16.msra.mxu0 %v122
  %384 = vmatmul.bf16.gmra.mxu0 %v352
  %v385 = vpop.f32.mrf.mxu0
  %v386 = vadd.f32 %v49, %v385
  %v387 = vpop.f32.mrf.mxu0
  %v388 = vadd.f32 %v49, %v387
  %389 = vmatmul.bf16.gmra.mxu0 %v354
  %v390 = vpop.f32.mrf.mxu0
  %v391 = vadd.f32 %v49, %v390
  %v392 = vpop.f32.mrf.mxu0
  %v393 = vadd.f32 %v49, %v392
  %394 = vmatmul.bf16.gmra.mxu0 %v356
  %v395 = vpop.f32.mrf.mxu0
  %v396 = vadd.f32 %v49, %v395
  %v397 = vpop.f32.mrf.mxu0
  %v398 = vadd.f32 %v49, %v397
  %399 = vmatmul.bf16.gmra.mxu0 %v358
  %v400 = vpop.f32.mrf.mxu0
  %v401 = vadd.f32 %v49, %v400
  %v402 = vpop.f32.mrf.mxu0
  %403 = vdwg.mxu0
  %404 = vmatpush.bf16.msra.mxu0 0
  %405 = vmatpush.bf16.msra.mxu0 0
  %406 = vmatpush.bf16.msra.mxu0 0
  %407 = vmatpush.bf16.msra.mxu0 0
  %408 = vmatpush.bf16.msra.mxu0 0
  %409 = vmatpush.bf16.msra.mxu0 0
  %410 = vmatpush.bf16.msra.mxu0 %v156
  %411 = vmatpush.bf16.msra.mxu0 %v130
  %412 = vmatmul.bf16.gmra.mxu0 %v365
  %v413 = vpop.f32.mrf.mxu0
  %v414 = vadd.f32 %v386, %v413
  %v415 = vpop.f32.mrf.mxu0
  %v416 = vadd.f32 %v388, %v415
  %417 = vmatmul.bf16.gmra.mxu0 %v368
  %v418 = vpop.f32.mrf.mxu0
  %v419 = vadd.f32 %v391, %v418
  %v420 = vpop.f32.mrf.mxu0
  %v421 = vadd.f32 %v393, %v420
  %422 = vmatmul.bf16.gmra.mxu0 %v371
  %v423 = vpop.f32.mrf.mxu0
  %v424 = vadd.f32 %v396, %v423
  %v425 = vpop.f32.mrf.mxu0
  %v426 = vadd.f32 %v398, %v425
  %427 = vmatmul.bf16.gmra.mxu0 %v374
  %v428 = vpop.f32.mrf.mxu0
  %v429 = vadd.f32 %v401, %v428
  %v430 = vpop.f32.mrf.mxu0
  %431 = vdwg.mxu0
  %s432 = scalar_lea.vmem %s0, 168
  %v433 = vld [vmem:[%s432] sm:$0xff]
  %v434 = vld [vmem:[%s432 + $0x8] sm:$0xff]
  %v435 = vld [vmem:[%s432 + $0x10] sm:$0xff]
  %v436 = vld [vmem:[%s432 + $0x18] sm:$0xff]
  %v437 = vld [vmem:[%s432 + $0x20] sm:$0xff]
  %v438 = vld [vmem:[%s432 + $0x28] sm:$0xff]
  %v439 = vld [vmem:[%s432 + $0x30] sm:$0x11]
  %v447 = vunpack.c.l.b16 %v433
  %v448 = vunpack.c.h.b16 %v433
  %v449 = vunpack.c.l.b16 %v434
  %v450 = vunpack.c.h.b16 %v434
  %v451 = vunpack.c.l.b16 %v435
  %v452 = vunpack.c.h.b16 %v435
  %v453 = vunpack.c.l.b16 %v436
  %v454 = vunpack.c.h.b16 %v436
  %v455 = vunpack.c.l.b16 %v437
  %v456 = vunpack.c.h.b16 %v437
  %v457 = vunpack.c.l.b16 %v438
  %v458 = vunpack.c.h.b16 %v438
  %v459 = vunpack.c.l.b16 %v439
  %v460 = vunpack.c.h.b16 %v439
  %v461 = vpack.c.b16 %v449, %v447
  %v462 = vpack.c.b16 %v450, %v448
  %v463 = vpack.c.b16 %v453, %v451
  %v464 = vpack.c.b16 %v454, %v452
  %v465 = vpack.c.b16 %v457, %v455
  %v466 = vpack.c.b16 %v458, %v456
  %v467 = vpack.c.b16 %v459, %v459
  %v468 = vpack.c.b16 %v460, %v460
  %v474 = vsel %vm141, %v462, 0
  %v477 = vsel %vm141, %v464, 0
  %v480 = vsel %vm141, %v466, 0
  %v483 = vsel %vm141, %v468, 0
  %485 = vmatpush.bf16.msra.mxu0 %v129
  %486 = vmatpush.bf16.msra.mxu0 %v128
  %487 = vmatpush.bf16.msra.mxu0 %v127
  %488 = vmatpush.bf16.msra.mxu0 %v126
  %489 = vmatpush.bf16.msra.mxu0 %v125
  %490 = vmatpush.bf16.msra.mxu0 %v124
  %491 = vmatpush.bf16.msra.mxu0 %v123
  %492 = vmatpush.bf16.msra.mxu0 %v122
  %493 = vmatmul.bf16.gmra.mxu0 %v461
  %v494 = vpop.f32.mrf.mxu0
  %v495 = vadd.f32 %v49, %v494
  %v496 = vpop.f32.mrf.mxu0
  %v497 = vadd.f32 %v49, %v496
  %498 = vmatmul.bf16.gmra.mxu0 %v463
  %v499 = vpop.f32.mrf.mxu0
  %v500 = vadd.f32 %v49, %v499
  %v501 = vpop.f32.mrf.mxu0
  %v502 = vadd.f32 %v49, %v501
  %503 = vmatmul.bf16.gmra.mxu0 %v465
  %v504 = vpop.f32.mrf.mxu0
  %v505 = vadd.f32 %v49, %v504
  %v506 = vpop.f32.mrf.mxu0
  %v507 = vadd.f32 %v49, %v506
  %508 = vmatmul.bf16.gmra.mxu0 %v467
  %v509 = vpop.f32.mrf.mxu0
  %v510 = vadd.f32 %v49, %v509
  %v511 = vpop.f32.mrf.mxu0
  %512 = vdwg.mxu0
  %513 = vmatpush.bf16.msra.mxu0 0
  %514 = vmatpush.bf16.msra.mxu0 0
  %515 = vmatpush.bf16.msra.mxu0 0
  %516 = vmatpush.bf16.msra.mxu0 0
  %517 = vmatpush.bf16.msra.mxu0 0
  %518 = vmatpush.bf16.msra.mxu0 0
  %519 = vmatpush.bf16.msra.mxu0 %v156
  %520 = vmatpush.bf16.msra.mxu0 %v130
  %521 = vmatmul.bf16.gmra.mxu0 %v474
  %v522 = vpop.f32.mrf.mxu0
  %v523 = vadd.f32 %v495, %v522
  %v524 = vpop.f32.mrf.mxu0
  %v525 = vadd.f32 %v497, %v524
  %526 = vmatmul.bf16.gmra.mxu0 %v477
  %v527 = vpop.f32.mrf.mxu0
  %v528 = vadd.f32 %v500, %v527
  %v529 = vpop.f32.mrf.mxu0
  %v530 = vadd.f32 %v502, %v529
  %531 = vmatmul.bf16.gmra.mxu0 %v480
  %v532 = vpop.f32.mrf.mxu0
  %v533 = vadd.f32 %v505, %v532
  %v534 = vpop.f32.mrf.mxu0
  %v535 = vadd.f32 %v507, %v534
  %536 = vmatmul.bf16.gmra.mxu0 %v483
  %v537 = vpop.f32.mrf.mxu0
  %v538 = vadd.f32 %v510, %v537
  %v539 = vpop.f32.mrf.mxu0
  %540 = vdwg.mxu0
  %vm541 = vcmask 130048
  %v542 = vsel %vm541, %v196, 0.0
  %v543 = vsel %vm541, %v198, 0.0
  %v544 = vadd.f32 %v542, %v543
  %v545 = vsel %vm541, %v201, 0.0
  %v546 = vadd.f32 %v544, %v545
  %v547 = vsel %vm541, %v203, 0.0
  %v548 = vadd.f32 %v546, %v547
  %v549 = vsel %vm541, %v206, 0.0
  %v550 = vadd.f32 %v548, %v549
  %v551 = vsel %vm541, %v208, 0.0
  %v552 = vadd.f32 %v550, %v551
  %vm553 = vcmask 123904
  %v554 = vsel %vm553, %v211, 0.0
  %v555 = vadd.f32 %v552, %v554
  %v556 = vrot.slane %v555, 4
  %v557 = vadd.f32 %v555, %v556
  %v558 = vrot.slane %v557, 2
  %v559 = vadd.f32 %v557, %v558
  %v560 = vrot.slane %v559, 1
  %v561 = vadd.f32 %v559, %v560
  %v562 = vsel %vm541, %v305, 0.0
  %v563 = vsel %vm541, %v307, 0.0
  %v564 = vadd.f32 %v562, %v563
  %v565 = vsel %vm541, %v310, 0.0
  %v566 = vadd.f32 %v564, %v565
  %v567 = vsel %vm541, %v312, 0.0
  %v568 = vadd.f32 %v566, %v567
  %v569 = vsel %vm541, %v315, 0.0
  %v570 = vadd.f32 %v568, %v569
  %v571 = vsel %vm541, %v317, 0.0
  %v572 = vadd.f32 %v570, %v571
  %v573 = vsel %vm553, %v320, 0.0
  %v574 = vadd.f32 %v572, %v573
  %v575 = vrot.slane %v574, 4
  %v576 = vadd.f32 %v574, %v575
  %v577 = vrot.slane %v576, 2
  %v578 = vadd.f32 %v576, %v577
  %v579 = vrot.slane %v578, 1
  %v580 = vadd.f32 %v578, %v579
  %v581 = vadd.f32 %v561, %v580
  %v582 = vsel %vm541, %v414, 0.0
  %v583 = vsel %vm541, %v416, 0.0
  %v584 = vadd.f32 %v582, %v583
  %v585 = vsel %vm541, %v419, 0.0
  %v586 = vadd.f32 %v584, %v585
  %v587 = vsel %vm541, %v421, 0.0
  %v588 = vadd.f32 %v586, %v587
  %v589 = vsel %vm541, %v424, 0.0
  %v590 = vadd.f32 %v588, %v589
  %v591 = vsel %vm541, %v426, 0.0
  %v592 = vadd.f32 %v590, %v591
  %v593 = vsel %vm553, %v429, 0.0
  %v594 = vadd.f32 %v592, %v593
  %v595 = vrot.slane %v594, 4
  %v596 = vadd.f32 %v594, %v595
  %v597 = vrot.slane %v596, 2
  %v598 = vadd.f32 %v596, %v597
  %v599 = vrot.slane %v598, 1
  %v600 = vadd.f32 %v598, %v599
  %v601 = vadd.f32 %v581, %v600
  %v602 = vsel %vm541, %v523, 0.0
  %v603 = vsel %vm541, %v525, 0.0
  %v604 = vadd.f32 %v602, %v603
  %v605 = vsel %vm541, %v528, 0.0
  %v606 = vadd.f32 %v604, %v605
  %v607 = vsel %vm541, %v530, 0.0
  %v608 = vadd.f32 %v606, %v607
  %v609 = vsel %vm541, %v533, 0.0
  %v610 = vadd.f32 %v608, %v609
  %v611 = vsel %vm541, %v535, 0.0
  %v612 = vadd.f32 %v610, %v611
  %v613 = vsel %vm553, %v538, 0.0
  %v614 = vadd.f32 %v612, %v613
  %v615 = vrot.slane %v614, 4
  %v616 = vadd.f32 %v614, %v615
  %v617 = vrot.slane %v616, 2
  %v618 = vadd.f32 %v616, %v617
  %v619 = vrot.slane %v618, 1
  %v620 = vadd.f32 %v618, %v619
  %v621 = vadd.f32 %v601, %v620
  %v622 = vmul.f32 %v621, 0.005
  %v623 = vsub.f32 %v196, %v622
  %v624 = vsub.f32 %v198, %v622
  %v625 = vsub.f32 %v201, %v622
  %v626 = vsub.f32 %v203, %v622
  %v627 = vsub.f32 %v206, %v622
  %v628 = vsub.f32 %v208, %v622
  %v629 = vsub.f32 %v211, %v622
  %v630 = vmul.f32 %v623, %v623
  %v631 = vmul.f32 %v624, %v624
  %v632 = vmul.f32 %v625, %v625
  %v633 = vmul.f32 %v626, %v626
  %v634 = vmul.f32 %v627, %v627
  %v635 = vmul.f32 %v628, %v628
  %v636 = vmul.f32 %v629, %v629
  %v637 = vsel %vm541, %v630, 0.0
  %v638 = vsel %vm541, %v631, 0.0
  %v639 = vadd.f32 %v637, %v638
  %v640 = vsel %vm541, %v632, 0.0
  %v641 = vadd.f32 %v639, %v640
  %v642 = vsel %vm541, %v633, 0.0
  %v643 = vadd.f32 %v641, %v642
  %v644 = vsel %vm541, %v634, 0.0
  %v645 = vadd.f32 %v643, %v644
  %v646 = vsel %vm541, %v635, 0.0
  %v647 = vadd.f32 %v645, %v646
  %v648 = vsel %vm553, %v636, 0.0
  %v649 = vadd.f32 %v647, %v648
  %v650 = vrot.slane %v649, 4
  %v651 = vadd.f32 %v649, %v650
  %v652 = vrot.slane %v651, 2
  %v653 = vadd.f32 %v651, %v652
  %v654 = vrot.slane %v653, 1
  %v655 = vadd.f32 %v653, %v654
  %v656 = vsub.f32 %v305, %v622
  %v657 = vsub.f32 %v307, %v622
  %v658 = vsub.f32 %v310, %v622
  %v659 = vsub.f32 %v312, %v622
  %v660 = vsub.f32 %v315, %v622
  %v661 = vsub.f32 %v317, %v622
  %v662 = vsub.f32 %v320, %v622
  %v663 = vmul.f32 %v656, %v656
  %v664 = vmul.f32 %v657, %v657
  %v665 = vmul.f32 %v658, %v658
  %v666 = vmul.f32 %v659, %v659
  %v667 = vmul.f32 %v660, %v660
  %v668 = vmul.f32 %v661, %v661
  %v669 = vmul.f32 %v662, %v662
  %v670 = vsel %vm541, %v663, 0.0
  %v671 = vsel %vm541, %v664, 0.0
  %v672 = vadd.f32 %v670, %v671
  %v673 = vsel %vm541, %v665, 0.0
  %v674 = vadd.f32 %v672, %v673
  %v675 = vsel %vm541, %v666, 0.0
  %v676 = vadd.f32 %v674, %v675
  %v677 = vsel %vm541, %v667, 0.0
  %v678 = vadd.f32 %v676, %v677
  %v679 = vsel %vm541, %v668, 0.0
  %v680 = vadd.f32 %v678, %v679
  %v681 = vsel %vm553, %v669, 0.0
  %v682 = vadd.f32 %v680, %v681
  %v683 = vrot.slane %v682, 4
  %v684 = vadd.f32 %v682, %v683
  %v685 = vrot.slane %v684, 2
  %v686 = vadd.f32 %v684, %v685
  %v687 = vrot.slane %v686, 1
  %v688 = vadd.f32 %v686, %v687
  %v689 = vadd.f32 %v655, %v688
  %v690 = vsub.f32 %v414, %v622
  %v691 = vsub.f32 %v416, %v622
  %v692 = vsub.f32 %v419, %v622
  %v693 = vsub.f32 %v421, %v622
  %v694 = vsub.f32 %v424, %v622
  %v695 = vsub.f32 %v426, %v622
  %v696 = vsub.f32 %v429, %v622
  %v697 = vmul.f32 %v690, %v690
  %v698 = vmul.f32 %v691, %v691
  %v699 = vmul.f32 %v692, %v692
  %v700 = vmul.f32 %v693, %v693
  %v701 = vmul.f32 %v694, %v694
  %v702 = vmul.f32 %v695, %v695
  %v703 = vmul.f32 %v696, %v696
  %v704 = vsel %vm541, %v697, 0.0
  %v705 = vsel %vm541, %v698, 0.0
  %v706 = vadd.f32 %v704, %v705
  %v707 = vsel %vm541, %v699, 0.0
  %v708 = vadd.f32 %v706, %v707
  %v709 = vsel %vm541, %v700, 0.0
  %v710 = vadd.f32 %v708, %v709
  %v711 = vsel %vm541, %v701, 0.0
  %v712 = vadd.f32 %v710, %v711
  %v713 = vsel %vm541, %v702, 0.0
  %v714 = vadd.f32 %v712, %v713
  %v715 = vsel %vm553, %v703, 0.0
  %v716 = vadd.f32 %v714, %v715
  %v717 = vrot.slane %v716, 4
  %v718 = vadd.f32 %v716, %v717
  %v719 = vrot.slane %v718, 2
  %v720 = vadd.f32 %v718, %v719
  %v721 = vrot.slane %v720, 1
  %v722 = vadd.f32 %v720, %v721
  %v723 = vadd.f32 %v689, %v722
  %v724 = vsub.f32 %v523, %v622
  %v725 = vsub.f32 %v525, %v622
  %v726 = vsub.f32 %v528, %v622
  %v727 = vsub.f32 %v530, %v622
  %v728 = vsub.f32 %v533, %v622
  %v729 = vsub.f32 %v535, %v622
  %v730 = vsub.f32 %v538, %v622
  %v731 = vmul.f32 %v724, %v724
  %v732 = vmul.f32 %v725, %v725
  %v733 = vmul.f32 %v726, %v726
  %v734 = vmul.f32 %v727, %v727
  %v735 = vmul.f32 %v728, %v728
  %v736 = vmul.f32 %v729, %v729
  %v737 = vmul.f32 %v730, %v730
  %v738 = vsel %vm541, %v731, 0.0
  %v739 = vsel %vm541, %v732, 0.0
  %v740 = vadd.f32 %v738, %v739
  %v741 = vsel %vm541, %v733, 0.0
  %v742 = vadd.f32 %v740, %v741
  %v743 = vsel %vm541, %v734, 0.0
  %v744 = vadd.f32 %v742, %v743
  %v745 = vsel %vm541, %v735, 0.0
  %v746 = vadd.f32 %v744, %v745
  %v747 = vsel %vm541, %v736, 0.0
  %v748 = vadd.f32 %v746, %v747
  %v749 = vsel %vm553, %v737, 0.0
  %v750 = vadd.f32 %v748, %v749
  %v751 = vrot.slane %v750, 4
  %v752 = vadd.f32 %v750, %v751
  %v753 = vrot.slane %v752, 2
  %v754 = vadd.f32 %v752, %v753
  %v755 = vrot.slane %v754, 1
  %v756 = vadd.f32 %v754, %v755
  %v757 = vadd.f32 %v723, %v756
  %v758 = vmul.f32 %v757, 0.005
  %v759 = vld [vmem:[%s3] sm:$0x1]
  %v760 = vadd.f32 %v758, 1e-05
  %v761 = vrsqrt.pop %v760
  %v762 = vmul.f32 %v761, %v760
  %v763 = vmul.f32 %v762, %v761
  %v764 = vmul.f32 0.5, %v763
  %v765 = vsub.f32 1.5, %v764
  %v766 = vmul.f32 %v761, %v765
  %vm767 = vweird.f32 %v760
  %vm768 = vweird.f32 %v761
  %vm769 = vmor %vm767, %vm768
  %v770 = vsel %vm769, %v761, %v766
  %v771 = vmul.f32 %v759, %v770
  %v772 = vld [vmem:[%s4] sm:$0x1]
  %v773 = vmul.f32 %v622, %v771
  %v774 = vsub.f32 %v772, %v773
  %v776 = vperm.slane %v771, 0
  %v778 = vmul.f32 %v196, %v776
  %v779 = vmul.f32 %v198, %v776
  %v780 = vmul.f32 %v201, %v776
  %v781 = vmul.f32 %v203, %v776
  %v782 = vmul.f32 %v206, %v776
  %v783 = vmul.f32 %v208, %v776
  %v784 = vmul.f32 %v211, %v776
  %v786 = vperm.slane %v774, 0
  %v788 = vadd.f32 %v778, %v786
  %v789 = vadd.f32 %v779, %v786
  %v790 = vadd.f32 %v780, %v786
  %v791 = vadd.f32 %v781, %v786
  %v792 = vadd.f32 %v782, %v786
  %v793 = vadd.f32 %v783, %v786
  %v794 = vadd.f32 %v784, %v786
  %v795 = vmax.f32 %v788, 0.0
  %v796 = vmax.f32 %v789, 0.0
  %v797 = vmax.f32 %v790, 0.0
  %v798 = vmax.f32 %v791, 0.0
  %v799 = vmax.f32 %v792, 0.0
  %v800 = vmax.f32 %v793, 0.0
  %v801 = vmax.f32 %v794, 0.0
  %v802 = vmul.f32 %v305, %v776
  %v803 = vmul.f32 %v307, %v776
  %v804 = vmul.f32 %v310, %v776
  %v805 = vmul.f32 %v312, %v776
  %v806 = vmul.f32 %v315, %v776
  %v807 = vmul.f32 %v317, %v776
  %v808 = vmul.f32 %v320, %v776
  %v809 = vadd.f32 %v802, %v786
  %v810 = vadd.f32 %v803, %v786
  %v811 = vadd.f32 %v804, %v786
  %v812 = vadd.f32 %v805, %v786
  %v813 = vadd.f32 %v806, %v786
  %v814 = vadd.f32 %v807, %v786
  %v815 = vadd.f32 %v808, %v786
  %v816 = vmax.f32 %v809, 0.0
  %v817 = vmax.f32 %v810, 0.0
  %v818 = vmax.f32 %v811, 0.0
  %v819 = vmax.f32 %v812, 0.0
  %v820 = vmax.f32 %v813, 0.0
  %v821 = vmax.f32 %v814, 0.0
  %v822 = vmax.f32 %v815, 0.0
  %v823 = vmax.f32 %v795, %v816
  %v824 = vmax.f32 %v796, %v817
  %v825 = vmax.f32 %v797, %v818
  %v826 = vmax.f32 %v798, %v819
  %v827 = vmax.f32 %v799, %v820
  %v828 = vmax.f32 %v800, %v821
  %v829 = vmax.f32 %v801, %v822
  %v830 = vmul.f32 %v414, %v776
  %v831 = vmul.f32 %v416, %v776
  %v832 = vmul.f32 %v419, %v776
  %v833 = vmul.f32 %v421, %v776
  %v834 = vmul.f32 %v424, %v776
  %v835 = vmul.f32 %v426, %v776
  %v836 = vmul.f32 %v429, %v776
  %v837 = vadd.f32 %v830, %v786
  %v838 = vadd.f32 %v831, %v786
  %v839 = vadd.f32 %v832, %v786
  %v840 = vadd.f32 %v833, %v786
  %v841 = vadd.f32 %v834, %v786
  %v842 = vadd.f32 %v835, %v786
  %v843 = vadd.f32 %v836, %v786
  %v844 = vmax.f32 %v837, 0.0
  %v845 = vmax.f32 %v838, 0.0
  %v846 = vmax.f32 %v839, 0.0
  %v847 = vmax.f32 %v840, 0.0
  %v848 = vmax.f32 %v841, 0.0
  %v849 = vmax.f32 %v842, 0.0
  %v850 = vmax.f32 %v843, 0.0
  %v851 = vmax.f32 %v823, %v844
  %v852 = vmax.f32 %v824, %v845
  %v853 = vmax.f32 %v825, %v846
  %v854 = vmax.f32 %v826, %v847
  %v855 = vmax.f32 %v827, %v848
  %v856 = vmax.f32 %v828, %v849
  %v857 = vmax.f32 %v829, %v850
  %v858 = vmul.f32 %v523, %v776
  %v859 = vmul.f32 %v525, %v776
  %v860 = vmul.f32 %v528, %v776
  %v861 = vmul.f32 %v530, %v776
  %v862 = vmul.f32 %v533, %v776
  %v863 = vmul.f32 %v535, %v776
  %v864 = vmul.f32 %v538, %v776
  %v865 = vadd.f32 %v858, %v786
  %v866 = vadd.f32 %v859, %v786
  %v867 = vadd.f32 %v860, %v786
  %v868 = vadd.f32 %v861, %v786
  %v869 = vadd.f32 %v862, %v786
  %v870 = vadd.f32 %v863, %v786
  %v871 = vadd.f32 %v864, %v786
  %v872 = vmax.f32 %v865, 0.0
  %v873 = vmax.f32 %v866, 0.0
  %v874 = vmax.f32 %v867, 0.0
  %v875 = vmax.f32 %v868, 0.0
  %v876 = vmax.f32 %v869, 0.0
  %v877 = vmax.f32 %v870, 0.0
  %v878 = vmax.f32 %v871, 0.0
  %v879 = vmax.f32 %v851, %v872
  %v880 = vmax.f32 %v852, %v873
  %v881 = vmax.f32 %v853, %v874
  %v882 = vmax.f32 %v854, %v875
  %v883 = vmax.f32 %v855, %v876
  %v884 = vmax.f32 %v856, %v877
  %v885 = vmax.f32 %v857, %v878
  %886 = vst.msk [vmem:[%s5] sm:$0xff] %vm541, %v879
  %887 = vst.msk [vmem:[%s5 + $0x8] sm:$0xff] %vm541, %v880
  %888 = vst.msk [vmem:[%s5 + $0x10] sm:$0xff] %vm541, %v881
  %889 = vst.msk [vmem:[%s5 + $0x18] sm:$0xff] %vm541, %v882
  %890 = vst.msk [vmem:[%s5 + $0x20] sm:$0xff] %vm541, %v883
  %891 = vst.msk [vmem:[%s5 + $0x28] sm:$0xff] %vm541, %v884
  %892 = vst.msk [vmem:[%s5 + $0x30] sm:$0x3] %vm553, %v885
  // Predicated region
  $region22: #{lenet5_forward.4} parent=0 // pred_check
    _
  $region23: #{lenet5_forward.4} parent=0 // pred_check_branch
    %894 = sbr.rel (0) target = $region25
  $region24: #{lenet5_forward.4} parent=0 // pred_region
    _
  $region25: #{lenet5_forward.4} parent=0 // pred_fallthru
    _
  // Predicated region
  $region26: #{lenet5_forward.4} parent=0 // pred_check
    _
  $region27: #{lenet5_forward.4} parent=0 // pred_check_branch
    %896 = sbr.rel (0) target = $region29
  $region28: #{lenet5_forward.4} parent=0 // pred_region
    _
  $region29: #{lenet5_forward.4} parent=0 // pred_fallthru
    _

// kernel: lenet5_forward.5
$region0: #{lenet5_forward.5}
  #allocation0 [shape = 'u32[]', space=smem, size = 0x4, offset = 0x4, fixed_abs, tag = 'smem constant byte address 0x4 - core index']
  #allocation1 [shape = 'u32[72,128]{1,0:T(1,128)}', space=vmem, size = 0x9000, scoped, tag = 'internal scratch']
  %s0 = inlined_call_operand.vmem [shape: bf16[2,400], index: 0, kind: input, shape index: {}]
  %s1 = inlined_call_operand.vmem [shape: bf16[400,120], index: 1, kind: input, shape index: {}]
  %s2 = inlined_call_operand.vmem [shape: f32[1,120], index: 2, kind: input, shape index: {}]
  %s3 = inlined_call_operand.vmem [shape: f32[1,120], index: 3, kind: input, shape index: {}]
  %s4 = inlined_call_operand.vmem [shape: f32[1,120], index: 4, kind: input, shape index: {}]
  %s5 = inlined_call_operand.vmem [shape: bf16[120,84], index: 5, kind: input, shape index: {}]
  %s6 = inlined_call_operand.vmem [shape: f32[1,84], index: 6, kind: input, shape index: {}]
  %s7 = inlined_call_operand.vmem [shape: bf16[84,10], index: 7, kind: input, shape index: {}]
  %s8 = inlined_call_operand.vmem [shape: f32[1,10], index: 8, kind: input, shape index: {}]
  %s9 = inlined_call_operand.hbm [shape: f32[2,10], index: 9, kind: output, shape index: {}]
  %s10 = sld [smem:[#allocation0]]
  $region46: #{lenet5_forward.5} parent=0
    _
  %s12 = ssub.s32 1, %s10
  %s13 = scalar_select 0, %s12, %s10
  $region1: #{lenet5_forward.5} parent=0
    #allocation2 [shape = 'u8[1024]{0}', space=vmem, size = 0x400, scoped, tag = 'output window, operand 0, single buffered']
    #allocation3 [shape = 's32[1]{0}', space=sflag, size = 0x4, scoped, tag = 'scoped memory for lenet5_forward.5']
    %14 = vsyncpa [#allocation3], 0
    // Predicated region
    $region2: #{lenet5_forward.5} parent=1 // pred_check
      _
    $region3: #{lenet5_forward.5} parent=1 // pred_check_branch
      %16 = sbr.rel (0) target = $region5
    $region4: #{lenet5_forward.5} parent=1 // pred_region
      _
    $region5: #{lenet5_forward.5} parent=1 // pred_fallthru
      _
    // Predicated region
    $region6: #{lenet5_forward.5} parent=1 // pred_check
      _
    $region7: #{lenet5_forward.5} parent=1 // pred_check_branch
      %18 = sbr.rel (0) target = $region9
    $region8: #{lenet5_forward.5} parent=1 // pred_region
      _
    $region9: #{lenet5_forward.5} parent=1 // pred_fallthru
      _
    // Predicated region
    $region10: #{lenet5_forward.5} parent=1 // pred_check
      _
    $region11: #{lenet5_forward.5} parent=1 // pred_check_branch
      %20 = sbr.rel (0) target = $region13
    $region12: #{lenet5_forward.5} parent=1 // pred_region
      _
    $region13: #{lenet5_forward.5} parent=1 // pred_fallthru
      _
    // Predicated region
    $region14: #{lenet5_forward.5} parent=1 // pred_check
      _
    $region15: #{lenet5_forward.5} parent=1 // pred_check_branch
      %22 = sbr.rel (0) target = $region17
    $region16: #{lenet5_forward.5} parent=1 // pred_region
      _
    $region17: #{lenet5_forward.5} parent=1 // pred_fallthru
      _
    // Predicated region
    $region18: #{lenet5_forward.5} parent=1 // pred_check
      _
    $region19: #{lenet5_forward.5} parent=1 // pred_check_branch
      %24 = sbr.rel (0) target = $region21
    $region20: #{lenet5_forward.5} parent=1 // pred_region
      _
    $region21: #{lenet5_forward.5} parent=1 // pred_fallthru
      _
    // Predicated region
    $region22: #{lenet5_forward.5} parent=1 // pred_check
      _
    $region23: #{lenet5_forward.5} parent=1 // pred_check_branch
      %26 = sbr.rel (0) target = $region25
    $region24: #{lenet5_forward.5} parent=1 // pred_region
      _
    $region25: #{lenet5_forward.5} parent=1 // pred_fallthru
      _
    // Predicated region
    $region26: #{lenet5_forward.5} parent=1 // pred_check
      _
    $region27: #{lenet5_forward.5} parent=1 // pred_check_branch
      %28 = sbr.rel (0) target = $region29
    $region28: #{lenet5_forward.5} parent=1 // pred_region
      _
    $region29: #{lenet5_forward.5} parent=1 // pred_fallthru
      _
    // Predicated region
    $region30: #{lenet5_forward.5} parent=1 // pred_check
      _
    $region31: #{lenet5_forward.5} parent=1 // pred_check_branch
      %30 = sbr.rel (0) target = $region33
    $region32: #{lenet5_forward.5} parent=1 // pred_region
      _
    $region33: #{lenet5_forward.5} parent=1 // pred_fallthru
      _
    // Predicated region
    $region34: #{lenet5_forward.5} parent=1 // pred_check
      _
    $region35: #{lenet5_forward.5} parent=1 // pred_check_branch
      %32 = sbr.rel (0) target = $region37
    $region36: #{lenet5_forward.5} parent=1 // pred_region
      _
    $region37: #{lenet5_forward.5} parent=1 // pred_fallthru
      _
    %v34 = vld [vmem:[%s0] sm:$0xf]
    %v35 = vld [vmem:[%s1] sm:$0xf]
    %v36 = vld [vmem:[%s1 + $0x4] sm:$0xf]
    %v37 = vld [vmem:[%s1 + $0x8] sm:$0xf]
    %v38 = vld [vmem:[%s1 + $0xc] sm:$0xf]
    %v39 = vld [vmem:[%s1 + $0x10] sm:$0xf]
    %v40 = vld [vmem:[%s1 + $0x14] sm:$0xf]
    %v41 = vld [vmem:[%s1 + $0x18] sm:$0xf]
    %v42 = vld [vmem:[%s1 + $0x1c] sm:$0xf]
    %v43 = vld [vmem:[%s1 + $0x20] sm:$0xf]
    %v44 = vld [vmem:[%s1 + $0x24] sm:$0xf]
    %v45 = vld [vmem:[%s1 + $0x28] sm:$0xf]
    %v46 = vld [vmem:[%s1 + $0x2c] sm:$0xf]
    %v47 = vld [vmem:[%s1 + $0x30] sm:$0xf]
    %v48 = vld [vmem:[%s1 + $0x34] sm:$0xf]
    %v49 = vld [vmem:[%s1 + $0x38] sm:$0xf]
    %v50 = vld [vmem:[%s1 + $0x3c] sm:$0xf]
    %v51 = vld [vmem:[%s1 + $0x40] sm:$0xf]
    %v52 = vld [vmem:[%s1 + $0x44] sm:$0xf]
    %v53 = vld [vmem:[%s1 + $0x48] sm:$0xf]
    %v54 = vld [vmem:[%s1 + $0x4c] sm:$0xf]
    %v55 = vld [vmem:[%s1 + $0x50] sm:$0xf]
    %v56 = vld [vmem:[%s1 + $0x54] sm:$0xf]
    %v57 = vld [vmem:[%s1 + $0x58] sm:$0xf]
    %v58 = vld [vmem:[%s1 + $0x5c] sm:$0xf]
    %v59 = vld [vmem:[%s1 + $0x60] sm:$0xf]
    %v60 = vld [vmem:[%s1 + $0x64] sm:$0xf]
    %v61 = vld [vmem:[%s1 + $0x68] sm:$0xf]
    %v62 = vld [vmem:[%s1 + $0x6c] sm:$0xf]
    %v63 = vld [vmem:[%s1 + $0x70] sm:$0xf]
    %v64 = vld [vmem:[%s1 + $0x74] sm:$0xf]
    %v65 = vld [vmem:[%s1 + $0x78] sm:$0xf]
    %v66 = vld [vmem:[%s1 + $0x7c] sm:$0xf]
    %v67 = vld [vmem:[%s1 + $0x80] sm:$0xf]
    %v68 = vld [vmem:[%s1 + $0x84] sm:$0xf]
    %v69 = vld [vmem:[%s1 + $0x88] sm:$0xf]
    %v70 = vld [vmem:[%s1 + $0x8c] sm:$0xf]
    %v71 = vld [vmem:[%s1 + $0x90] sm:$0xf]
    %v72 = vld [vmem:[%s1 + $0x94] sm:$0xf]
    %v73 = vld [vmem:[%s1 + $0x98] sm:$0xf]
    %v74 = vld [vmem:[%s1 + $0x9c] sm:$0xf]
    %v75 = vld [vmem:[%s1 + $0xa0] sm:$0xf]
    %v76 = vld [vmem:[%s1 + $0xa4] sm:$0xf]
    %v77 = vld [vmem:[%s1 + $0xa8] sm:$0xf]
    %v78 = vld [vmem:[%s1 + $0xac] sm:$0xf]
    %v79 = vld [vmem:[%s1 + $0xb0] sm:$0xf]
    %v80 = vld [vmem:[%s1 + $0xb4] sm:$0xf]
    %v81 = vld [vmem:[%s1 + $0xb8] sm:$0xf]
    %v82 = vld [vmem:[%s1 + $0xbc] sm:$0xf]
    %v83 = vld [vmem:[%s1 + $0xc0] sm:$0xf]
    %v84 = vld [vmem:[%s1 + $0xc4] sm:$0xf]
    %v85 = vld [vmem:[%s2] sm:$0x1]
    %v87 = vperm.slane %v85, 0
    %90 = vst [vmem:[#allocation1] ss:$9 sm:$0xff] %v34
    %v91 = vld [vmem:[#allocation1] sm:$0xff]
    %v92 = vld [vmem:[#allocation1 + $0x9] sm:$0xff]
    %v93 = vld [vmem:[#allocation1 + $0x12] sm:$0xff]
    %v94 = vld [vmem:[#allocation1 + $0x1b] sm:$0xff]
    %v148 = vunpack.c.l.b16 %v35
    %v149 = vunpack.c.l.b16 %v36
    %v150 = vunpack.c.l.b16 %v37
    %v151 = vunpack.c.l.b16 %v38
    %v152 = vunpack.c.l.b16 %v39
    %v153 = vunpack.c.l.b16 %v40
    %v154 = vunpack.c.l.b16 %v41
    %v155 = vunpack.c.l.b16 %v42
    %v156 = vunpack.c.l.b16 %v43
    %v157 = vunpack.c.l.b16 %v44
    %v158 = vunpack.c.l.b16 %v45
    %v159 = vunpack.c.l.b16 %v46
    %v160 = vunpack.c.l.b16 %v47
    %v161 = vunpack.c.l.b16 %v48
    %v162 = vunpack.c.l.b16 %v49
    %v163 = vunpack.c.l.b16 %v50
    %v164 = vunpack.c.l.b16 %v51
    %v165 = vunpack.c.l.b16 %v52
    %v166 = vunpack.c.l.b16 %v53
    %v167 = vunpack.c.l.b16 %v54
    %v168 = vunpack.c.l.b16 %v55
    %v169 = vunpack.c.l.b16 %v56
    %v170 = vunpack.c.l.b16 %v57
    %v171 = vunpack.c.l.b16 %v58
    %v172 = vunpack.c.l.b16 %v59
    %v173 = vunpack.c.l.b16 %v60
    %v174 = vunpack.c.l.b16 %v61
    %v175 = vunpack.c.l.b16 %v62
    %v176 = vunpack.c.l.b16 %v63
    %v177 = vunpack.c.l.b16 %v64
    %v178 = vunpack.c.l.b16 %v65
    %v179 = vunpack.c.l.b16 %v66
    %v180 = vunpack.c.l.b16 %v67
    %v181 = vunpack.c.l.b16 %v68
    %v182 = vunpack.c.l.b16 %v69
    %v183 = vunpack.c.l.b16 %v70
    %v184 = vunpack.c.l.b16 %v71
    %v185 = vunpack.c.l.b16 %v72
    %v186 = vunpack.c.l.b16 %v73
    %v187 = vunpack.c.l.b16 %v74
    %v188 = vunpack.c.l.b16 %v75
    %v189 = vunpack.c.l.b16 %v76
    %v190 = vunpack.c.l.b16 %v77
    %v191 = vunpack.c.l.b16 %v78
    %v192 = vunpack.c.l.b16 %v79
    %v193 = vunpack.c.l.b16 %v80
    %v194 = vunpack.c.l.b16 %v81
    %v195 = vunpack.c.l.b16 %v82
    %v196 = vunpack.c.l.b16 %v83
    %v197 = vunpack.c.l.b16 %v84
    %v198 = vpack.c.b16 %v149, %v148
    %v199 = vpack.c.b16 %v151, %v150
    %v200 = vpack.c.b16 %v153, %v152
    %v201 = vpack.c.b16 %v155, %v154
    %v202 = vpack.c.b16 %v157, %v156
    %v203 = vpack.c.b16 %v159, %v158
    %v204 = vpack.c.b16 %v161, %v160
    %v205 = vpack.c.b16 %v163, %v162
    %v206 = vpack.c.b16 %v165, %v164
    %v207 = vpack.c.b16 %v167, %v166
    %v208 = vpack.c.b16 %v169, %v168
    %v209 = vpack.c.b16 %v171, %v170
    %v210 = vpack.c.b16 %v173, %v172
    %v211 = vpack.c.b16 %v175, %v174
    %v212 = vpack.c.b16 %v177, %v176
    %v213 = vpack.c.b16 %v179, %v178
    %v214 = vpack.c.b16 %v181, %v180
    %v215 = vpack.c.b16 %v183, %v182
    %v216 = vpack.c.b16 %v185, %v184
    %v217 = vpack.c.b16 %v187, %v186
    %v218 = vpack.c.b16 %v189, %v188
    %v219 = vpack.c.b16 %v191, %v190
    %v220 = vpack.c.b16 %v193, %v192
    %v221 = vpack.c.b16 %v195, %v194
    %v222 = vpack.c.b16 %v197, %v196
    %vm248 = vcmask 130048
    %v249 = vsel %vm248, %v94, 0
    %251 = vmatpush.bf16.msra.mxu0 %v205
    %252 = vmatpush.bf16.msra.mxu0 %v204
    %253 = vmatpush.bf16.msra.mxu0 %v203
    %254 = vmatpush.bf16.msra.mxu0 %v202
    %255 = vmatpush.bf16.msra.mxu0 %v201
    %256 = vmatpush.bf16.msra.mxu0 %v200
    %257 = vmatpush.bf16.msra.mxu0 %v199
    %258 = vmatpush.bf16.msra.mxu0 %v198
    %259 = vmatmul.bf16.gmra.mxu0 %v91
    %v260 = vpop.f32.mrf.mxu0
    %v261 = vadd.f32 %v87, %v260
    %v262 = vpop.f32.mrf.mxu0
    %263 = vdwg.mxu0
    %264 = vmatpush.bf16.msra.mxu0 %v213
    %265 = vmatpush.bf16.msra.mxu0 %v212
    %266 = vmatpush.bf16.msra.mxu0 %v211
    %267 = vmatpush.bf16.msra.mxu0 %v210
    %268 = vmatpush.bf16.msra.mxu0 %v209
    %269 = vmatpush.bf16.msra.mxu0 %v208
    %270 = vmatpush.bf16.msra.mxu0 %v207
    %271 = vmatpush.bf16.msra.mxu0 %v206
    %272 = vmatmul.bf16.gmra.mxu0 %v92
    %v273 = vpop.f32.mrf.mxu0
    %v274 = vadd.f32 %v261, %v273
    %v275 = vpop.f32.mrf.mxu0
    %276 = vdwg.mxu0
    %277 = vmatpush.bf16.msra.mxu0 %v221
    %278 = vmatpush.bf16.msra.mxu0 %v220
    %279 = vmatpush.bf16.msra.mxu0 %v219
    %280 = vmatpush.bf16.msra.mxu0 %v218
    %281 = vmatpush.bf16.msra.mxu0 %v217
    %282 = vmatpush.bf16.msra.mxu0 %v216
    %283 = vmatpush.bf16.msra.mxu0 %v215
    %284 = vmatpush.bf16.msra.mxu0 %v214
    %285 = vmatmul.bf16.gmra.mxu0 %v93
    %v286 = vpop.f32.mrf.mxu0
    %v287 = vadd.f32 %v274, %v286
    %v288 = vpop.f32.mrf.mxu0
    %289 = vdwg.mxu0
    %290 = vmatpush.bf16.msra.mxu0 0
    %291 = vmatpush.bf16.msra.mxu0 0
    %292 = vmatpush.bf16.msra.mxu0 0
    %293 = vmatpush.bf16.msra.mxu0 0
    %294 = vmatpush.bf16.msra.mxu0 0
    %295 = vmatpush.bf16.msra.mxu0 0
    %296 = vmatpush.bf16.msra.mxu0 0
    %297 = vmatpush.bf16.msra.mxu0 %v222
    %298 = vmatmul.bf16.gmra.mxu0 %v249
    %v299 = vpop.f32.mrf.mxu0
    %v300 = vadd.f32 %v287, %v299
    %v301 = vpop.f32.mrf.mxu0
    %302 = vdwg.mxu0
    %vm303 = vcmask 975872
    %v304 = vsel %vm303, %v300, 0.0
    %v305 = vrot.slane %v304, 4
    %v306 = vadd.f32 %v304, %v305
    %v307 = vrot.slane %v306, 2
    %v308 = vadd.f32 %v306, %v307
    %v309 = vrot.slane %v308, 1
    %v310 = vadd.f32 %v308, %v309
    %v311 = vrcp.pop 2.0
    %v312 = vmul.f32 2.0, %v311
    %v313 = vsub.f32 1.0, %v312
    %v314 = vmul.f32 %v311, %v313
    %v315 = vadd.f32 %v311, %v314
    %vm316 = vweird.f32 %v311
    %v317 = vsel %vm316, %v311, %v315
    %v318 = vmul.f32 %v310, %v317
    %v319 = vsub.f32 %v300, %v318
    %v320 = vmul.f32 %v319, %v319
    %v321 = vsel %vm303, %v320, 0.0
    %v322 = vrot.slane %v321, 4
    %v323 = vadd.f32 %v321, %v322
    %v324 = vrot.slane %v323, 2
    %v325 = vadd.f32 %v323, %v324
    %v326 = vrot.slane %v325, 1
    %v327 = vadd.f32 %v325, %v326
    %v328 = vmul.f32 %v327, %v317
    %v329 = vld [vmem:[%s3] sm:$0x1]
    %v330 = vadd.f32 %v328, 1e-05
    %v331 = vrsqrt.pop %v330
    %v332 = vmul.f32 %v331, %v330
    %v333 = vmul.f32 %v332, %v331
    %v334 = vmul.f32 0.5, %v333
    %v335 = vsub.f32 1.5, %v334
    %v336 = vmul.f32 %v331, %v335
    %vm337 = vweird.f32 %v330
    %vm338 = vweird.f32 %v331
    %vm339 = vmor %vm337, %vm338
    %v340 = vsel %vm339, %v331, %v336
    %v341 = vmul.f32 %v329, %v340
    %v343 = vperm.slane %v341, 0
    %v345 = vmul.f32 %v319, %v343
    %v346 = vld [vmem:[%s4] sm:$0x1]
    %v348 = vperm.slane %v346, 0
    %v350 = vadd.f32 %v345, %v348
    %v351 = vmax.f32 %v350, 0.0
    %v352 = vpack.c.bf16 %v351, %v351
    %v353 = vld [vmem:[%s5] sm:$0xf]
    %v354 = vld [vmem:[%s5 + $0x4] sm:$0xf]
    %v355 = vld [vmem:[%s5 + $0x8] sm:$0xf]
    %v356 = vld [vmem:[%s5 + $0xc] sm:$0xf]
    %v357 = vld [vmem:[%s5 + $0x10] sm:$0xf]
    %v358 = vld [vmem:[%s5 + $0x14] sm:$0xf]
    %v359 = vld [vmem:[%s5 + $0x18] sm:$0xf]
    %v360 = vld [vmem:[%s5 + $0x1c] sm:$0xf]
    %v361 = vld [vmem:[%s5 + $0x20] sm:$0xf]
    %v362 = vld [vmem:[%s5 + $0x24] sm:$0xf]
    %v363 = vld [vmem:[%s5 + $0x28] sm:$0xf]
    %v364 = vld [vmem:[%s5 + $0x2c] sm:$0xf]
    %v365 = vld [vmem:[%s5 + $0x30] sm:$0xf]
    %v366 = vld [vmem:[%s5 + $0x34] sm:$0xf]
    %v367 = vld [vmem:[%s5 + $0x38] sm:$0xf]
    %v368 = vld [vmem:[%s6] sm:$0x1]
    %v370 = vperm.slane %v368, 0
    %v387 = vunpack.c.l.b16 %v353
    %v388 = vunpack.c.l.b16 %v354
    %v389 = vunpack.c.l.b16 %v355
    %v390 = vunpack.c.l.b16 %v356
    %v391 = vunpack.c.l.b16 %v357
    %v392 = vunpack.c.l.b16 %v358
    %v393 = vunpack.c.l.b16 %v359
    %v394 = vunpack.c.l.b16 %v360
    %v395 = vunpack.c.l.b16 %v361
    %v396 = vunpack.c.l.b16 %v362
    %v397 = vunpack.c.l.b16 %v363
    %v398 = vunpack.c.l.b16 %v364
    %v399 = vunpack.c.l.b16 %v365
    %v400 = vunpack.c.l.b16 %v366
    %v401 = vunpack.c.l.b16 %v367
    %v402 = vpack.c.b16 %v388, %v387
    %v403 = vpack.c.b16 %v390, %v389
    %v404 = vpack.c.b16 %v392, %v391
    %v405 = vpack.c.b16 %v394, %v393
    %v406 = vpack.c.b16 %v396, %v395
    %v407 = vpack.c.b16 %v398, %v397
    %v408 = vpack.c.b16 %v400, %v399
    %v409 = vpack.c.b16 %v401, %v401
    %vm417 = vcmask 982016
    %v419 = vsel %vm417, %v352, 0
    %vm421 = vcmask 1043456
    %v423 = vsel %vm421, %v409, 0
    %425 = vmatpush.bf16.msra.mxu0 %v423
    %426 = vmatpush.bf16.msra.mxu0 %v408
    %427 = vmatpush.bf16.msra.mxu0 %v407
    %428 = vmatpush.bf16.msra.mxu0 %v406
    %429 = vmatpush.bf16.msra.mxu0 %v405
    %430 = vmatpush.bf16.msra.mxu0 %v404
    %431 = vmatpush.bf16.msra.mxu0 %v403
    %432 = vmatpush.bf16.msra.mxu0 %v402
    %433 = vmatmul.bf16.gmra.mxu0 %v419
    %v434 = vpop.f32.mrf.mxu0
    %v435 = vadd.f32 %v370, %v434
    %v436 = vpop.f32.mrf.mxu0
    %437 = vdwg.mxu0
    %v438 = vmax.f32 %v435, 0.0
    %v439 = vpack.c.bf16 %v438, %v438
    %v440 = vld [vmem:[%s7] sm:$0xf]
    %v441 = vld [vmem:[%s7 + $0x4] sm:$0xf]
    %v442 = vld [vmem:[%s7 + $0x8] sm:$0xf]
    %v443 = vld [vmem:[%s7 + $0xc] sm:$0xf]
    %v444 = vld [vmem:[%s7 + $0x10] sm:$0xf]
    %v445 = vld [vmem:[%s7 + $0x14] sm:$0xf]
    %v446 = vld [vmem:[%s7 + $0x18] sm:$0xf]
    %v447 = vld [vmem:[%s7 + $0x1c] sm:$0xf]
    %v448 = vld [vmem:[%s7 + $0x20] sm:$0xf]
    %v449 = vld [vmem:[%s7 + $0x24] sm:$0xf]
    %v450 = vld [vmem:[%s7 + $0x28] sm:$0x3]
    %v451 = vld [vmem:[%s8] sm:$0x1]
    %v453 = vperm.slane %v451, 0
    %v466 = vunpack.c.l.b16 %v440
    %v467 = vunpack.c.l.b16 %v441
    %v468 = vunpack.c.l.b16 %v442
    %v469 = vunpack.c.l.b16 %v443
    %v470 = vunpack.c.l.b16 %v444
    %v471 = vunpack.c.l.b16 %v445
    %v472 = vunpack.c.l.b16 %v446
    %v473 = vunpack.c.l.b16 %v447
    %v474 = vunpack.c.l.b16 %v448
    %v475 = vunpack.c.l.b16 %v449
    %v476 = vunpack.c.l.b16 %v450
    %v477 = vpack.c.b16 %v467, %v466
    %v478 = vpack.c.b16 %v469, %v468
    %v479 = vpack.c.b16 %v471, %v470
    %v480 = vpack.c.b16 %v473, %v472
    %v481 = vpack.c.b16 %v475, %v474
    %v482 = vpack.c.b16 %v476, %v476
    %vm488 = vcmask 687104
    %v490 = vsel %vm488, %v439, 0
    %vm492 = vcmask 1041408
    %v494 = vsel %vm492, %v482, 0
    %496 = vmatpush.bf16.msra.mxu0 0
    %497 = vmatpush.bf16.msra.mxu0 0
    %498 = vmatpush.bf16.msra.mxu0 %v494
    %499 = vmatpush.bf16.msra.mxu0 %v481
    %500 = vmatpush.bf16.msra.mxu0 %v480
    %501 = vmatpush.bf16.msra.mxu0 %v479
    %502 = vmatpush.bf16.msra.mxu0 %v478
    %503 = vmatpush.bf16.msra.mxu0 %v477
    %504 = vmatmul.bf16.gmra.mxu0 %v490
    %v505 = vpop.f32.mrf.mxu0
    %v506 = vadd.f32 %v453, %v505
    %v507 = vpop.f32.mrf.mxu0
    %508 = vdwg.mxu0
    %vm509 = vcmask 74752
    %v510 = vsel %vm509, %v506, -inf
    %511 = vmax.xlane.f32.xlu0 %v510
    %v512 = vpop.xlane.xlu0 %511
    %v513 = vsub.f32 %v506, %v512
    %v514 = vmul.f32 %v513, 1.442695
    %v515 = vpow.pop %v514
    %v516 = vsel %vm509, %v515, 0.0
    %517 = vadd.xlane.f32.xlu0 %v516
    %v518 = vpop.xlane.xlu0 %517
    %v519 = vlog2.pop %v518
    %v520 = vmul.f32 %v519, 0.6931472
    %v521 = vsub.f32 %v513, %v520
    %522 = vst.msk [vmem:[#allocation2] sm:$0x3] %vm509, %v521
    // Predicated region
    $region38: #{lenet5_forward.5} parent=1 // pred_check
      _
    $region39: #{lenet5_forward.5} parent=1 // pred_check_branch
      %524 = sbr.rel (0) target = $region41
    $region40: #{lenet5_forward.5} parent=1 // pred_region
      %526 = vsyncadd [#allocation3], 0
      %s528 = sshll.u32 [#allocation2], 4
      %s529 = int_to_ptr.vmem [resolvable:$true] %s528
      %s530 = sshll.u32 %s9, 4
      %s531 = int_to_ptr.hbm [resolvable:$true] %s530
      %533 = dma.vmem_to_hbm [thread:$0]  %s529, 32, %s531, [#allocation3]
    $region41: #{lenet5_forward.5} parent=1 // pred_fallthru
      _
    // Predicated region
    $region42: #{lenet5_forward.5} parent=1 // pred_check
      _
    $region43: #{lenet5_forward.5} parent=1 // pred_check_branch
      %535 = sbr.rel (0) target = $region45
    $region44: #{lenet5_forward.5} parent=1 // pred_region
      %537 = dma.done [#allocation3], 32
    $region45: #{lenet5_forward.5} parent=1 // pred_fallthru
      _
    %538 = vsyncpa [#allocation3], 1

</llo_original>
